<compile_context>
chip_gen: v6e
topology: v6e:2x2x1
jax: 0.10.0
libtpu: 0.0.40
codegen_flags: <defaults>
</compile_context>

<pallas_src>
import functools

import jax
import jax.numpy as jnp
from jax.experimental import pallas as pl
from jax.experimental.pallas import tpu as pltpu


def _iteration_kernel(acat_ref, ecat_ref, h_re_ref, h_im_ref,
                      v_re_ref, v_im_ref, pa_ref, pe_ref,
                      pz_re_ref, pz_im_ref,
                      vraw_re_ref, vraw_im_ref, u_re_ref, u_im_ref,
                      w_re_ref, w_im_ref, *, nt, bt):
    f32 = jnp.float32
    dot2 = lambda x, y: jnp.dot(x, y, preferred_element_type=f32)
    bmm = lambda x, y: jnp.einsum("bmk,bkn->bmn", x, y,
                                  preferred_element_type=f32)

    def cbmm(ar, ai, br, bi):
        # batched complex matmul on split real/imag parts
        return bmm(ar, br) - bmm(ai, bi), bmm(ar, bi) + bmm(ai, br)

    # Z parameters (broadcast across the batch tile), packed lane-dense.
    pz_r, pz_i = pz_re_ref[...], pz_im_ref[...]
    zf_r, zg_r, zj_r = pz_r[:, :nt], pz_r[:, nt:2 * nt], pz_r[:, 2 * nt:]
    zf_i, zg_i, zj_i = pz_i[:, :nt], pz_i[:, nt:2 * nt], pz_i[:, 2 * nt:]

    # (A^H X + A Y) for blocks F and J: ONE stacked-M, lane-dense dot.
    ta = dot2(acat_ref[...], pa_ref[...]).reshape(bt, nt, 4 * nt)
    termF_r = ta[:, :, 0 * nt:1 * nt] + zf_r
    termJ_r = ta[:, :, 1 * nt:2 * nt] + zj_r
    termF_i = ta[:, :, 2 * nt:3 * nt] + zf_i
    termJ_i = ta[:, :, 3 * nt:4 * nt] + zj_i

    # (E^H X_G + E Y_G) for block G.
    te = dot2(ecat_ref[...], pe_ref[...]).reshape(bt, nt, 2 * nt)
    termG_r = te[:, :, :nt] + zg_r
    termG_i = te[:, :, nt:] + zg_i

    h_r, h_i = h_re_ref[...], h_im_ref[...]

    # F block:  U = (A^H X_F + A Y_F + Z_F) (H V_prev)
    hv_r, hv_i = cbmm(h_r, h_i, v_re_ref[...], v_im_ref[...])
    u_r, u_i = cbmm(termF_r, termF_i, hv_r, hv_i)
    u_re_ref[...] = u_r
    u_im_ref[...] = u_i

    # G block:  W = (E^H X_G + E Y_G + Z_G) (H U)
    hu_r, hu_i = cbmm(h_r, h_i, u_r, u_i)
    w_r, w_i = cbmm(termG_r, termG_i, hu_r, hu_i)
    w_re_ref[...] = w_r
    w_im_ref[...] = w_i

    # J block:  V_raw = (A^H X_J + A Y_J + Z_J) (H W)
    hw_r, hw_i = cbmm(h_r, h_i, w_r, w_i)
    v_r, v_i = cbmm(termJ_r, termJ_i, hw_r, hw_i)
    vraw_re_ref[...] = v_r
    vraw_im_ref[...] = v_i


def iteration_block(A, E, H, V_prev, params_re, params_im, power, b_tile=None):
    """Pallas implementation of IterationBlock.forward -> (V, U, W)."""
    f32 = jnp.float32
    B, Nt, _ = A.shape
    d = V_prev.shape[-1]

    if b_tile is None:
        b_tile = min(B, 16)          # amortize per-step overhead; VMEM/elt is tiny
    grid = (B + b_tile - 1) // b_tile
    Bp = grid * b_tile
    if Bp != B:                      # pad batch: padded rows give V_raw == 0
        pad3 = ((0, Bp - B), (0, 0), (0, 0))
        A = jnp.pad(A, pad3)
        E = jnp.pad(E, pad3)
        H = jnp.pad(H, pad3)
        V_prev = jnp.pad(V_prev, pad3)

    split = lambda z: (jnp.real(z).astype(f32), jnp.imag(z).astype(f32))
    a_re, a_im = split(A)
    e_re, e_im = split(E)
    h_re, h_im = split(H)
    v_re, v_im = split(V_prev)

    def stack_lhs(xr, xi):
        # (Bp, Nt, Nt) -> (Bp*Nt, 4Nt) rows of [X^H_r | X^H_i | X_r | X_i]
        xhr = jnp.swapaxes(xr, -1, -2)
        xhi = -jnp.swapaxes(xi, -1, -2)
        cat = jnp.concatenate([xhr, xhi, xr, xi], axis=-1)
        return cat.reshape(Bp * Nt, 4 * Nt)

    acat = stack_lhs(a_re, a_im)
    ecat = stack_lhs(e_re, e_im)

    # Pack learnable parameters as real block matrices (lane-dense RHS).
    pr, pi_ = params_re.astype(f32), params_im.astype(f32)
    xa_r = jnp.concatenate([pr[0, 0], pr[2, 0]], axis=1)    # [X_F | X_J]
    xa_i = jnp.concatenate([pi_[0, 0], pi_[2, 0]], axis=1)
    ya_r = jnp.concatenate([pr[0, 1], pr[2, 1]], axis=1)    # [Y_F | Y_J]
    ya_i = jnp.concatenate([pi_[0, 1], pi_[2, 1]], axis=1)
    pa = jnp.concatenate([
        jnp.concatenate([xa_r, xa_i], axis=1),
        jnp.concatenate([-xa_i, xa_r], axis=1),
        jnp.concatenate([ya_r, ya_i], axis=1),
        jnp.concatenate([-ya_i, ya_r], axis=1)], axis=0)    # (4Nt, 4Nt)

    xg_r, xg_i = pr[1, 0], pi_[1, 0]
    yg_r, yg_i = pr[1, 1], pi_[1, 1]
    pe = jnp.concatenate([
        jnp.concatenate([xg_r, xg_i], axis=1),
        jnp.concatenate([-xg_i, xg_r], axis=1),
        jnp.concatenate([yg_r, yg_i], axis=1),
        jnp.concatenate([-yg_i, yg_r], axis=1)], axis=0)    # (4Nt, 2Nt)

    pz_re = jnp.concatenate([pr[0, 2], pr[1, 2], pr[2, 2]], axis=1)   # (Nt, 3Nt)
    pz_im = jnp.concatenate([pi_[0, 2], pi_[1, 2], pi_[2, 2]], axis=1)

    lhs_spec = pl.BlockSpec((b_tile * Nt, 4 * Nt), lambda g: (g, 0))
    mat_spec = pl.BlockSpec((b_tile, Nt, Nt), lambda g: (g, 0, 0))
    vec_spec = pl.BlockSpec((b_tile, Nt, d), lambda g: (g, 0, 0))
    pa_spec = pl.BlockSpec((4 * Nt, 4 * Nt), lambda g: (0, 0))
    pe_spec = pl.BlockSpec((4 * Nt, 2 * Nt), lambda g: (0, 0))
    pz_spec = pl.BlockSpec((Nt, 3 * Nt), lambda g: (0, 0))

    out_shapes = tuple(jax.ShapeDtypeStruct((Bp, Nt, d), f32) for _ in range(6))

    outs = pl.pallas_call(
        functools.partial(_iteration_kernel, nt=Nt, bt=b_tile),
        out_shape=out_shapes,
        grid_spec=pltpu.PrefetchScalarGridSpec(
            num_scalar_prefetch=0,
            grid=(grid,),
            in_specs=[lhs_spec, lhs_spec, mat_spec, mat_spec,
                      vec_spec, vec_spec, pa_spec, pe_spec,
                      pz_spec, pz_spec],
            out_specs=(vec_spec,) * 6,
        ),
        compiler_params=pltpu.CompilerParams(
            dimension_semantics=("parallel",)),
    )(acat, ecat, h_re, h_im, v_re, v_im, pa, pe, pz_re, pz_im)

    vraw_re, vraw_im, u_re_o, u_im_o, w_re_o, w_im_o = outs

    # Global power projection: tiny, memory-bound -> fused XLA epilogue
    # (padded batch rows contribute exactly zero to the power sum).
    pow_sum = jnp.sum(vraw_re * vraw_re + vraw_im * vraw_im)
    scale = jnp.sqrt(power / (pow_sum + 1e-12))
    V = jax.lax.complex(vraw_re * scale, vraw_im * scale)[:B]
    U = jax.lax.complex(u_re_o, u_im_o)[:B]
    W = jax.lax.complex(w_re_o, w_im_o)[:B]
    return V, U, W


def reference(A, E, H, V_prev, params_re, params_im, power):
    """Pure-JAX (complex64, HIGHEST precision) reference of IterationBlock.forward."""
    P = jax.lax.complex(params_re, params_im)
    mm = functools.partial(jnp.matmul, precision=jax.lax.Precision.HIGHEST)

    def pb(blk, A_, H_, V_):
        X, Y, Z = P[blk, 0], P[blk, 1], P[blk, 2]
        term = mm(jnp.conj(jnp.swapaxes(A_, -1, -2)), X) + mm(A_, Y) + Z
        return mm(term, mm(H_, V_))

    U = pb(0, A, H, V_prev)
    W = pb(1, E, H, U)
    Vr = pb(2, A, H, W)
    pw = jnp.sum(jnp.real(Vr * jnp.conj(Vr)))
    scale = jnp.sqrt(power / (pw + 1e-12))
    return Vr * scale, U, W


if __name__ == "__main__":
    B, Nt, d = 2, 16, 8          # Nr == Nt (required by the module's matmuls)
    power = 10.0

    key = jax.random.PRNGKey(0)
    keys = jax.random.split(key, 6)

    def crandn(k, shape):
        k1, k2 = jax.random.split(k)
        return jax.lax.complex(jax.random.normal(k1, shape, jnp.float32),
                               jax.random.normal(k2, shape, jnp.float32))

    A = crandn(keys[0], (B, Nt, Nt))
    E = crandn(keys[1], (B, Nt, Nt))
    H = crandn(keys[2], (B, Nt, Nt))
    V_prev = crandn(keys[3], (B, Nt, d))

    # Deterministic synthetic parameters: X,Y,Z for each of F,G,J (~0.1*randn).
    params_re = 0.1 * jax.random.normal(keys[4], (3, 3, Nt, Nt), jnp.float32)
    params_im = 0.1 * jax.random.normal(keys[5], (3, 3, Nt, Nt), jnp.float32)

    run = jax.jit(functools.partial(iteration_block, power=power))
    V, U, W = run(A, E, H, V_prev, params_re, params_im)
    jax.block_until_ready((V, U, W))

    V_ref, U_ref, W_ref = reference(A, E, H, V_prev, params_re, params_im, power)

    def rel_err(x, y):
        return float(jnp.linalg.norm(x - y) / (jnp.linalg.norm(y) + 1e-30))

    # Kernel uses default (single-pass) matmul precision -> compare in a
    # relative-Frobenius sense against the HIGHEST-precision complex reference.
    assert U.shape == U_ref.shape and W.shape == W_ref.shape and V.shape == V_ref.shape
    assert rel_err(U, U_ref) < 2e-2, "U mismatch"
    assert rel_err(W, W_ref) < 2e-2, "W mismatch"
    assert rel_err(V, V_ref) < 2e-2, "V mismatch"

    print("KERNEL_OK")
</pallas_src>

<mosaic_0001>
module attributes {stable_mosaic.version = 11 : i64} {
  func.func @_iteration_kernel(%arg0: i32, %arg1: memref<32x64xf32, #tpu.memory_space<vmem>>, %arg2: memref<32x64xf32, #tpu.memory_space<vmem>>, %arg3: memref<2x16x16xf32, #tpu.memory_space<vmem>>, %arg4: memref<2x16x16xf32, #tpu.memory_space<vmem>>, %arg5: memref<2x16x8xf32, #tpu.memory_space<vmem>>, %arg6: memref<2x16x8xf32, #tpu.memory_space<vmem>>, %arg7: memref<64x64xf32, #tpu.memory_space<vmem>>, %arg8: memref<64x32xf32, #tpu.memory_space<vmem>>, %arg9: memref<16x48xf32, #tpu.memory_space<vmem>>, %arg10: memref<16x48xf32, #tpu.memory_space<vmem>>, %arg11: memref<2x16x8xf32, #tpu.memory_space<vmem>>, %arg12: memref<2x16x8xf32, #tpu.memory_space<vmem>>, %arg13: memref<2x16x8xf32, #tpu.memory_space<vmem>>, %arg14: memref<2x16x8xf32, #tpu.memory_space<vmem>>, %arg15: memref<2x16x8xf32, #tpu.memory_space<vmem>>, %arg16: memref<2x16x8xf32, #tpu.memory_space<vmem>>) attributes {dimension_semantics = [#tpu.dimension_semantics<parallel>], iteration_bounds = array<i64: 1>, scalar_prefetch = 0 : i64, scratch_operands = 0 : i64, tpu.core_type = #tpu.core_type<tc>, window_params = [{transform_indices = @transform_0, window_bounds = array<i64: 32, 64>}, {transform_indices = @transform_1, window_bounds = array<i64: 32, 64>}, {transform_indices = @transform_2, window_bounds = array<i64: 2, 16, 16>}, {transform_indices = @transform_3, window_bounds = array<i64: 2, 16, 16>}, {transform_indices = @transform_4, window_bounds = array<i64: 2, 16, 8>}, {transform_indices = @transform_5, window_bounds = array<i64: 2, 16, 8>}, {pipeline_mode = #tpu.pipeline_mode<synchronous>, transform_indices = @transform_6, window_bounds = array<i64: 64, 64>}, {pipeline_mode = #tpu.pipeline_mode<synchronous>, transform_indices = @transform_7, window_bounds = array<i64: 64, 32>}, {pipeline_mode = #tpu.pipeline_mode<synchronous>, transform_indices = @transform_8, window_bounds = array<i64: 16, 48>}, {pipeline_mode = #tpu.pipeline_mode<synchronous>, transform_indices = @transform_9, window_bounds = array<i64: 16, 48>}, {transform_indices = @transform_10, window_bounds = array<i64: 2, 16, 8>}, {transform_indices = @transform_11, window_bounds = array<i64: 2, 16, 8>}, {transform_indices = @transform_12, window_bounds = array<i64: 2, 16, 8>}, {transform_indices = @transform_13, window_bounds = array<i64: 2, 16, 8>}, {transform_indices = @transform_14, window_bounds = array<i64: 2, 16, 8>}, {transform_indices = @transform_15, window_bounds = array<i64: 2, 16, 8>}]} {
    %c0 = arith.constant 0 : index
    %c0_0 = arith.constant 0 : index
    %0 = vector.load %arg9[%c0, %c0_0] : memref<16x48xf32, #tpu.memory_space<vmem>>, vector<16x48xf32>
    %c0_1 = arith.constant 0 : index
    %c0_2 = arith.constant 0 : index
    %1 = vector.load %arg10[%c0_1, %c0_2] : memref<16x48xf32, #tpu.memory_space<vmem>>, vector<16x48xf32>
    %2 = vector.extract_strided_slice %0 {offsets = [0, 0], sizes = [16, 16], strides = [1, 1]} : vector<16x48xf32> to vector<16x16xf32>
    %3 = vector.extract_strided_slice %0 {offsets = [0, 16], sizes = [16, 16], strides = [1, 1]} : vector<16x48xf32> to vector<16x16xf32>
    %4 = vector.extract_strided_slice %0 {offsets = [0, 32], sizes = [16, 16], strides = [1, 1]} : vector<16x48xf32> to vector<16x16xf32>
    %5 = vector.extract_strided_slice %1 {offsets = [0, 0], sizes = [16, 16], strides = [1, 1]} : vector<16x48xf32> to vector<16x16xf32>
    %6 = vector.extract_strided_slice %1 {offsets = [0, 16], sizes = [16, 16], strides = [1, 1]} : vector<16x48xf32> to vector<16x16xf32>
    %7 = vector.extract_strided_slice %1 {offsets = [0, 32], sizes = [16, 16], strides = [1, 1]} : vector<16x48xf32> to vector<16x16xf32>
    %c0_3 = arith.constant 0 : index
    %c0_4 = arith.constant 0 : index
    %8 = vector.load %arg1[%c0_3, %c0_4] : memref<32x64xf32, #tpu.memory_space<vmem>>, vector<32x64xf32>
    %c0_5 = arith.constant 0 : index
    %c0_6 = arith.constant 0 : index
    %9 = vector.load %arg7[%c0_5, %c0_6] : memref<64x64xf32, #tpu.memory_space<vmem>>, vector<64x64xf32>
    %cst = arith.constant dense<0.000000e+00> : vector<32x64xf32>
    %10 = tpu.matmul %8, %9, %cst {dimension_numbers = #tpu.dot_dimension_numbers<[1], [0], [0], [1], [0, 0, 1, 1], [], []>} : vector<32x64xf32>, vector<64x64xf32>, vector<32x64xf32> -> vector<32x64xf32>
    %11 = vector.shape_cast %10 : vector<32x64xf32> to vector<2x16x64xf32>
    %12 = vector.extract_strided_slice %11 {offsets = [0, 0, 0], sizes = [2, 16, 16], strides = [1, 1, 1]} : vector<2x16x64xf32> to vector<2x16x16xf32>
    %13 = vector.shape_cast %2 : vector<16x16xf32> to vector<1x16x16xf32>
    %14 = vector.broadcast %13 : vector<1x16x16xf32> to vector<2x16x16xf32>
    %15 = arith.addf %12, %14 : vector<2x16x16xf32>
    %16 = vector.extract_strided_slice %11 {offsets = [0, 0, 16], sizes = [2, 16, 16], strides = [1, 1, 1]} : vector<2x16x64xf32> to vector<2x16x16xf32>
    %17 = vector.shape_cast %4 : vector<16x16xf32> to vector<1x16x16xf32>
    %18 = vector.broadcast %17 : vector<1x16x16xf32> to vector<2x16x16xf32>
    %19 = arith.addf %16, %18 : vector<2x16x16xf32>
    %20 = vector.extract_strided_slice %11 {offsets = [0, 0, 32], sizes = [2, 16, 16], strides = [1, 1, 1]} : vector<2x16x64xf32> to vector<2x16x16xf32>
    %21 = vector.shape_cast %5 : vector<16x16xf32> to vector<1x16x16xf32>
    %22 = vector.broadcast %21 : vector<1x16x16xf32> to vector<2x16x16xf32>
    %23 = arith.addf %20, %22 : vector<2x16x16xf32>
    %24 = vector.extract_strided_slice %11 {offsets = [0, 0, 48], sizes = [2, 16, 16], strides = [1, 1, 1]} : vector<2x16x64xf32> to vector<2x16x16xf32>
    %25 = vector.shape_cast %7 : vector<16x16xf32> to vector<1x16x16xf32>
    %26 = vector.broadcast %25 : vector<1x16x16xf32> to vector<2x16x16xf32>
    %27 = arith.addf %24, %26 : vector<2x16x16xf32>
    %c0_7 = arith.constant 0 : index
    %c0_8 = arith.constant 0 : index
    %28 = vector.load %arg2[%c0_7, %c0_8] : memref<32x64xf32, #tpu.memory_space<vmem>>, vector<32x64xf32>
    %c0_9 = arith.constant 0 : index
    %c0_10 = arith.constant 0 : index
    %29 = vector.load %arg8[%c0_9, %c0_10] : memref<64x32xf32, #tpu.memory_space<vmem>>, vector<64x32xf32>
    %cst_11 = arith.constant dense<0.000000e+00> : vector<32x32xf32>
    %30 = tpu.matmul %28, %29, %cst_11 {dimension_numbers = #tpu.dot_dimension_numbers<[1], [0], [0], [1], [0, 0, 1, 1], [], []>} : vector<32x64xf32>, vector<64x32xf32>, vector<32x32xf32> -> vector<32x32xf32>
    %31 = vector.shape_cast %30 : vector<32x32xf32> to vector<2x16x32xf32>
    %32 = vector.extract_strided_slice %31 {offsets = [0, 0, 0], sizes = [2, 16, 16], strides = [1, 1, 1]} : vector<2x16x32xf32> to vector<2x16x16xf32>
    %33 = vector.shape_cast %3 : vector<16x16xf32> to vector<1x16x16xf32>
    %34 = vector.broadcast %33 : vector<1x16x16xf32> to vector<2x16x16xf32>
    %35 = arith.addf %32, %34 : vector<2x16x16xf32>
    %36 = vector.extract_strided_slice %31 {offsets = [0, 0, 16], sizes = [2, 16, 16], strides = [1, 1, 1]} : vector<2x16x32xf32> to vector<2x16x16xf32>
    %37 = vector.shape_cast %6 : vector<16x16xf32> to vector<1x16x16xf32>
    %38 = vector.broadcast %37 : vector<1x16x16xf32> to vector<2x16x16xf32>
    %39 = arith.addf %36, %38 : vector<2x16x16xf32>
    %c0_12 = arith.constant 0 : index
    %c0_13 = arith.constant 0 : index
    %c0_14 = arith.constant 0 : index
    %40 = vector.load %arg3[%c0_12, %c0_13, %c0_14] : memref<2x16x16xf32, #tpu.memory_space<vmem>>, vector<2x16x16xf32>
    %c0_15 = arith.constant 0 : index
    %c0_16 = arith.constant 0 : index
    %c0_17 = arith.constant 0 : index
    %41 = vector.load %arg4[%c0_15, %c0_16, %c0_17] : memref<2x16x16xf32, #tpu.memory_space<vmem>>, vector<2x16x16xf32>
    %c0_18 = arith.constant 0 : index
    %c0_19 = arith.constant 0 : index
    %c0_20 = arith.constant 0 : index
    %42 = vector.load %arg5[%c0_18, %c0_19, %c0_20] : memref<2x16x8xf32, #tpu.memory_space<vmem>>, vector<2x16x8xf32>
    %c0_21 = arith.constant 0 : index
    %c0_22 = arith.constant 0 : index
    %c0_23 = arith.constant 0 : index
    %43 = vector.load %arg6[%c0_21, %c0_22, %c0_23] : memref<2x16x8xf32, #tpu.memory_space<vmem>>, vector<2x16x8xf32>
    "tpu.trace_start"() <{level = 10 : i32, message = "bmk,bkn->bmn"}> : () -> ()
    %cst_24 = arith.constant dense<0.000000e+00> : vector<2x16x8xf32>
    %44 = tpu.matmul %40, %42, %cst_24 {dimension_numbers = #tpu.dot_dimension_numbers<[2], [1], [1], [2], [0, 0, 0, 1, 1, 2], [0], [0]>} : vector<2x16x16xf32>, vector<2x16x8xf32>, vector<2x16x8xf32> -> vector<2x16x8xf32>
    %cst_25 = arith.constant dense<0.000000e+00> : vector<2x16x8xf32>
    %45 = tpu.matmul %41, %43, %cst_25 {dimension_numbers = #tpu.dot_dimension_numbers<[2], [1], [1], [2], [0, 0, 0, 1, 1, 2], [0], [0]>} : vector<2x16x16xf32>, vector<2x16x8xf32>, vector<2x16x8xf32> -> vector<2x16x8xf32>
    "tpu.trace_stop"() : () -> ()
    %46 = arith.subf %44, %45 : vector<2x16x8xf32>
    "tpu.trace_start"() <{level = 10 : i32, message = "bmk,bkn->bmn"}> : () -> ()
    %cst_26 = arith.constant dense<0.000000e+00> : vector<2x16x8xf32>
    %47 = tpu.matmul %40, %43, %cst_26 {dimension_numbers = #tpu.dot_dimension_numbers<[2], [1], [1], [2], [0, 0, 0, 1, 1, 2], [0], [0]>} : vector<2x16x16xf32>, vector<2x16x8xf32>, vector<2x16x8xf32> -> vector<2x16x8xf32>
    %cst_27 = arith.constant dense<0.000000e+00> : vector<2x16x8xf32>
    %48 = tpu.matmul %41, %42, %cst_27 {dimension_numbers = #tpu.dot_dimension_numbers<[2], [1], [1], [2], [0, 0, 0, 1, 1, 2], [0], [0]>} : vector<2x16x16xf32>, vector<2x16x8xf32>, vector<2x16x8xf32> -> vector<2x16x8xf32>
    "tpu.trace_stop"() : () -> ()
    %49 = arith.addf %47, %48 : vector<2x16x8xf32>
    "tpu.trace_start"() <{level = 10 : i32, message = "bmk,bkn->bmn"}> : () -> ()
    %cst_28 = arith.constant dense<0.000000e+00> : vector<2x16x8xf32>
    %50 = tpu.matmul %15, %46, %cst_28 {dimension_numbers = #tpu.dot_dimension_numbers<[2], [1], [1], [2], [0, 0, 0, 1, 1, 2], [0], [0]>} : vector<2x16x16xf32>, vector<2x16x8xf32>, vector<2x16x8xf32> -> vector<2x16x8xf32>
    %cst_29 = arith.constant dense<0.000000e+00> : vector<2x16x8xf32>
    %51 = tpu.matmul %23, %49, %cst_29 {dimension_numbers = #tpu.dot_dimension_numbers<[2], [1], [1], [2], [0, 0, 0, 1, 1, 2], [0], [0]>} : vector<2x16x16xf32>, vector<2x16x8xf32>, vector<2x16x8xf32> -> vector<2x16x8xf32>
    "tpu.trace_stop"() : () -> ()
    %52 = arith.subf %50, %51 : vector<2x16x8xf32>
    "tpu.trace_start"() <{level = 10 : i32, message = "bmk,bkn->bmn"}> : () -> ()
    %cst_30 = arith.constant dense<0.000000e+00> : vector<2x16x8xf32>
    %53 = tpu.matmul %15, %49, %cst_30 {dimension_numbers = #tpu.dot_dimension_numbers<[2], [1], [1], [2], [0, 0, 0, 1, 1, 2], [0], [0]>} : vector<2x16x16xf32>, vector<2x16x8xf32>, vector<2x16x8xf32> -> vector<2x16x8xf32>
    %cst_31 = arith.constant dense<0.000000e+00> : vector<2x16x8xf32>
    %54 = tpu.matmul %23, %46, %cst_31 {dimension_numbers = #tpu.dot_dimension_numbers<[2], [1], [1], [2], [0, 0, 0, 1, 1, 2], [0], [0]>} : vector<2x16x16xf32>, vector<2x16x8xf32>, vector<2x16x8xf32> -> vector<2x16x8xf32>
    "tpu.trace_stop"() : () -> ()
    %55 = arith.addf %53, %54 : vector<2x16x8xf32>
    %c0_32 = arith.constant 0 : index
    %c0_33 = arith.constant 0 : index
    %c0_34 = arith.constant 0 : index
    %56 = vector.load %arg13[%c0_32, %c0_33, %c0_34] : memref<2x16x8xf32, #tpu.memory_space<vmem>>, vector<2x16x8xf32>
    tpu.vector_store %arg13[%c0_32, %c0_33, %c0_34], %52 {strides = array<i32>} : memref<2x16x8xf32, #tpu.memory_space<vmem>>, vector<2x16x8xf32>,
    %c0_35 = arith.constant 0 : index
    %c0_36 = arith.constant 0 : index
    %c0_37 = arith.constant 0 : index
    %57 = vector.load %arg14[%c0_35, %c0_36, %c0_37] : memref<2x16x8xf32, #tpu.memory_space<vmem>>, vector<2x16x8xf32>
    tpu.vector_store %arg14[%c0_35, %c0_36, %c0_37], %55 {strides = array<i32>} : memref<2x16x8xf32, #tpu.memory_space<vmem>>, vector<2x16x8xf32>,
    "tpu.trace_start"() <{level = 10 : i32, message = "bmk,bkn->bmn"}> : () -> ()
    %cst_38 = arith.constant dense<0.000000e+00> : vector<2x16x8xf32>
    %58 = tpu.matmul %40, %52, %cst_38 {dimension_numbers = #tpu.dot_dimension_numbers<[2], [1], [1], [2], [0, 0, 0, 1, 1, 2], [0], [0]>} : vector<2x16x16xf32>, vector<2x16x8xf32>, vector<2x16x8xf32> -> vector<2x16x8xf32>
    %cst_39 = arith.constant dense<0.000000e+00> : vector<2x16x8xf32>
    %59 = tpu.matmul %41, %55, %cst_39 {dimension_numbers = #tpu.dot_dimension_numbers<[2], [1], [1], [2], [0, 0, 0, 1, 1, 2], [0], [0]>} : vector<2x16x16xf32>, vector<2x16x8xf32>, vector<2x16x8xf32> -> vector<2x16x8xf32>
    "tpu.trace_stop"() : () -> ()
    %60 = arith.subf %58, %59 : vector<2x16x8xf32>
    "tpu.trace_start"() <{level = 10 : i32, message = "bmk,bkn->bmn"}> : () -> ()
    %cst_40 = arith.constant dense<0.000000e+00> : vector<2x16x8xf32>
    %61 = tpu.matmul %40, %55, %cst_40 {dimension_numbers = #tpu.dot_dimension_numbers<[2], [1], [1], [2], [0, 0, 0, 1, 1, 2], [0], [0]>} : vector<2x16x16xf32>, vector<2x16x8xf32>, vector<2x16x8xf32> -> vector<2x16x8xf32>
    %cst_41 = arith.constant dense<0.000000e+00> : vector<2x16x8xf32>
    %62 = tpu.matmul %41, %52, %cst_41 {dimension_numbers = #tpu.dot_dimension_numbers<[2], [1], [1], [2], [0, 0, 0, 1, 1, 2], [0], [0]>} : vector<2x16x16xf32>, vector<2x16x8xf32>, vector<2x16x8xf32> -> vector<2x16x8xf32>
    "tpu.trace_stop"() : () -> ()
    %63 = arith.addf %61, %62 : vector<2x16x8xf32>
    "tpu.trace_start"() <{level = 10 : i32, message = "bmk,bkn->bmn"}> : () -> ()
    %cst_42 = arith.constant dense<0.000000e+00> : vector<2x16x8xf32>
    %64 = tpu.matmul %35, %60, %cst_42 {dimension_numbers = #tpu.dot_dimension_numbers<[2], [1], [1], [2], [0, 0, 0, 1, 1, 2], [0], [0]>} : vector<2x16x16xf32>, vector<2x16x8xf32>, vector<2x16x8xf32> -> vector<2x16x8xf32>
    %cst_43 = arith.constant dense<0.000000e+00> : vector<2x16x8xf32>
    %65 = tpu.matmul %39, %63, %cst_43 {dimension_numbers = #tpu.dot_dimension_numbers<[2], [1], [1], [2], [0, 0, 0, 1, 1, 2], [0], [0]>} : vector<2x16x16xf32>, vector<2x16x8xf32>, vector<2x16x8xf32> -> vector<2x16x8xf32>
    "tpu.trace_stop"() : () -> ()
    %66 = arith.subf %64, %65 : vector<2x16x8xf32>
    "tpu.trace_start"() <{level = 10 : i32, message = "bmk,bkn->bmn"}> : () -> ()
    %cst_44 = arith.constant dense<0.000000e+00> : vector<2x16x8xf32>
    %67 = tpu.matmul %35, %63, %cst_44 {dimension_numbers = #tpu.dot_dimension_numbers<[2], [1], [1], [2], [0, 0, 0, 1, 1, 2], [0], [0]>} : vector<2x16x16xf32>, vector<2x16x8xf32>, vector<2x16x8xf32> -> vector<2x16x8xf32>
    %cst_45 = arith.constant dense<0.000000e+00> : vector<2x16x8xf32>
    %68 = tpu.matmul %39, %60, %cst_45 {dimension_numbers = #tpu.dot_dimension_numbers<[2], [1], [1], [2], [0, 0, 0, 1, 1, 2], [0], [0]>} : vector<2x16x16xf32>, vector<2x16x8xf32>, vector<2x16x8xf32> -> vector<2x16x8xf32>
    "tpu.trace_stop"() : () -> ()
    %69 = arith.addf %67, %68 : vector<2x16x8xf32>
    %c0_46 = arith.constant 0 : index
    %c0_47 = arith.constant 0 : index
    %c0_48 = arith.constant 0 : index
    %70 = vector.load %arg15[%c0_46, %c0_47, %c0_48] : memref<2x16x8xf32, #tpu.memory_space<vmem>>, vector<2x16x8xf32>
    tpu.vector_store %arg15[%c0_46, %c0_47, %c0_48], %66 {strides = array<i32>} : memref<2x16x8xf32, #tpu.memory_space<vmem>>, vector<2x16x8xf32>,
    %c0_49 = arith.constant 0 : index
    %c0_50 = arith.constant 0 : index
    %c0_51 = arith.constant 0 : index
    %71 = vector.load %arg16[%c0_49, %c0_50, %c0_51] : memref<2x16x8xf32, #tpu.memory_space<vmem>>, vector<2x16x8xf32>
    tpu.vector_store %arg16[%c0_49, %c0_50, %c0_51], %69 {strides = array<i32>} : memref<2x16x8xf32, #tpu.memory_space<vmem>>, vector<2x16x8xf32>,
    "tpu.trace_start"() <{level = 10 : i32, message = "bmk,bkn->bmn"}> : () -> ()
    %cst_52 = arith.constant dense<0.000000e+00> : vector<2x16x8xf32>
    %72 = tpu.matmul %40, %66, %cst_52 {dimension_numbers = #tpu.dot_dimension_numbers<[2], [1], [1], [2], [0, 0, 0, 1, 1, 2], [0], [0]>} : vector<2x16x16xf32>, vector<2x16x8xf32>, vector<2x16x8xf32> -> vector<2x16x8xf32>
    %cst_53 = arith.constant dense<0.000000e+00> : vector<2x16x8xf32>
    %73 = tpu.matmul %41, %69, %cst_53 {dimension_numbers = #tpu.dot_dimension_numbers<[2], [1], [1], [2], [0, 0, 0, 1, 1, 2], [0], [0]>} : vector<2x16x16xf32>, vector<2x16x8xf32>, vector<2x16x8xf32> -> vector<2x16x8xf32>
    "tpu.trace_stop"() : () -> ()
    %74 = arith.subf %72, %73 : vector<2x16x8xf32>
    "tpu.trace_start"() <{level = 10 : i32, message = "bmk,bkn->bmn"}> : () -> ()
    %cst_54 = arith.constant dense<0.000000e+00> : vector<2x16x8xf32>
    %75 = tpu.matmul %40, %69, %cst_54 {dimension_numbers = #tpu.dot_dimension_numbers<[2], [1], [1], [2], [0, 0, 0, 1, 1, 2], [0], [0]>} : vector<2x16x16xf32>, vector<2x16x8xf32>, vector<2x16x8xf32> -> vector<2x16x8xf32>
    %cst_55 = arith.constant dense<0.000000e+00> : vector<2x16x8xf32>
    %76 = tpu.matmul %41, %66, %cst_55 {dimension_numbers = #tpu.dot_dimension_numbers<[2], [1], [1], [2], [0, 0, 0, 1, 1, 2], [0], [0]>} : vector<2x16x16xf32>, vector<2x16x8xf32>, vector<2x16x8xf32> -> vector<2x16x8xf32>
    "tpu.trace_stop"() : () -> ()
    %77 = arith.addf %75, %76 : vector<2x16x8xf32>
    "tpu.trace_start"() <{level = 10 : i32, message = "bmk,bkn->bmn"}> : () -> ()
    %cst_56 = arith.constant dense<0.000000e+00> : vector<2x16x8xf32>
    %78 = tpu.matmul %19, %74, %cst_56 {dimension_numbers = #tpu.dot_dimension_numbers<[2], [1], [1], [2], [0, 0, 0, 1, 1, 2], [0], [0]>} : vector<2x16x16xf32>, vector<2x16x8xf32>, vector<2x16x8xf32> -> vector<2x16x8xf32>
    %cst_57 = arith.constant dense<0.000000e+00> : vector<2x16x8xf32>
    %79 = tpu.matmul %27, %77, %cst_57 {dimension_numbers = #tpu.dot_dimension_numbers<[2], [1], [1], [2], [0, 0, 0, 1, 1, 2], [0], [0]>} : vector<2x16x16xf32>, vector<2x16x8xf32>, vector<2x16x8xf32> -> vector<2x16x8xf32>
    "tpu.trace_stop"() : () -> ()
    %80 = arith.subf %78, %79 : vector<2x16x8xf32>
    "tpu.trace_start"() <{level = 10 : i32, message = "bmk,bkn->bmn"}> : () -> ()
    %cst_58 = arith.constant dense<0.000000e+00> : vector<2x16x8xf32>
    %81 = tpu.matmul %19, %77, %cst_58 {dimension_numbers = #tpu.dot_dimension_numbers<[2], [1], [1], [2], [0, 0, 0, 1, 1, 2], [0], [0]>} : vector<2x16x16xf32>, vector<2x16x8xf32>, vector<2x16x8xf32> -> vector<2x16x8xf32>
    %cst_59 = arith.constant dense<0.000000e+00> : vector<2x16x8xf32>
    %82 = tpu.matmul %27, %74, %cst_59 {dimension_numbers = #tpu.dot_dimension_numbers<[2], [1], [1], [2], [0, 0, 0, 1, 1, 2], [0], [0]>} : vector<2x16x16xf32>, vector<2x16x8xf32>, vector<2x16x8xf32> -> vector<2x16x8xf32>
    "tpu.trace_stop"() : () -> ()
    %83 = arith.addf %81, %82 : vector<2x16x8xf32>
    %c0_60 = arith.constant 0 : index
    %c0_61 = arith.constant 0 : index
    %c0_62 = arith.constant 0 : index
    %84 = vector.load %arg11[%c0_60, %c0_61, %c0_62] : memref<2x16x8xf32, #tpu.memory_space<vmem>>, vector<2x16x8xf32>
    tpu.vector_store %arg11[%c0_60, %c0_61, %c0_62], %80 {strides = array<i32>} : memref<2x16x8xf32, #tpu.memory_space<vmem>>, vector<2x16x8xf32>,
    %c0_63 = arith.constant 0 : index
    %c0_64 = arith.constant 0 : index
    %c0_65 = arith.constant 0 : index
    %85 = vector.load %arg12[%c0_63, %c0_64, %c0_65] : memref<2x16x8xf32, #tpu.memory_space<vmem>>, vector<2x16x8xf32>
    tpu.vector_store %arg12[%c0_63, %c0_64, %c0_65], %83 {strides = array<i32>} : memref<2x16x8xf32, #tpu.memory_space<vmem>>, vector<2x16x8xf32>,
    return
  }
  func.func @transform_0(%arg0: i32) -> (i32, i32) {
    %c0_i32 = arith.constant 0 : i32
    %c0_i32_0 = arith.constant 0 : i32
    return %arg0, %c0_i32 : i32, i32
  }
  func.func @transform_1(%arg0: i32) -> (i32, i32) {
    %c0_i32 = arith.constant 0 : i32
    %c0_i32_0 = arith.constant 0 : i32
    return %arg0, %c0_i32 : i32, i32
  }
  func.func @transform_2(%arg0: i32) -> (i32, i32, i32) {
    %c0_i32 = arith.constant 0 : i32
    %c0_i32_0 = arith.constant 0 : i32
    %c0_i32_1 = arith.constant 0 : i32
    return %arg0, %c0_i32, %c0_i32_0 : i32, i32, i32
  }
  func.func @transform_3(%arg0: i32) -> (i32, i32, i32) {
    %c0_i32 = arith.constant 0 : i32
    %c0_i32_0 = arith.constant 0 : i32
    %c0_i32_1 = arith.constant 0 : i32
    return %arg0, %c0_i32, %c0_i32_0 : i32, i32, i32
  }
  func.func @transform_4(%arg0: i32) -> (i32, i32, i32) {
    %c0_i32 = arith.constant 0 : i32
    %c0_i32_0 = arith.constant 0 : i32
    %c0_i32_1 = arith.constant 0 : i32
    return %arg0, %c0_i32, %c0_i32_0 : i32, i32, i32
  }
  func.func @transform_5(%arg0: i32) -> (i32, i32, i32) {
    %c0_i32 = arith.constant 0 : i32
    %c0_i32_0 = arith.constant 0 : i32
    %c0_i32_1 = arith.constant 0 : i32
    return %arg0, %c0_i32, %c0_i32_0 : i32, i32, i32
  }
  func.func @transform_6(%arg0: i32) -> (i32, i32) {
    %c0_i32 = arith.constant 0 : i32
    %c0_i32_0 = arith.constant 0 : i32
    %c0_i32_1 = arith.constant 0 : i32
    return %c0_i32, %c0_i32_0 : i32, i32
  }
  func.func @transform_7(%arg0: i32) -> (i32, i32) {
    %c0_i32 = arith.constant 0 : i32
    %c0_i32_0 = arith.constant 0 : i32
    %c0_i32_1 = arith.constant 0 : i32
    return %c0_i32, %c0_i32_0 : i32, i32
  }
  func.func @transform_8(%arg0: i32) -> (i32, i32) {
    %c0_i32 = arith.constant 0 : i32
    %c0_i32_0 = arith.constant 0 : i32
    %c0_i32_1 = arith.constant 0 : i32
    return %c0_i32, %c0_i32_0 : i32, i32
  }
  func.func @transform_9(%arg0: i32) -> (i32, i32) {
    %c0_i32 = arith.constant 0 : i32
    %c0_i32_0 = arith.constant 0 : i32
    %c0_i32_1 = arith.constant 0 : i32
    return %c0_i32, %c0_i32_0 : i32, i32
  }
  func.func @transform_10(%arg0: i32) -> (i32, i32, i32) {
    %c0_i32 = arith.constant 0 : i32
    %c0_i32_0 = arith.constant 0 : i32
    %c0_i32_1 = arith.constant 0 : i32
    return %arg0, %c0_i32, %c0_i32_0 : i32, i32, i32
  }
  func.func @transform_11(%arg0: i32) -> (i32, i32, i32) {
    %c0_i32 = arith.constant 0 : i32
    %c0_i32_0 = arith.constant 0 : i32
    %c0_i32_1 = arith.constant 0 : i32
    return %arg0, %c0_i32, %c0_i32_0 : i32, i32, i32
  }
  func.func @transform_12(%arg0: i32) -> (i32, i32, i32) {
    %c0_i32 = arith.constant 0 : i32
    %c0_i32_0 = arith.constant 0 : i32
    %c0_i32_1 = arith.constant 0 : i32
    return %arg0, %c0_i32, %c0_i32_0 : i32, i32, i32
  }
  func.func @transform_13(%arg0: i32) -> (i32, i32, i32) {
    %c0_i32 = arith.constant 0 : i32
    %c0_i32_0 = arith.constant 0 : i32
    %c0_i32_1 = arith.constant 0 : i32
    return %arg0, %c0_i32, %c0_i32_0 : i32, i32, i32
  }
  func.func @transform_14(%arg0: i32) -> (i32, i32, i32) {
    %c0_i32 = arith.constant 0 : i32
    %c0_i32_0 = arith.constant 0 : i32
    %c0_i32_1 = arith.constant 0 : i32
    return %arg0, %c0_i32, %c0_i32_0 : i32, i32, i32
  }
  func.func @transform_15(%arg0: i32) -> (i32, i32, i32) {
    %c0_i32 = arith.constant 0 : i32
    %c0_i32_0 = arith.constant 0 : i32
    %c0_i32_1 = arith.constant 0 : i32
    return %arg0, %c0_i32, %c0_i32_0 : i32, i32, i32
  }
}

</mosaic_0001>

<llo_original>
// kernel: custom-call.3
$region0: #{custom-call.3}
  %s0 = inlined_call_operand.hbm [shape: c64[2,16,16], index: 0, kind: input, shape index: {}]
  %s1 = inlined_call_operand.vmem [shape: f32[2,16,16], index: 1, kind: output, shape index: {}]
  %s2 = scalar_lea.hbm %s0, 512
  $region1: #{custom-call.3} parent=0
    #allocation0 [shape = 's32[1]{0}', space=sflag, size = 0x4, scoped, tag = 'scoped memory for custom-call.3']
    %3 = vsyncpa [#allocation0], 0
    %s4 = sshll.u32 %s1, 4
    %s5 = int_to_ptr.vmem [resolvable:$true] %s4
    %7 = dma.hbm_to_vmem [thread:$0]  %s2, 512, %s5, [#allocation0]
    %8 = dma.done [#allocation0], 512
    %9 = vsyncpa [#allocation0], 1

// kernel: custom-call.2
$region0: #{custom-call.2}
  %s0 = inlined_call_operand.hbm [shape: c64[2,16,16], index: 0, kind: input, shape index: {}]
  %s1 = inlined_call_operand.vmem [shape: f32[2,16,16], index: 1, kind: output, shape index: {}]
  $region1: #{custom-call.2} parent=0
    #allocation0 [shape = 's32[1]{0}', space=sflag, size = 0x4, scoped, tag = 'scoped memory for custom-call.2']
    %2 = vsyncpa [#allocation0], 0
    %s3 = sshll.u32 %s1, 4
    %s4 = int_to_ptr.vmem [resolvable:$true] %s3
    %6 = dma.hbm_to_vmem [thread:$0]  %s0, 512, %s4, [#allocation0]
    %7 = dma.done [#allocation0], 512
    %8 = vsyncpa [#allocation0], 1

// kernel: custom-call.6
$region0: #{custom-call.6}
  %s0 = inlined_call_operand.vmem [shape: c64[2,16,8], index: 0, kind: input, shape index: {}]
  %s1 = inlined_call_operand.vmem [shape: f32[2,16,8], index: 1, kind: output, shape index: {}]
  %v2 = vld [vmem:[%s0] sm:$0xff]
  %3 = vst [vmem:[%s1] sm:$0xff] %v2
  %s4 = scalar_lea.vmem %s1, 8
  %s5 = scalar_lea.vmem %s0, 8
  %v6 = vld [vmem:[%s5] sm:$0xff]
  %7 = vst [vmem:[%s4] sm:$0xff] %v6
  %s8 = scalar_lea.vmem %s1, 16
  %s9 = scalar_lea.vmem %s0, 16
  %v10 = vld [vmem:[%s9] sm:$0xff]
  %11 = vst [vmem:[%s8] sm:$0xff] %v10
  %s12 = scalar_lea.vmem %s1, 24
  %s13 = scalar_lea.vmem %s0, 24
  %v14 = vld [vmem:[%s13] sm:$0xff]
  %15 = vst [vmem:[%s12] sm:$0xff] %v14

// kernel: custom-call.7
$region0: #{custom-call.7}
  %s0 = inlined_call_operand.vmem [shape: c64[2,16,8], index: 0, kind: input, shape index: {}]
  %s1 = inlined_call_operand.vmem [shape: f32[2,16,8], index: 1, kind: output, shape index: {}]
  %s2 = scalar_lea.vmem %s0, 32
  %v3 = vld [vmem:[%s2] sm:$0xff]
  %4 = vst [vmem:[%s1] sm:$0xff] %v3
  %s5 = scalar_lea.vmem %s1, 8
  %s6 = scalar_lea.vmem %s2, 8
  %v7 = vld [vmem:[%s6] sm:$0xff]
  %8 = vst [vmem:[%s5] sm:$0xff] %v7
  %s9 = scalar_lea.vmem %s1, 16
  %s10 = scalar_lea.vmem %s2, 16
  %v11 = vld [vmem:[%s10] sm:$0xff]
  %12 = vst [vmem:[%s9] sm:$0xff] %v11
  %s13 = scalar_lea.vmem %s1, 24
  %s14 = scalar_lea.vmem %s2, 24
  %v15 = vld [vmem:[%s14] sm:$0xff]
  %16 = vst [vmem:[%s13] sm:$0xff] %v15

// kernel: custom-call.10
$region0: #{custom-call.10}
  %s0 = inlined_call_operand.vmem [shape: f32[2,16,8], index: 0, kind: input, shape index: {}]
  %s1 = inlined_call_operand.vmem [shape: f32[2,16,8], index: 1, kind: input, shape index: {}]
  %s2 = inlined_call_operand.vmem [shape: c64[2,16,8], index: 2, kind: output, shape index: {}]
  %s4 = scalar_lea.vmem %s2, 32
  %v5 = vld [vmem:[%s0] sm:$0xff]
  %6 = vst [vmem:[%s2] sm:$0xff] %v5
  %s7 = scalar_lea.vmem %s2, 8
  %s8 = scalar_lea.vmem %s0, 8
  %v9 = vld [vmem:[%s8] sm:$0xff]
  %10 = vst [vmem:[%s7] sm:$0xff] %v9
  %s11 = scalar_lea.vmem %s2, 16
  %s12 = scalar_lea.vmem %s0, 16
  %v13 = vld [vmem:[%s12] sm:$0xff]
  %14 = vst [vmem:[%s11] sm:$0xff] %v13
  %s15 = scalar_lea.vmem %s2, 24
  %s16 = scalar_lea.vmem %s0, 24
  %v17 = vld [vmem:[%s16] sm:$0xff]
  %18 = vst [vmem:[%s15] sm:$0xff] %v17
  %v19 = vld [vmem:[%s1] sm:$0xff]
  %20 = vst [vmem:[%s4] sm:$0xff] %v19
  %s21 = scalar_lea.vmem %s4, 8
  %s22 = scalar_lea.vmem %s1, 8
  %v23 = vld [vmem:[%s22] sm:$0xff]
  %24 = vst [vmem:[%s21] sm:$0xff] %v23
  %s25 = scalar_lea.vmem %s4, 16
  %s26 = scalar_lea.vmem %s1, 16
  %v27 = vld [vmem:[%s26] sm:$0xff]
  %28 = vst [vmem:[%s25] sm:$0xff] %v27
  %s29 = scalar_lea.vmem %s4, 24
  %s30 = scalar_lea.vmem %s1, 24
  %v31 = vld [vmem:[%s30] sm:$0xff]
  %32 = vst [vmem:[%s29] sm:$0xff] %v31

// kernel: iteration_block.1
$region0: #{iteration_block.1}
  #allocation0 [shape = 'u32[]', space=smem, size = 0x4, offset = 0x4, fixed_abs, tag = 'smem constant byte address 0x4 - core index']
  #allocation1 [shape = 'u32[144,128]{1,0:T(1,128)}', space=vmem, size = 0x12000, scoped, tag = 'internal scratch']
  %s0 = inlined_call_operand.vmem [shape: f32[32,64], index: 0, kind: input, shape index: {}]
  %s1 = inlined_call_operand.vmem [shape: f32[32,64], index: 1, kind: input, shape index: {}]
  %s2 = inlined_call_operand.vmem [shape: f32[2,16,16], index: 2, kind: input, shape index: {}]
  %s3 = inlined_call_operand.vmem [shape: f32[2,16,16], index: 3, kind: input, shape index: {}]
  %s4 = inlined_call_operand.vmem [shape: f32[2,16,8], index: 4, kind: input, shape index: {}]
  %s5 = inlined_call_operand.vmem [shape: f32[2,16,8], index: 5, kind: input, shape index: {}]
  %s6 = inlined_call_operand.vmem [shape: f32[64,64], index: 6, kind: input, shape index: {}]
  %s7 = inlined_call_operand.vmem [shape: f32[64,32], index: 7, kind: input, shape index: {}]
  %s8 = inlined_call_operand.vmem [shape: f32[16,48], index: 8, kind: input, shape index: {}]
  %s9 = inlined_call_operand.vmem [shape: f32[16,48], index: 9, kind: input, shape index: {}]
  %s10 = inlined_call_operand.vmem [shape: f32[2,16,8], index: 10, kind: output, shape index: {0}]
  %s11 = inlined_call_operand.vmem [shape: f32[2,16,8], index: 11, kind: output, shape index: {1}]
  %s12 = inlined_call_operand.vmem [shape: f32[2,16,8], index: 12, kind: output, shape index: {2}]
  %s13 = inlined_call_operand.vmem [shape: f32[2,16,8], index: 13, kind: output, shape index: {3}]
  %s14 = inlined_call_operand.vmem [shape: f32[2,16,8], index: 14, kind: output, shape index: {4}]
  %s15 = inlined_call_operand.vmem [shape: f32[2,16,8], index: 15, kind: output, shape index: {5}]
  %16 = xla_tuple %s10, %s11, %s12, %s13, %s14, %s15
  %s17 = sld [smem:[#allocation0]]
  $region90: #{iteration_block.1} parent=0
    _
  %s19 = ssub.s32 1, %s17
  %s20 = scalar_select 0, %s19, %s17
  // Predicated region
  $region2: #{iteration_block.1} parent=0 // pred_check
    _
  $region3: #{iteration_block.1} parent=0 // pred_check_branch
    %22 = sbr.rel (0) target = $region5
  $region4: #{iteration_block.1} parent=0 // pred_region
    _
  $region5: #{iteration_block.1} parent=0 // pred_fallthru
    _
  // Predicated region
  $region6: #{iteration_block.1} parent=0 // pred_check
    _
  $region7: #{iteration_block.1} parent=0 // pred_check_branch
    %24 = sbr.rel (0) target = $region9
  $region8: #{iteration_block.1} parent=0 // pred_region
    _
  $region9: #{iteration_block.1} parent=0 // pred_fallthru
    _
  // Predicated region
  $region10: #{iteration_block.1} parent=0 // pred_check
    _
  $region11: #{iteration_block.1} parent=0 // pred_check_branch
    %26 = sbr.rel (0) target = $region13
  $region12: #{iteration_block.1} parent=0 // pred_region
    _
  $region13: #{iteration_block.1} parent=0 // pred_fallthru
    _
  // Predicated region
  $region14: #{iteration_block.1} parent=0 // pred_check
    _
  $region15: #{iteration_block.1} parent=0 // pred_check_branch
    %28 = sbr.rel (0) target = $region17
  $region16: #{iteration_block.1} parent=0 // pred_region
    _
  $region17: #{iteration_block.1} parent=0 // pred_fallthru
    _
  // Predicated region
  $region18: #{iteration_block.1} parent=0 // pred_check
    _
  $region19: #{iteration_block.1} parent=0 // pred_check_branch
    %30 = sbr.rel (0) target = $region21
  $region20: #{iteration_block.1} parent=0 // pred_region
    _
  $region21: #{iteration_block.1} parent=0 // pred_fallthru
    _
  // Predicated region
  $region22: #{iteration_block.1} parent=0 // pred_check
    _
  $region23: #{iteration_block.1} parent=0 // pred_check_branch
    %32 = sbr.rel (0) target = $region25
  $region24: #{iteration_block.1} parent=0 // pred_region
    _
  $region25: #{iteration_block.1} parent=0 // pred_fallthru
    _
  // Predicated region
  $region26: #{iteration_block.1} parent=0 // pred_check
    _
  $region27: #{iteration_block.1} parent=0 // pred_check_branch
    %34 = sbr.rel (0) target = $region29
  $region28: #{iteration_block.1} parent=0 // pred_region
    _
  $region29: #{iteration_block.1} parent=0 // pred_fallthru
    _
  // Predicated region
  $region30: #{iteration_block.1} parent=0 // pred_check
    _
  $region31: #{iteration_block.1} parent=0 // pred_check_branch
    %36 = sbr.rel (0) target = $region33
  $region32: #{iteration_block.1} parent=0 // pred_region
    _
  $region33: #{iteration_block.1} parent=0 // pred_fallthru
    _
  // Predicated region
  $region34: #{iteration_block.1} parent=0 // pred_check
    _
  $region35: #{iteration_block.1} parent=0 // pred_check_branch
    %38 = sbr.rel (0) target = $region37
  $region36: #{iteration_block.1} parent=0 // pred_region
    _
  $region37: #{iteration_block.1} parent=0 // pred_fallthru
    _
  // Predicated region
  $region38: #{iteration_block.1} parent=0 // pred_check
    _
  $region39: #{iteration_block.1} parent=0 // pred_check_branch
    %40 = sbr.rel (0) target = $region41
  $region40: #{iteration_block.1} parent=0 // pred_region
    _
  $region41: #{iteration_block.1} parent=0 // pred_fallthru
    _
  %v41 = vld [vmem:[%s8] sm:$0xff]
  %v42 = vld [vmem:[%s8 + $0x8] sm:$0xff]
  %v43 = vld [vmem:[%s9] sm:$0xff]
  %v44 = vld [vmem:[%s9 + $0x8] sm:$0xff]
  %v45 = vld [vmem:[%s0] sm:$0xff]
  %v46 = vld [vmem:[%s0 + $0x8] sm:$0xff]
  %v47 = vld [vmem:[%s0 + $0x10] sm:$0xff]
  %v48 = vld [vmem:[%s0 + $0x18] sm:$0xff]
  %v49 = vld [vmem:[%s6] sm:$0xff]
  %v50 = vld [vmem:[%s6 + $0x8] sm:$0xff]
  %v51 = vld [vmem:[%s6 + $0x10] sm:$0xff]
  %v52 = vld [vmem:[%s6 + $0x18] sm:$0xff]
  %v53 = vld [vmem:[%s6 + $0x20] sm:$0xff]
  %v54 = vld [vmem:[%s6 + $0x28] sm:$0xff]
  %v55 = vld [vmem:[%s6 + $0x30] sm:$0xff]
  %v56 = vld [vmem:[%s6 + $0x38] sm:$0xff]
  %vm57 = vcmask 523264
  %v59 = vsel %vm57, %v45, 0
  %v62 = vsel %vm57, %v46, 0
  %v65 = vsel %vm57, %v47, 0
  %v68 = vsel %vm57, %v48, 0
  %70 = vmatprep.subr.mxu0 0.0
  %71 = vmatpush1.msra.mxu0 0.0
  %72 = vmatprep.subr.mxu0 0.0
  %73 = vmatpush1.msra.mxu0 0.0
  %74 = vmatprep.subr.mxu0 0.0
  %75 = vmatpush1.msra.mxu0 0.0
  %76 = vmatprep.subr.mxu0 0.0
  %77 = vmatpush1.msra.mxu0 0.0
  %78 = vmatprep.subr.mxu0 0.0
  %79 = vmatpush1.msra.mxu0 0.0
  %80 = vmatprep.subr.mxu0 0.0
  %81 = vmatpush1.msra.mxu0 0.0
  %82 = vmatprep.subr.mxu0 0.0
  %83 = vmatpush1.msra.mxu0 0.0
  %84 = vmatprep.subr.mxu0 0.0
  %85 = vmatpush1.msra.mxu0 0.0
  %86 = vmatprep.subr.mxu0 0.0
  %87 = vmatpush1.msra.mxu0 %v56
  %88 = vmatprep.subr.mxu0 0.0
  %89 = vmatpush1.msra.mxu0 %v55
  %90 = vmatprep.subr.mxu0 0.0
  %91 = vmatpush1.msra.mxu0 %v54
  %92 = vmatprep.subr.mxu0 0.0
  %93 = vmatpush1.msra.mxu0 %v53
  %94 = vmatprep.subr.mxu0 0.0
  %95 = vmatpush1.msra.mxu0 %v52
  %96 = vmatprep.subr.mxu0 0.0
  %97 = vmatpush1.msra.mxu0 %v51
  %98 = vmatprep.subr.mxu0 0.0
  %99 = vmatpush1.msra.mxu0 %v50
  %100 = vmatprep.subr.mxu0 0.0
  %101 = vmatpush1.msra.mxu0 %v49
  %102 = vmatprep.subr.mxu0 0.0
  %103 = vmatpush2.msra.mxu0 0.0
  %104 = vmatprep.subr.mxu0 0.0
  %105 = vmatpush2.msra.mxu0 0.0
  %106 = vmatprep.subr.mxu0 0.0
  %107 = vmatpush2.msra.mxu0 0.0
  %108 = vmatprep.subr.mxu0 0.0
  %109 = vmatpush2.msra.mxu0 0.0
  %110 = vmatprep.subr.mxu0 0.0
  %111 = vmatpush2.msra.mxu0 0.0
  %112 = vmatprep.subr.mxu0 0.0
  %113 = vmatpush2.msra.mxu0 0.0
  %114 = vmatprep.subr.mxu0 0.0
  %115 = vmatpush2.msra.mxu0 0.0
  %116 = vmatprep.subr.mxu0 0.0
  %117 = vmatpush2.msra.mxu0 0.0
  %118 = vmatprep.subr.mxu0 0.0
  %119 = vmatpush2.msra.mxu0 0.0
  %120 = vmatprep.subr.mxu0 0.0
  %121 = vmatpush2.msra.mxu0 0.0
  %122 = vmatprep.subr.mxu0 0.0
  %123 = vmatpush2.msra.mxu0 0.0
  %124 = vmatprep.subr.mxu0 0.0
  %125 = vmatpush2.msra.mxu0 0.0
  %126 = vmatprep.subr.mxu0 0.0
  %127 = vmatpush2.msra.mxu0 0.0
  %128 = vmatprep.subr.mxu0 0.0
  %129 = vmatpush2.msra.mxu0 0.0
  %130 = vmatprep.subr.mxu0 0.0
  %131 = vmatpush2.msra.mxu0 0.0
  %132 = vmatprep.subr.mxu0 0.0
  %133 = vmatpush2.msra.mxu0 0.0
  %134 = vmatprep.mubr.f32.mxu0 0.0
  %135 = vmatmul.mubr.f32.gmra.mxu0 %v59
  %v136 = vpop.f32.mrf.mxu0
  %v137 = vadd.f32 0.0, %v136
  %v138 = vpop.f32.mrf.mxu0
  %139 = vmatprep.mubr.f32.mxu0 0.0
  %140 = vmatmul.mubr.f32.gmra.mxu0 %v62
  %v141 = vpop.f32.mrf.mxu0
  %v142 = vadd.f32 0.0, %v141
  %v143 = vpop.f32.mrf.mxu0
  %144 = vmatprep.mubr.f32.mxu0 0.0
  %145 = vmatmul.mubr.f32.gmra.mxu0 %v65
  %v146 = vpop.f32.mrf.mxu0
  %v147 = vadd.f32 0.0, %v146
  %v148 = vpop.f32.mrf.mxu0
  %149 = vmatprep.mubr.f32.mxu0 0.0
  %150 = vmatmul.mubr.f32.gmra.mxu0 %v68
  %v151 = vpop.f32.mrf.mxu0
  %v152 = vadd.f32 0.0, %v151
  %v153 = vpop.f32.mrf.mxu0
  %154 = vdwg.mxu0
  %v155 = vadd.f32 %v137, %v41
  %v156 = vadd.f32 %v142, %v42
  %v157 = vadd.f32 %v147, %v41
  %v158 = vadd.f32 %v152, %v42
  %161 = vrot.lane.b32.xlu0 %v41, 112
  %v162 = vpop.permute.xlu0 %161
  %163 = vrot.lane.b32.xlu0 %v42, 112
  %v164 = vpop.permute.xlu0 %163
  %v167 = vadd.f32 %v137, %v162
  %v168 = vadd.f32 %v142, %v164
  %v169 = vadd.f32 %v147, %v162
  %v170 = vadd.f32 %v152, %v164
  %173 = vrot.lane.b32.xlu0 %v43, 32
  %v174 = vpop.permute.xlu0 %173
  %175 = vrot.lane.b32.xlu0 %v44, 32
  %v176 = vpop.permute.xlu0 %175
  %v179 = vadd.f32 %v137, %v174
  %v180 = vadd.f32 %v142, %v176
  %v181 = vadd.f32 %v147, %v174
  %v182 = vadd.f32 %v152, %v176
  %183 = vrot.lane.b32.xlu0 %v43, 16
  %v184 = vpop.permute.xlu0 %183
  %185 = vrot.lane.b32.xlu0 %v44, 16
  %v186 = vpop.permute.xlu0 %185
  %v189 = vadd.f32 %v137, %v184
  %v190 = vadd.f32 %v142, %v186
  %v191 = vadd.f32 %v147, %v184
  %v192 = vadd.f32 %v152, %v186
  %v193 = vld [vmem:[%s1] sm:$0xff]
  %v194 = vld [vmem:[%s1 + $0x8] sm:$0xff]
  %v195 = vld [vmem:[%s1 + $0x10] sm:$0xff]
  %v196 = vld [vmem:[%s1 + $0x18] sm:$0xff]
  %v197 = vld [vmem:[%s7] sm:$0xff]
  %v198 = vld [vmem:[%s7 + $0x8] sm:$0xff]
  %v199 = vld [vmem:[%s7 + $0x10] sm:$0xff]
  %v200 = vld [vmem:[%s7 + $0x18] sm:$0xff]
  %v201 = vld [vmem:[%s7 + $0x20] sm:$0xff]
  %v202 = vld [vmem:[%s7 + $0x28] sm:$0xff]
  %v203 = vld [vmem:[%s7 + $0x30] sm:$0xff]
  %v204 = vld [vmem:[%s7 + $0x38] sm:$0xff]
  %v206 = vsel %vm57, %v193, 0
  %v209 = vsel %vm57, %v194, 0
  %v212 = vsel %vm57, %v195, 0
  %v215 = vsel %vm57, %v196, 0
  %217 = vmatprep.subr.mxu0 0.0
  %218 = vmatpush1.msra.mxu0 0.0
  %219 = vmatprep.subr.mxu0 0.0
  %220 = vmatpush1.msra.mxu0 0.0
  %221 = vmatprep.subr.mxu0 0.0
  %222 = vmatpush1.msra.mxu0 0.0
  %223 = vmatprep.subr.mxu0 0.0
  %224 = vmatpush1.msra.mxu0 0.0
  %225 = vmatprep.subr.mxu0 0.0
  %226 = vmatpush1.msra.mxu0 0.0
  %227 = vmatprep.subr.mxu0 0.0
  %228 = vmatpush1.msra.mxu0 0.0
  %229 = vmatprep.subr.mxu0 0.0
  %230 = vmatpush1.msra.mxu0 0.0
  %231 = vmatprep.subr.mxu0 0.0
  %232 = vmatpush1.msra.mxu0 0.0
  %233 = vmatprep.subr.mxu0 0.0
  %234 = vmatpush1.msra.mxu0 %v204
  %235 = vmatprep.subr.mxu0 0.0
  %236 = vmatpush1.msra.mxu0 %v203
  %237 = vmatprep.subr.mxu0 0.0
  %238 = vmatpush1.msra.mxu0 %v202
  %239 = vmatprep.subr.mxu0 0.0
  %240 = vmatpush1.msra.mxu0 %v201
  %241 = vmatprep.subr.mxu0 0.0
  %242 = vmatpush1.msra.mxu0 %v200
  %243 = vmatprep.subr.mxu0 0.0
  %244 = vmatpush1.msra.mxu0 %v199
  %245 = vmatprep.subr.mxu0 0.0
  %246 = vmatpush1.msra.mxu0 %v198
  %247 = vmatprep.subr.mxu0 0.0
  %248 = vmatpush1.msra.mxu0 %v197
  %249 = vmatprep.subr.mxu0 0.0
  %250 = vmatpush2.msra.mxu0 0.0
  %251 = vmatprep.subr.mxu0 0.0
  %252 = vmatpush2.msra.mxu0 0.0
  %253 = vmatprep.subr.mxu0 0.0
  %254 = vmatpush2.msra.mxu0 0.0
  %255 = vmatprep.subr.mxu0 0.0
  %256 = vmatpush2.msra.mxu0 0.0
  %257 = vmatprep.subr.mxu0 0.0
  %258 = vmatpush2.msra.mxu0 0.0
  %259 = vmatprep.subr.mxu0 0.0
  %260 = vmatpush2.msra.mxu0 0.0
  %261 = vmatprep.subr.mxu0 0.0
  %262 = vmatpush2.msra.mxu0 0.0
  %263 = vmatprep.subr.mxu0 0.0
  %264 = vmatpush2.msra.mxu0 0.0
  %265 = vmatprep.subr.mxu0 0.0
  %266 = vmatpush2.msra.mxu0 0.0
  %267 = vmatprep.subr.mxu0 0.0
  %268 = vmatpush2.msra.mxu0 0.0
  %269 = vmatprep.subr.mxu0 0.0
  %270 = vmatpush2.msra.mxu0 0.0
  %271 = vmatprep.subr.mxu0 0.0
  %272 = vmatpush2.msra.mxu0 0.0
  %273 = vmatprep.subr.mxu0 0.0
  %274 = vmatpush2.msra.mxu0 0.0
  %275 = vmatprep.subr.mxu0 0.0
  %276 = vmatpush2.msra.mxu0 0.0
  %277 = vmatprep.subr.mxu0 0.0
  %278 = vmatpush2.msra.mxu0 0.0
  %279 = vmatprep.subr.mxu0 0.0
  %280 = vmatpush2.msra.mxu0 0.0
  %281 = vmatprep.mubr.f32.mxu0 0.0
  %282 = vmatmul.mubr.f32.gmra.mxu0 %v206
  %v283 = vpop.f32.mrf.mxu0
  %v284 = vadd.f32 0.0, %v283
  %v285 = vpop.f32.mrf.mxu0
  %286 = vmatprep.mubr.f32.mxu0 0.0
  %287 = vmatmul.mubr.f32.gmra.mxu0 %v209
  %v288 = vpop.f32.mrf.mxu0
  %v289 = vadd.f32 0.0, %v288
  %v290 = vpop.f32.mrf.mxu0
  %291 = vmatprep.mubr.f32.mxu0 0.0
  %292 = vmatmul.mubr.f32.gmra.mxu0 %v212
  %v293 = vpop.f32.mrf.mxu0
  %v294 = vadd.f32 0.0, %v293
  %v295 = vpop.f32.mrf.mxu0
  %296 = vmatprep.mubr.f32.mxu0 0.0
  %297 = vmatmul.mubr.f32.gmra.mxu0 %v215
  %v298 = vpop.f32.mrf.mxu0
  %v299 = vadd.f32 0.0, %v298
  %v300 = vpop.f32.mrf.mxu0
  %301 = vdwg.mxu0
  %v302 = vadd.f32 %v284, %v162
  %v303 = vadd.f32 %v289, %v164
  %v304 = vadd.f32 %v294, %v162
  %v305 = vadd.f32 %v299, %v164
  %v306 = vadd.f32 %v284, %v43
  %v307 = vadd.f32 %v289, %v44
  %v308 = vadd.f32 %v294, %v43
  %v309 = vadd.f32 %v299, %v44
  %v310 = vld [vmem:[%s2] sm:$0xff]
  %v311 = vld [vmem:[%s2 + $0x8] sm:$0xff]
  %v312 = vld [vmem:[%s2 + $0x10] sm:$0xff]
  %v313 = vld [vmem:[%s2 + $0x18] sm:$0xff]
  %v314 = vld [vmem:[%s3] sm:$0xff]
  %v315 = vld [vmem:[%s3 + $0x8] sm:$0xff]
  %v316 = vld [vmem:[%s3 + $0x10] sm:$0xff]
  %v317 = vld [vmem:[%s3 + $0x18] sm:$0xff]
  %v318 = vld [vmem:[%s4] sm:$0xff]
  %v319 = vld [vmem:[%s4 + $0x8] sm:$0xff]
  %v320 = vld [vmem:[%s4 + $0x10] sm:$0xff]
  %v321 = vld [vmem:[%s4 + $0x18] sm:$0xff]
  %v322 = vld [vmem:[%s5] sm:$0xff]
  %v323 = vld [vmem:[%s5 + $0x8] sm:$0xff]
  %v324 = vld [vmem:[%s5 + $0x10] sm:$0xff]
  %v325 = vld [vmem:[%s5 + $0x18] sm:$0xff]
  %vm326 = vcmask 130048
  %v328 = vsel %vm326, %v310, 0
  %v331 = vsel %vm326, %v311, 0
  %333 = vmatprep.subr.mxu0 0.0
  %334 = vmatpush1.msra.mxu0 0.0
  %335 = vmatprep.subr.mxu0 0.0
  %336 = vmatpush1.msra.mxu0 0.0
  %337 = vmatprep.subr.mxu0 0.0
  %338 = vmatpush1.msra.mxu0 0.0
  %339 = vmatprep.subr.mxu0 0.0
  %340 = vmatpush1.msra.mxu0 0.0
  %341 = vmatprep.subr.mxu0 0.0
  %342 = vmatpush1.msra.mxu0 0.0
  %343 = vmatprep.subr.mxu0 0.0
  %344 = vmatpush1.msra.mxu0 0.0
  %345 = vmatprep.subr.mxu0 0.0
  %346 = vmatpush1.msra.mxu0 0.0
  %347 = vmatprep.subr.mxu0 0.0
  %348 = vmatpush1.msra.mxu0 0.0
  %349 = vmatprep.subr.mxu0 0.0
  %350 = vmatpush1.msra.mxu0 0.0
  %351 = vmatprep.subr.mxu0 0.0
  %352 = vmatpush1.msra.mxu0 0.0
  %353 = vmatprep.subr.mxu0 0.0
  %354 = vmatpush1.msra.mxu0 0.0
  %355 = vmatprep.subr.mxu0 0.0
  %356 = vmatpush1.msra.mxu0 0.0
  %357 = vmatprep.subr.mxu0 0.0
  %358 = vmatpush1.msra.mxu0 0.0
  %359 = vmatprep.subr.mxu0 0.0
  %360 = vmatpush1.msra.mxu0 0.0
  %361 = vmatprep.subr.mxu0 0.0
  %362 = vmatpush1.msra.mxu0 %v319
  %363 = vmatprep.subr.mxu0 0.0
  %364 = vmatpush1.msra.mxu0 %v318
  %365 = vmatprep.subr.mxu0 0.0
  %366 = vmatpush2.msra.mxu0 0.0
  %367 = vmatprep.subr.mxu0 0.0
  %368 = vmatpush2.msra.mxu0 0.0
  %369 = vmatprep.subr.mxu0 0.0
  %370 = vmatpush2.msra.mxu0 0.0
  %371 = vmatprep.subr.mxu0 0.0
  %372 = vmatpush2.msra.mxu0 0.0
  %373 = vmatprep.subr.mxu0 0.0
  %374 = vmatpush2.msra.mxu0 0.0
  %375 = vmatprep.subr.mxu0 0.0
  %376 = vmatpush2.msra.mxu0 0.0
  %377 = vmatprep.subr.mxu0 0.0
  %378 = vmatpush2.msra.mxu0 0.0
  %379 = vmatprep.subr.mxu0 0.0
  %380 = vmatpush2.msra.mxu0 0.0
  %381 = vmatprep.subr.mxu0 0.0
  %382 = vmatpush2.msra.mxu0 0.0
  %383 = vmatprep.subr.mxu0 0.0
  %384 = vmatpush2.msra.mxu0 0.0
  %385 = vmatprep.subr.mxu0 0.0
  %386 = vmatpush2.msra.mxu0 0.0
  %387 = vmatprep.subr.mxu0 0.0
  %388 = vmatpush2.msra.mxu0 0.0
  %389 = vmatprep.subr.mxu0 0.0
  %390 = vmatpush2.msra.mxu0 0.0
  %391 = vmatprep.subr.mxu0 0.0
  %392 = vmatpush2.msra.mxu0 0.0
  %393 = vmatprep.subr.mxu0 0.0
  %394 = vmatpush2.msra.mxu0 0.0
  %395 = vmatprep.subr.mxu0 0.0
  %396 = vmatpush2.msra.mxu0 0.0
  %397 = vmatprep.mubr.f32.mxu0 0.0
  %398 = vmatmul.mubr.f32.gmra.mxu0 %v328
  %v399 = vpop.f32.mrf.mxu0
  %v400 = vadd.f32 0.0, %v399
  %v401 = vpop.f32.mrf.mxu0
  %402 = vmatprep.mubr.f32.mxu0 0.0
  %403 = vmatmul.mubr.f32.gmra.mxu0 %v331
  %v404 = vpop.f32.mrf.mxu0
  %v405 = vadd.f32 0.0, %v404
  %v406 = vpop.f32.mrf.mxu0
  %407 = vdwg.mxu0
  %v409 = vsel %vm326, %v312, 0
  %v412 = vsel %vm326, %v313, 0
  %414 = vmatprep.subr.mxu0 0.0
  %415 = vmatpush1.msra.mxu0 0.0
  %416 = vmatprep.subr.mxu0 0.0
  %417 = vmatpush1.msra.mxu0 0.0
  %418 = vmatprep.subr.mxu0 0.0
  %419 = vmatpush1.msra.mxu0 0.0
  %420 = vmatprep.subr.mxu0 0.0
  %421 = vmatpush1.msra.mxu0 0.0
  %422 = vmatprep.subr.mxu0 0.0
  %423 = vmatpush1.msra.mxu0 0.0
  %424 = vmatprep.subr.mxu0 0.0
  %425 = vmatpush1.msra.mxu0 0.0
  %426 = vmatprep.subr.mxu0 0.0
  %427 = vmatpush1.msra.mxu0 0.0
  %428 = vmatprep.subr.mxu0 0.0
  %429 = vmatpush1.msra.mxu0 0.0
  %430 = vmatprep.subr.mxu0 0.0
  %431 = vmatpush1.msra.mxu0 0.0
  %432 = vmatprep.subr.mxu0 0.0
  %433 = vmatpush1.msra.mxu0 0.0
  %434 = vmatprep.subr.mxu0 0.0
  %435 = vmatpush1.msra.mxu0 0.0
  %436 = vmatprep.subr.mxu0 0.0
  %437 = vmatpush1.msra.mxu0 0.0
  %438 = vmatprep.subr.mxu0 0.0
  %439 = vmatpush1.msra.mxu0 0.0
  %440 = vmatprep.subr.mxu0 0.0
  %441 = vmatpush1.msra.mxu0 0.0
  %442 = vmatprep.subr.mxu0 0.0
  %443 = vmatpush1.msra.mxu0 %v321
  %444 = vmatprep.subr.mxu0 0.0
  %445 = vmatpush1.msra.mxu0 %v320
  %446 = vmatprep.subr.mxu0 0.0
  %447 = vmatpush2.msra.mxu0 0.0
  %448 = vmatprep.subr.mxu0 0.0
  %449 = vmatpush2.msra.mxu0 0.0
  %450 = vmatprep.subr.mxu0 0.0
  %451 = vmatpush2.msra.mxu0 0.0
  %452 = vmatprep.subr.mxu0 0.0
  %453 = vmatpush2.msra.mxu0 0.0
  %454 = vmatprep.subr.mxu0 0.0
  %455 = vmatpush2.msra.mxu0 0.0
  %456 = vmatprep.subr.mxu0 0.0
  %457 = vmatpush2.msra.mxu0 0.0
  %458 = vmatprep.subr.mxu0 0.0
  %459 = vmatpush2.msra.mxu0 0.0
  %460 = vmatprep.subr.mxu0 0.0
  %461 = vmatpush2.msra.mxu0 0.0
  %462 = vmatprep.subr.mxu0 0.0
  %463 = vmatpush2.msra.mxu0 0.0
  %464 = vmatprep.subr.mxu0 0.0
  %465 = vmatpush2.msra.mxu0 0.0
  %466 = vmatprep.subr.mxu0 0.0
  %467 = vmatpush2.msra.mxu0 0.0
  %468 = vmatprep.subr.mxu0 0.0
  %469 = vmatpush2.msra.mxu0 0.0
  %470 = vmatprep.subr.mxu0 0.0
  %471 = vmatpush2.msra.mxu0 0.0
  %472 = vmatprep.subr.mxu0 0.0
  %473 = vmatpush2.msra.mxu0 0.0
  %474 = vmatprep.subr.mxu0 0.0
  %475 = vmatpush2.msra.mxu0 0.0
  %476 = vmatprep.subr.mxu0 0.0
  %477 = vmatpush2.msra.mxu0 0.0
  %478 = vmatprep.mubr.f32.mxu0 0.0
  %479 = vmatmul.mubr.f32.gmra.mxu0 %v409
  %v480 = vpop.f32.mrf.mxu0
  %v481 = vadd.f32 0.0, %v480
  %v482 = vpop.f32.mrf.mxu0
  %483 = vmatprep.mubr.f32.mxu0 0.0
  %484 = vmatmul.mubr.f32.gmra.mxu0 %v412
  %v485 = vpop.f32.mrf.mxu0
  %v486 = vadd.f32 0.0, %v485
  %v487 = vpop.f32.mrf.mxu0
  %488 = vdwg.mxu0
  %v490 = vsel %vm326, %v314, 0
  %v493 = vsel %vm326, %v315, 0
  %495 = vmatprep.subr.mxu0 0.0
  %496 = vmatpush1.msra.mxu0 0.0
  %497 = vmatprep.subr.mxu0 0.0
  %498 = vmatpush1.msra.mxu0 0.0
  %499 = vmatprep.subr.mxu0 0.0
  %500 = vmatpush1.msra.mxu0 0.0
  %501 = vmatprep.subr.mxu0 0.0
  %502 = vmatpush1.msra.mxu0 0.0
  %503 = vmatprep.subr.mxu0 0.0
  %504 = vmatpush1.msra.mxu0 0.0
  %505 = vmatprep.subr.mxu0 0.0
  %506 = vmatpush1.msra.mxu0 0.0
  %507 = vmatprep.subr.mxu0 0.0
  %508 = vmatpush1.msra.mxu0 0.0
  %509 = vmatprep.subr.mxu0 0.0
  %510 = vmatpush1.msra.mxu0 0.0
  %511 = vmatprep.subr.mxu0 0.0
  %512 = vmatpush1.msra.mxu0 0.0
  %513 = vmatprep.subr.mxu0 0.0
  %514 = vmatpush1.msra.mxu0 0.0
  %515 = vmatprep.subr.mxu0 0.0
  %516 = vmatpush1.msra.mxu0 0.0
  %517 = vmatprep.subr.mxu0 0.0
  %518 = vmatpush1.msra.mxu0 0.0
  %519 = vmatprep.subr.mxu0 0.0
  %520 = vmatpush1.msra.mxu0 0.0
  %521 = vmatprep.subr.mxu0 0.0
  %522 = vmatpush1.msra.mxu0 0.0
  %523 = vmatprep.subr.mxu0 0.0
  %524 = vmatpush1.msra.mxu0 %v323
  %525 = vmatprep.subr.mxu0 0.0
  %526 = vmatpush1.msra.mxu0 %v322
  %527 = vmatprep.subr.mxu0 0.0
  %528 = vmatpush2.msra.mxu0 0.0
  %529 = vmatprep.subr.mxu0 0.0
  %530 = vmatpush2.msra.mxu0 0.0
  %531 = vmatprep.subr.mxu0 0.0
  %532 = vmatpush2.msra.mxu0 0.0
  %533 = vmatprep.subr.mxu0 0.0
  %534 = vmatpush2.msra.mxu0 0.0
  %535 = vmatprep.subr.mxu0 0.0
  %536 = vmatpush2.msra.mxu0 0.0
  %537 = vmatprep.subr.mxu0 0.0
  %538 = vmatpush2.msra.mxu0 0.0
  %539 = vmatprep.subr.mxu0 0.0
  %540 = vmatpush2.msra.mxu0 0.0
  %541 = vmatprep.subr.mxu0 0.0
  %542 = vmatpush2.msra.mxu0 0.0
  %543 = vmatprep.subr.mxu0 0.0
  %544 = vmatpush2.msra.mxu0 0.0
  %545 = vmatprep.subr.mxu0 0.0
  %546 = vmatpush2.msra.mxu0 0.0
  %547 = vmatprep.subr.mxu0 0.0
  %548 = vmatpush2.msra.mxu0 0.0
  %549 = vmatprep.subr.mxu0 0.0
  %550 = vmatpush2.msra.mxu0 0.0
  %551 = vmatprep.subr.mxu0 0.0
  %552 = vmatpush2.msra.mxu0 0.0
  %553 = vmatprep.subr.mxu0 0.0
  %554 = vmatpush2.msra.mxu0 0.0
  %555 = vmatprep.subr.mxu0 0.0
  %556 = vmatpush2.msra.mxu0 0.0
  %557 = vmatprep.subr.mxu0 0.0
  %558 = vmatpush2.msra.mxu0 0.0
  %559 = vmatprep.mubr.f32.mxu0 0.0
  %560 = vmatmul.mubr.f32.gmra.mxu0 %v490
  %v561 = vpop.f32.mrf.mxu0
  %v562 = vadd.f32 0.0, %v561
  %v563 = vpop.f32.mrf.mxu0
  %564 = vmatprep.mubr.f32.mxu0 0.0
  %565 = vmatmul.mubr.f32.gmra.mxu0 %v493
  %v566 = vpop.f32.mrf.mxu0
  %v567 = vadd.f32 0.0, %v566
  %v568 = vpop.f32.mrf.mxu0
  %569 = vdwg.mxu0
  %v571 = vsel %vm326, %v316, 0
  %v574 = vsel %vm326, %v317, 0
  %576 = vmatprep.subr.mxu0 0.0
  %577 = vmatpush1.msra.mxu0 0.0
  %578 = vmatprep.subr.mxu0 0.0
  %579 = vmatpush1.msra.mxu0 0.0
  %580 = vmatprep.subr.mxu0 0.0
  %581 = vmatpush1.msra.mxu0 0.0
  %582 = vmatprep.subr.mxu0 0.0
  %583 = vmatpush1.msra.mxu0 0.0
  %584 = vmatprep.subr.mxu0 0.0
  %585 = vmatpush1.msra.mxu0 0.0
  %586 = vmatprep.subr.mxu0 0.0
  %587 = vmatpush1.msra.mxu0 0.0
  %588 = vmatprep.subr.mxu0 0.0
  %589 = vmatpush1.msra.mxu0 0.0
  %590 = vmatprep.subr.mxu0 0.0
  %591 = vmatpush1.msra.mxu0 0.0
  %592 = vmatprep.subr.mxu0 0.0
  %593 = vmatpush1.msra.mxu0 0.0
  %594 = vmatprep.subr.mxu0 0.0
  %595 = vmatpush1.msra.mxu0 0.0
  %596 = vmatprep.subr.mxu0 0.0
  %597 = vmatpush1.msra.mxu0 0.0
  %598 = vmatprep.subr.mxu0 0.0
  %599 = vmatpush1.msra.mxu0 0.0
  %600 = vmatprep.subr.mxu0 0.0
  %601 = vmatpush1.msra.mxu0 0.0
  %602 = vmatprep.subr.mxu0 0.0
  %603 = vmatpush1.msra.mxu0 0.0
  %604 = vmatprep.subr.mxu0 0.0
  %605 = vmatpush1.msra.mxu0 %v325
  %606 = vmatprep.subr.mxu0 0.0
  %607 = vmatpush1.msra.mxu0 %v324
  %608 = vmatprep.subr.mxu0 0.0
  %609 = vmatpush2.msra.mxu0 0.0
  %610 = vmatprep.subr.mxu0 0.0
  %611 = vmatpush2.msra.mxu0 0.0
  %612 = vmatprep.subr.mxu0 0.0
  %613 = vmatpush2.msra.mxu0 0.0
  %614 = vmatprep.subr.mxu0 0.0
  %615 = vmatpush2.msra.mxu0 0.0
  %616 = vmatprep.subr.mxu0 0.0
  %617 = vmatpush2.msra.mxu0 0.0
  %618 = vmatprep.subr.mxu0 0.0
  %619 = vmatpush2.msra.mxu0 0.0
  %620 = vmatprep.subr.mxu0 0.0
  %621 = vmatpush2.msra.mxu0 0.0
  %622 = vmatprep.subr.mxu0 0.0
  %623 = vmatpush2.msra.mxu0 0.0
  %624 = vmatprep.subr.mxu0 0.0
  %625 = vmatpush2.msra.mxu0 0.0
  %626 = vmatprep.subr.mxu0 0.0
  %627 = vmatpush2.msra.mxu0 0.0
  %628 = vmatprep.subr.mxu0 0.0
  %629 = vmatpush2.msra.mxu0 0.0
  %630 = vmatprep.subr.mxu0 0.0
  %631 = vmatpush2.msra.mxu0 0.0
  %632 = vmatprep.subr.mxu0 0.0
  %633 = vmatpush2.msra.mxu0 0.0
  %634 = vmatprep.subr.mxu0 0.0
  %635 = vmatpush2.msra.mxu0 0.0
  %636 = vmatprep.subr.mxu0 0.0
  %637 = vmatpush2.msra.mxu0 0.0
  %638 = vmatprep.subr.mxu0 0.0
  %639 = vmatpush2.msra.mxu0 0.0
  %640 = vmatprep.mubr.f32.mxu0 0.0
  %641 = vmatmul.mubr.f32.gmra.mxu0 %v571
  %v642 = vpop.f32.mrf.mxu0
  %v643 = vadd.f32 0.0, %v642
  %v644 = vpop.f32.mrf.mxu0
  %645 = vmatprep.mubr.f32.mxu0 0.0
  %646 = vmatmul.mubr.f32.gmra.mxu0 %v574
  %v647 = vpop.f32.mrf.mxu0
  %v648 = vadd.f32 0.0, %v647
  %v649 = vpop.f32.mrf.mxu0
  %650 = vdwg.mxu0
  %v651 = vsub.f32 %v400, %v562
  %v652 = vsub.f32 %v405, %v567
  %v653 = vsub.f32 %v481, %v643
  %v654 = vsub.f32 %v486, %v648
  %655 = vmatprep.subr.mxu0 0.0
  %656 = vmatpush1.msra.mxu0 0.0
  %657 = vmatprep.subr.mxu0 0.0
  %658 = vmatpush1.msra.mxu0 0.0
  %659 = vmatprep.subr.mxu0 0.0
  %660 = vmatpush1.msra.mxu0 0.0
  %661 = vmatprep.subr.mxu0 0.0
  %662 = vmatpush1.msra.mxu0 0.0
  %663 = vmatprep.subr.mxu0 0.0
  %664 = vmatpush1.msra.mxu0 0.0
  %665 = vmatprep.subr.mxu0 0.0
  %666 = vmatpush1.msra.mxu0 0.0
  %667 = vmatprep.subr.mxu0 0.0
  %668 = vmatpush1.msra.mxu0 0.0
  %669 = vmatprep.subr.mxu0 0.0
  %670 = vmatpush1.msra.mxu0 0.0
  %671 = vmatprep.subr.mxu0 0.0
  %672 = vmatpush1.msra.mxu0 0.0
  %673 = vmatprep.subr.mxu0 0.0
  %674 = vmatpush1.msra.mxu0 0.0
  %675 = vmatprep.subr.mxu0 0.0
  %676 = vmatpush1.msra.mxu0 0.0
  %677 = vmatprep.subr.mxu0 0.0
  %678 = vmatpush1.msra.mxu0 0.0
  %679 = vmatprep.subr.mxu0 0.0
  %680 = vmatpush1.msra.mxu0 0.0
  %681 = vmatprep.subr.mxu0 0.0
  %682 = vmatpush1.msra.mxu0 0.0
  %683 = vmatprep.subr.mxu0 0.0
  %684 = vmatpush1.msra.mxu0 %v319
  %685 = vmatprep.subr.mxu0 0.0
  %686 = vmatpush1.msra.mxu0 %v318
  %687 = vmatprep.subr.mxu0 0.0
  %688 = vmatpush2.msra.mxu0 0.0
  %689 = vmatprep.subr.mxu0 0.0
  %690 = vmatpush2.msra.mxu0 0.0
  %691 = vmatprep.subr.mxu0 0.0
  %692 = vmatpush2.msra.mxu0 0.0
  %693 = vmatprep.subr.mxu0 0.0
  %694 = vmatpush2.msra.mxu0 0.0
  %695 = vmatprep.subr.mxu0 0.0
  %696 = vmatpush2.msra.mxu0 0.0
  %697 = vmatprep.subr.mxu0 0.0
  %698 = vmatpush2.msra.mxu0 0.0
  %699 = vmatprep.subr.mxu0 0.0
  %700 = vmatpush2.msra.mxu0 0.0
  %701 = vmatprep.subr.mxu0 0.0
  %702 = vmatpush2.msra.mxu0 0.0
  %703 = vmatprep.subr.mxu0 0.0
  %704 = vmatpush2.msra.mxu0 0.0
  %705 = vmatprep.subr.mxu0 0.0
  %706 = vmatpush2.msra.mxu0 0.0
  %707 = vmatprep.subr.mxu0 0.0
  %708 = vmatpush2.msra.mxu0 0.0
  %709 = vmatprep.subr.mxu0 0.0
  %710 = vmatpush2.msra.mxu0 0.0
  %711 = vmatprep.subr.mxu0 0.0
  %712 = vmatpush2.msra.mxu0 0.0
  %713 = vmatprep.subr.mxu0 0.0
  %714 = vmatpush2.msra.mxu0 0.0
  %715 = vmatprep.subr.mxu0 0.0
  %716 = vmatpush2.msra.mxu0 0.0
  %717 = vmatprep.subr.mxu0 0.0
  %718 = vmatpush2.msra.mxu0 0.0
  %719 = vmatprep.mubr.f32.mxu0 0.0
  %720 = vmatmul.mubr.f32.gmra.mxu0 %v490
  %v721 = vpop.f32.mrf.mxu0
  %v722 = vadd.f32 0.0, %v721
  %v723 = vpop.f32.mrf.mxu0
  %724 = vmatprep.mubr.f32.mxu0 0.0
  %725 = vmatmul.mubr.f32.gmra.mxu0 %v493
  %v726 = vpop.f32.mrf.mxu0
  %v727 = vadd.f32 0.0, %v726
  %v728 = vpop.f32.mrf.mxu0
  %729 = vdwg.mxu0
  %730 = vmatprep.subr.mxu0 0.0
  %731 = vmatpush1.msra.mxu0 0.0
  %732 = vmatprep.subr.mxu0 0.0
  %733 = vmatpush1.msra.mxu0 0.0
  %734 = vmatprep.subr.mxu0 0.0
  %735 = vmatpush1.msra.mxu0 0.0
  %736 = vmatprep.subr.mxu0 0.0
  %737 = vmatpush1.msra.mxu0 0.0
  %738 = vmatprep.subr.mxu0 0.0
  %739 = vmatpush1.msra.mxu0 0.0
  %740 = vmatprep.subr.mxu0 0.0
  %741 = vmatpush1.msra.mxu0 0.0
  %742 = vmatprep.subr.mxu0 0.0
  %743 = vmatpush1.msra.mxu0 0.0
  %744 = vmatprep.subr.mxu0 0.0
  %745 = vmatpush1.msra.mxu0 0.0
  %746 = vmatprep.subr.mxu0 0.0
  %747 = vmatpush1.msra.mxu0 0.0
  %748 = vmatprep.subr.mxu0 0.0
  %749 = vmatpush1.msra.mxu0 0.0
  %750 = vmatprep.subr.mxu0 0.0
  %751 = vmatpush1.msra.mxu0 0.0
  %752 = vmatprep.subr.mxu0 0.0
  %753 = vmatpush1.msra.mxu0 0.0
  %754 = vmatprep.subr.mxu0 0.0
  %755 = vmatpush1.msra.mxu0 0.0
  %756 = vmatprep.subr.mxu0 0.0
  %757 = vmatpush1.msra.mxu0 0.0
  %758 = vmatprep.subr.mxu0 0.0
  %759 = vmatpush1.msra.mxu0 %v321
  %760 = vmatprep.subr.mxu0 0.0
  %761 = vmatpush1.msra.mxu0 %v320
  %762 = vmatprep.subr.mxu0 0.0
  %763 = vmatpush2.msra.mxu0 0.0
  %764 = vmatprep.subr.mxu0 0.0
  %765 = vmatpush2.msra.mxu0 0.0
  %766 = vmatprep.subr.mxu0 0.0
  %767 = vmatpush2.msra.mxu0 0.0
  %768 = vmatprep.subr.mxu0 0.0
  %769 = vmatpush2.msra.mxu0 0.0
  %770 = vmatprep.subr.mxu0 0.0
  %771 = vmatpush2.msra.mxu0 0.0
  %772 = vmatprep.subr.mxu0 0.0
  %773 = vmatpush2.msra.mxu0 0.0
  %774 = vmatprep.subr.mxu0 0.0
  %775 = vmatpush2.msra.mxu0 0.0
  %776 = vmatprep.subr.mxu0 0.0
  %777 = vmatpush2.msra.mxu0 0.0
  %778 = vmatprep.subr.mxu0 0.0
  %779 = vmatpush2.msra.mxu0 0.0
  %780 = vmatprep.subr.mxu0 0.0
  %781 = vmatpush2.msra.mxu0 0.0
  %782 = vmatprep.subr.mxu0 0.0
  %783 = vmatpush2.msra.mxu0 0.0
  %784 = vmatprep.subr.mxu0 0.0
  %785 = vmatpush2.msra.mxu0 0.0
  %786 = vmatprep.subr.mxu0 0.0
  %787 = vmatpush2.msra.mxu0 0.0
  %788 = vmatprep.subr.mxu0 0.0
  %789 = vmatpush2.msra.mxu0 0.0
  %790 = vmatprep.subr.mxu0 0.0
  %791 = vmatpush2.msra.mxu0 0.0
  %792 = vmatprep.subr.mxu0 0.0
  %793 = vmatpush2.msra.mxu0 0.0
  %794 = vmatprep.mubr.f32.mxu0 0.0
  %795 = vmatmul.mubr.f32.gmra.mxu0 %v571
  %v796 = vpop.f32.mrf.mxu0
  %v797 = vadd.f32 0.0, %v796
  %v798 = vpop.f32.mrf.mxu0
  %799 = vmatprep.mubr.f32.mxu0 0.0
  %800 = vmatmul.mubr.f32.gmra.mxu0 %v574
  %v801 = vpop.f32.mrf.mxu0
  %v802 = vadd.f32 0.0, %v801
  %v803 = vpop.f32.mrf.mxu0
  %804 = vdwg.mxu0
  %805 = vmatprep.subr.mxu0 0.0
  %806 = vmatpush1.msra.mxu0 0.0
  %807 = vmatprep.subr.mxu0 0.0
  %808 = vmatpush1.msra.mxu0 0.0
  %809 = vmatprep.subr.mxu0 0.0
  %810 = vmatpush1.msra.mxu0 0.0
  %811 = vmatprep.subr.mxu0 0.0
  %812 = vmatpush1.msra.mxu0 0.0
  %813 = vmatprep.subr.mxu0 0.0
  %814 = vmatpush1.msra.mxu0 0.0
  %815 = vmatprep.subr.mxu0 0.0
  %816 = vmatpush1.msra.mxu0 0.0
  %817 = vmatprep.subr.mxu0 0.0
  %818 = vmatpush1.msra.mxu0 0.0
  %819 = vmatprep.subr.mxu0 0.0
  %820 = vmatpush1.msra.mxu0 0.0
  %821 = vmatprep.subr.mxu0 0.0
  %822 = vmatpush1.msra.mxu0 0.0
  %823 = vmatprep.subr.mxu0 0.0
  %824 = vmatpush1.msra.mxu0 0.0
  %825 = vmatprep.subr.mxu0 0.0
  %826 = vmatpush1.msra.mxu0 0.0
  %827 = vmatprep.subr.mxu0 0.0
  %828 = vmatpush1.msra.mxu0 0.0
  %829 = vmatprep.subr.mxu0 0.0
  %830 = vmatpush1.msra.mxu0 0.0
  %831 = vmatprep.subr.mxu0 0.0
  %832 = vmatpush1.msra.mxu0 0.0
  %833 = vmatprep.subr.mxu0 0.0
  %834 = vmatpush1.msra.mxu0 %v323
  %835 = vmatprep.subr.mxu0 0.0
  %836 = vmatpush1.msra.mxu0 %v322
  %837 = vmatprep.subr.mxu0 0.0
  %838 = vmatpush2.msra.mxu0 0.0
  %839 = vmatprep.subr.mxu0 0.0
  %840 = vmatpush2.msra.mxu0 0.0
  %841 = vmatprep.subr.mxu0 0.0
  %842 = vmatpush2.msra.mxu0 0.0
  %843 = vmatprep.subr.mxu0 0.0
  %844 = vmatpush2.msra.mxu0 0.0
  %845 = vmatprep.subr.mxu0 0.0
  %846 = vmatpush2.msra.mxu0 0.0
  %847 = vmatprep.subr.mxu0 0.0
  %848 = vmatpush2.msra.mxu0 0.0
  %849 = vmatprep.subr.mxu0 0.0
  %850 = vmatpush2.msra.mxu0 0.0
  %851 = vmatprep.subr.mxu0 0.0
  %852 = vmatpush2.msra.mxu0 0.0
  %853 = vmatprep.subr.mxu0 0.0
  %854 = vmatpush2.msra.mxu0 0.0
  %855 = vmatprep.subr.mxu0 0.0
  %856 = vmatpush2.msra.mxu0 0.0
  %857 = vmatprep.subr.mxu0 0.0
  %858 = vmatpush2.msra.mxu0 0.0
  %859 = vmatprep.subr.mxu0 0.0
  %860 = vmatpush2.msra.mxu0 0.0
  %861 = vmatprep.subr.mxu0 0.0
  %862 = vmatpush2.msra.mxu0 0.0
  %863 = vmatprep.subr.mxu0 0.0
  %864 = vmatpush2.msra.mxu0 0.0
  %865 = vmatprep.subr.mxu0 0.0
  %866 = vmatpush2.msra.mxu0 0.0
  %867 = vmatprep.subr.mxu0 0.0
  %868 = vmatpush2.msra.mxu0 0.0
  %869 = vmatprep.mubr.f32.mxu0 0.0
  %870 = vmatmul.mubr.f32.gmra.mxu0 %v328
  %v871 = vpop.f32.mrf.mxu0
  %v872 = vadd.f32 %v722, %v871
  %v873 = vpop.f32.mrf.mxu0
  %874 = vmatprep.mubr.f32.mxu0 0.0
  %875 = vmatmul.mubr.f32.gmra.mxu0 %v331
  %v876 = vpop.f32.mrf.mxu0
  %v877 = vadd.f32 %v727, %v876
  %v878 = vpop.f32.mrf.mxu0
  %879 = vdwg.mxu0
  %880 = vmatprep.subr.mxu0 0.0
  %881 = vmatpush1.msra.mxu0 0.0
  %882 = vmatprep.subr.mxu0 0.0
  %883 = vmatpush1.msra.mxu0 0.0
  %884 = vmatprep.subr.mxu0 0.0
  %885 = vmatpush1.msra.mxu0 0.0
  %886 = vmatprep.subr.mxu0 0.0
  %887 = vmatpush1.msra.mxu0 0.0
  %888 = vmatprep.subr.mxu0 0.0
  %889 = vmatpush1.msra.mxu0 0.0
  %890 = vmatprep.subr.mxu0 0.0
  %891 = vmatpush1.msra.mxu0 0.0
  %892 = vmatprep.subr.mxu0 0.0
  %893 = vmatpush1.msra.mxu0 0.0
  %894 = vmatprep.subr.mxu0 0.0
  %895 = vmatpush1.msra.mxu0 0.0
  %896 = vmatprep.subr.mxu0 0.0
  %897 = vmatpush1.msra.mxu0 0.0
  %898 = vmatprep.subr.mxu0 0.0
  %899 = vmatpush1.msra.mxu0 0.0
  %900 = vmatprep.subr.mxu0 0.0
  %901 = vmatpush1.msra.mxu0 0.0
  %902 = vmatprep.subr.mxu0 0.0
  %903 = vmatpush1.msra.mxu0 0.0
  %904 = vmatprep.subr.mxu0 0.0
  %905 = vmatpush1.msra.mxu0 0.0
  %906 = vmatprep.subr.mxu0 0.0
  %907 = vmatpush1.msra.mxu0 0.0
  %908 = vmatprep.subr.mxu0 0.0
  %909 = vmatpush1.msra.mxu0 %v325
  %910 = vmatprep.subr.mxu0 0.0
  %911 = vmatpush1.msra.mxu0 %v324
  %912 = vmatprep.subr.mxu0 0.0
  %913 = vmatpush2.msra.mxu0 0.0
  %914 = vmatprep.subr.mxu0 0.0
  %915 = vmatpush2.msra.mxu0 0.0
  %916 = vmatprep.subr.mxu0 0.0
  %917 = vmatpush2.msra.mxu0 0.0
  %918 = vmatprep.subr.mxu0 0.0
  %919 = vmatpush2.msra.mxu0 0.0
  %920 = vmatprep.subr.mxu0 0.0
  %921 = vmatpush2.msra.mxu0 0.0
  %922 = vmatprep.subr.mxu0 0.0
  %923 = vmatpush2.msra.mxu0 0.0
  %924 = vmatprep.subr.mxu0 0.0
  %925 = vmatpush2.msra.mxu0 0.0
  %926 = vmatprep.subr.mxu0 0.0
  %927 = vmatpush2.msra.mxu0 0.0
  %928 = vmatprep.subr.mxu0 0.0
  %929 = vmatpush2.msra.mxu0 0.0
  %930 = vmatprep.subr.mxu0 0.0
  %931 = vmatpush2.msra.mxu0 0.0
  %932 = vmatprep.subr.mxu0 0.0
  %933 = vmatpush2.msra.mxu0 0.0
  %934 = vmatprep.subr.mxu0 0.0
  %935 = vmatpush2.msra.mxu0 0.0
  %936 = vmatprep.subr.mxu0 0.0
  %937 = vmatpush2.msra.mxu0 0.0
  %938 = vmatprep.subr.mxu0 0.0
  %939 = vmatpush2.msra.mxu0 0.0
  %940 = vmatprep.subr.mxu0 0.0
  %941 = vmatpush2.msra.mxu0 0.0
  %942 = vmatprep.subr.mxu0 0.0
  %943 = vmatpush2.msra.mxu0 0.0
  %944 = vmatprep.mubr.f32.mxu0 0.0
  %945 = vmatmul.mubr.f32.gmra.mxu0 %v409
  %v946 = vpop.f32.mrf.mxu0
  %v947 = vadd.f32 %v797, %v946
  %v948 = vpop.f32.mrf.mxu0
  %949 = vmatprep.mubr.f32.mxu0 0.0
  %950 = vmatmul.mubr.f32.gmra.mxu0 %v412
  %v951 = vpop.f32.mrf.mxu0
  %v952 = vadd.f32 %v802, %v951
  %v953 = vpop.f32.mrf.mxu0
  %954 = vdwg.mxu0
  %v956 = vsel %vm326, %v155, 0
  %v959 = vsel %vm326, %v156, 0
  %961 = vmatprep.subr.mxu0 0.0
  %962 = vmatpush1.msra.mxu0 0.0
  %963 = vmatprep.subr.mxu0 0.0
  %964 = vmatpush1.msra.mxu0 0.0
  %965 = vmatprep.subr.mxu0 0.0
  %966 = vmatpush1.msra.mxu0 0.0
  %967 = vmatprep.subr.mxu0 0.0
  %968 = vmatpush1.msra.mxu0 0.0
  %969 = vmatprep.subr.mxu0 0.0
  %970 = vmatpush1.msra.mxu0 0.0
  %971 = vmatprep.subr.mxu0 0.0
  %972 = vmatpush1.msra.mxu0 0.0
  %973 = vmatprep.subr.mxu0 0.0
  %974 = vmatpush1.msra.mxu0 0.0
  %975 = vmatprep.subr.mxu0 0.0
  %976 = vmatpush1.msra.mxu0 0.0
  %977 = vmatprep.subr.mxu0 0.0
  %978 = vmatpush1.msra.mxu0 0.0
  %979 = vmatprep.subr.mxu0 0.0
  %980 = vmatpush1.msra.mxu0 0.0
  %981 = vmatprep.subr.mxu0 0.0
  %982 = vmatpush1.msra.mxu0 0.0
  %983 = vmatprep.subr.mxu0 0.0
  %984 = vmatpush1.msra.mxu0 0.0
  %985 = vmatprep.subr.mxu0 0.0
  %986 = vmatpush1.msra.mxu0 0.0
  %987 = vmatprep.subr.mxu0 0.0
  %988 = vmatpush1.msra.mxu0 0.0
  %989 = vmatprep.subr.mxu0 0.0
  %990 = vmatpush1.msra.mxu0 %v652
  %991 = vmatprep.subr.mxu0 0.0
  %992 = vmatpush1.msra.mxu0 %v651
  %993 = vmatprep.subr.mxu0 0.0
  %994 = vmatpush2.msra.mxu0 0.0
  %995 = vmatprep.subr.mxu0 0.0
  %996 = vmatpush2.msra.mxu0 0.0
  %997 = vmatprep.subr.mxu0 0.0
  %998 = vmatpush2.msra.mxu0 0.0
  %999 = vmatprep.subr.mxu0 0.0
  %1000 = vmatpush2.msra.mxu0 0.0
  %1001 = vmatprep.subr.mxu0 0.0
  %1002 = vmatpush2.msra.mxu0 0.0
  %1003 = vmatprep.subr.mxu0 0.0
  %1004 = vmatpush2.msra.mxu0 0.0
  %1005 = vmatprep.subr.mxu0 0.0
  %1006 = vmatpush2.msra.mxu0 0.0
  %1007 = vmatprep.subr.mxu0 0.0
  %1008 = vmatpush2.msra.mxu0 0.0
  %1009 = vmatprep.subr.mxu0 0.0
  %1010 = vmatpush2.msra.mxu0 0.0
  %1011 = vmatprep.subr.mxu0 0.0
  %1012 = vmatpush2.msra.mxu0 0.0
  %1013 = vmatprep.subr.mxu0 0.0
  %1014 = vmatpush2.msra.mxu0 0.0
  %1015 = vmatprep.subr.mxu0 0.0
  %1016 = vmatpush2.msra.mxu0 0.0
  %1017 = vmatprep.subr.mxu0 0.0
  %1018 = vmatpush2.msra.mxu0 0.0
  %1019 = vmatprep.subr.mxu0 0.0
  %1020 = vmatpush2.msra.mxu0 0.0
  %1021 = vmatprep.subr.mxu0 0.0
  %1022 = vmatpush2.msra.mxu0 0.0
  %1023 = vmatprep.subr.mxu0 0.0
  %1024 = vmatpush2.msra.mxu0 0.0
  %1025 = vmatprep.mubr.f32.mxu0 0.0
  %1026 = vmatmul.mubr.f32.gmra.mxu0 %v956
  %v1027 = vpop.f32.mrf.mxu0
  %v1028 = vadd.f32 0.0, %v1027
  %v1029 = vpop.f32.mrf.mxu0
  %1030 = vmatprep.mubr.f32.mxu0 0.0
  %1031 = vmatmul.mubr.f32.gmra.mxu0 %v959
  %v1032 = vpop.f32.mrf.mxu0
  %v1033 = vadd.f32 0.0, %v1032
  %v1034 = vpop.f32.mrf.mxu0
  %1035 = vdwg.mxu0
  %v1037 = vsel %vm326, %v157, 0
  %v1040 = vsel %vm326, %v158, 0
  %1042 = vmatprep.subr.mxu0 0.0
  %1043 = vmatpush1.msra.mxu0 0.0
  %1044 = vmatprep.subr.mxu0 0.0
  %1045 = vmatpush1.msra.mxu0 0.0
  %1046 = vmatprep.subr.mxu0 0.0
  %1047 = vmatpush1.msra.mxu0 0.0
  %1048 = vmatprep.subr.mxu0 0.0
  %1049 = vmatpush1.msra.mxu0 0.0
  %1050 = vmatprep.subr.mxu0 0.0
  %1051 = vmatpush1.msra.mxu0 0.0
  %1052 = vmatprep.subr.mxu0 0.0
  %1053 = vmatpush1.msra.mxu0 0.0
  %1054 = vmatprep.subr.mxu0 0.0
  %1055 = vmatpush1.msra.mxu0 0.0
  %1056 = vmatprep.subr.mxu0 0.0
  %1057 = vmatpush1.msra.mxu0 0.0
  %1058 = vmatprep.subr.mxu0 0.0
  %1059 = vmatpush1.msra.mxu0 0.0
  %1060 = vmatprep.subr.mxu0 0.0
  %1061 = vmatpush1.msra.mxu0 0.0
  %1062 = vmatprep.subr.mxu0 0.0
  %1063 = vmatpush1.msra.mxu0 0.0
  %1064 = vmatprep.subr.mxu0 0.0
  %1065 = vmatpush1.msra.mxu0 0.0
  %1066 = vmatprep.subr.mxu0 0.0
  %1067 = vmatpush1.msra.mxu0 0.0
  %1068 = vmatprep.subr.mxu0 0.0
  %1069 = vmatpush1.msra.mxu0 0.0
  %1070 = vmatprep.subr.mxu0 0.0
  %1071 = vmatpush1.msra.mxu0 %v654
  %1072 = vmatprep.subr.mxu0 0.0
  %1073 = vmatpush1.msra.mxu0 %v653
  %1074 = vmatprep.subr.mxu0 0.0
  %1075 = vmatpush2.msra.mxu0 0.0
  %1076 = vmatprep.subr.mxu0 0.0
  %1077 = vmatpush2.msra.mxu0 0.0
  %1078 = vmatprep.subr.mxu0 0.0
  %1079 = vmatpush2.msra.mxu0 0.0
  %1080 = vmatprep.subr.mxu0 0.0
  %1081 = vmatpush2.msra.mxu0 0.0
  %1082 = vmatprep.subr.mxu0 0.0
  %1083 = vmatpush2.msra.mxu0 0.0
  %1084 = vmatprep.subr.mxu0 0.0
  %1085 = vmatpush2.msra.mxu0 0.0
  %1086 = vmatprep.subr.mxu0 0.0
  %1087 = vmatpush2.msra.mxu0 0.0
  %1088 = vmatprep.subr.mxu0 0.0
  %1089 = vmatpush2.msra.mxu0 0.0
  %1090 = vmatprep.subr.mxu0 0.0
  %1091 = vmatpush2.msra.mxu0 0.0
  %1092 = vmatprep.subr.mxu0 0.0
  %1093 = vmatpush2.msra.mxu0 0.0
  %1094 = vmatprep.subr.mxu0 0.0
  %1095 = vmatpush2.msra.mxu0 0.0
  %1096 = vmatprep.subr.mxu0 0.0
  %1097 = vmatpush2.msra.mxu0 0.0
  %1098 = vmatprep.subr.mxu0 0.0
  %1099 = vmatpush2.msra.mxu0 0.0
  %1100 = vmatprep.subr.mxu0 0.0
  %1101 = vmatpush2.msra.mxu0 0.0
  %1102 = vmatprep.subr.mxu0 0.0
  %1103 = vmatpush2.msra.mxu0 0.0
  %1104 = vmatprep.subr.mxu0 0.0
  %1105 = vmatpush2.msra.mxu0 0.0
  %1106 = vmatprep.mubr.f32.mxu0 0.0
  %1107 = vmatmul.mubr.f32.gmra.mxu0 %v1037
  %v1108 = vpop.f32.mrf.mxu0
  %v1109 = vadd.f32 0.0, %v1108
  %v1110 = vpop.f32.mrf.mxu0
  %1111 = vmatprep.mubr.f32.mxu0 0.0
  %1112 = vmatmul.mubr.f32.gmra.mxu0 %v1040
  %v1113 = vpop.f32.mrf.mxu0
  %v1114 = vadd.f32 0.0, %v1113
  %v1115 = vpop.f32.mrf.mxu0
  %1116 = vdwg.mxu0
  %1119 = vrot.lane.b32.xlu0 %v179, 96
  %v1120 = vpop.permute.xlu0 %1119
  %1121 = vrot.lane.b32.xlu0 %v180, 96
  %v1122 = vpop.permute.xlu0 %1121
  %v1123 = vsel %vm326, %v1120, 0
  %v1125 = vsel %vm326, %v1122, 0
  %1127 = vmatprep.subr.mxu0 0.0
  %1128 = vmatpush1.msra.mxu0 0.0
  %1129 = vmatprep.subr.mxu0 0.0
  %1130 = vmatpush1.msra.mxu0 0.0
  %1131 = vmatprep.subr.mxu0 0.0
  %1132 = vmatpush1.msra.mxu0 0.0
  %1133 = vmatprep.subr.mxu0 0.0
  %1134 = vmatpush1.msra.mxu0 0.0
  %1135 = vmatprep.subr.mxu0 0.0
  %1136 = vmatpush1.msra.mxu0 0.0
  %1137 = vmatprep.subr.mxu0 0.0
  %1138 = vmatpush1.msra.mxu0 0.0
  %1139 = vmatprep.subr.mxu0 0.0
  %1140 = vmatpush1.msra.mxu0 0.0
  %1141 = vmatprep.subr.mxu0 0.0
  %1142 = vmatpush1.msra.mxu0 0.0
  %1143 = vmatprep.subr.mxu0 0.0
  %1144 = vmatpush1.msra.mxu0 0.0
  %1145 = vmatprep.subr.mxu0 0.0
  %1146 = vmatpush1.msra.mxu0 0.0
  %1147 = vmatprep.subr.mxu0 0.0
  %1148 = vmatpush1.msra.mxu0 0.0
  %1149 = vmatprep.subr.mxu0 0.0
  %1150 = vmatpush1.msra.mxu0 0.0
  %1151 = vmatprep.subr.mxu0 0.0
  %1152 = vmatpush1.msra.mxu0 0.0
  %1153 = vmatprep.subr.mxu0 0.0
  %1154 = vmatpush1.msra.mxu0 0.0
  %1155 = vmatprep.subr.mxu0 0.0
  %1156 = vmatpush1.msra.mxu0 %v877
  %1157 = vmatprep.subr.mxu0 0.0
  %1158 = vmatpush1.msra.mxu0 %v872
  %1159 = vmatprep.subr.mxu0 0.0
  %1160 = vmatpush2.msra.mxu0 0.0
  %1161 = vmatprep.subr.mxu0 0.0
  %1162 = vmatpush2.msra.mxu0 0.0
  %1163 = vmatprep.subr.mxu0 0.0
  %1164 = vmatpush2.msra.mxu0 0.0
  %1165 = vmatprep.subr.mxu0 0.0
  %1166 = vmatpush2.msra.mxu0 0.0
  %1167 = vmatprep.subr.mxu0 0.0
  %1168 = vmatpush2.msra.mxu0 0.0
  %1169 = vmatprep.subr.mxu0 0.0
  %1170 = vmatpush2.msra.mxu0 0.0
  %1171 = vmatprep.subr.mxu0 0.0
  %1172 = vmatpush2.msra.mxu0 0.0
  %1173 = vmatprep.subr.mxu0 0.0
  %1174 = vmatpush2.msra.mxu0 0.0
  %1175 = vmatprep.subr.mxu0 0.0
  %1176 = vmatpush2.msra.mxu0 0.0
  %1177 = vmatprep.subr.mxu0 0.0
  %1178 = vmatpush2.msra.mxu0 0.0
  %1179 = vmatprep.subr.mxu0 0.0
  %1180 = vmatpush2.msra.mxu0 0.0
  %1181 = vmatprep.subr.mxu0 0.0
  %1182 = vmatpush2.msra.mxu0 0.0
  %1183 = vmatprep.subr.mxu0 0.0
  %1184 = vmatpush2.msra.mxu0 0.0
  %1185 = vmatprep.subr.mxu0 0.0
  %1186 = vmatpush2.msra.mxu0 0.0
  %1187 = vmatprep.subr.mxu0 0.0
  %1188 = vmatpush2.msra.mxu0 0.0
  %1189 = vmatprep.subr.mxu0 0.0
  %1190 = vmatpush2.msra.mxu0 0.0
  %1191 = vmatprep.mubr.f32.mxu0 0.0
  %1192 = vmatmul.mubr.f32.gmra.mxu0 %v1123
  %v1193 = vpop.f32.mrf.mxu0
  %v1194 = vadd.f32 0.0, %v1193
  %v1195 = vpop.f32.mrf.mxu0
  %1196 = vmatprep.mubr.f32.mxu0 0.0
  %1197 = vmatmul.mubr.f32.gmra.mxu0 %v1125
  %v1198 = vpop.f32.mrf.mxu0
  %v1199 = vadd.f32 0.0, %v1198
  %v1200 = vpop.f32.mrf.mxu0
  %1201 = vdwg.mxu0
  %1204 = vrot.lane.b32.xlu0 %v181, 96
  %v1205 = vpop.permute.xlu0 %1204
  %1206 = vrot.lane.b32.xlu0 %v182, 96
  %v1207 = vpop.permute.xlu0 %1206
  %v1208 = vsel %vm326, %v1205, 0
  %v1210 = vsel %vm326, %v1207, 0
  %1212 = vmatprep.subr.mxu0 0.0
  %1213 = vmatpush1.msra.mxu0 0.0
  %1214 = vmatprep.subr.mxu0 0.0
  %1215 = vmatpush1.msra.mxu0 0.0
  %1216 = vmatprep.subr.mxu0 0.0
  %1217 = vmatpush1.msra.mxu0 0.0
  %1218 = vmatprep.subr.mxu0 0.0
  %1219 = vmatpush1.msra.mxu0 0.0
  %1220 = vmatprep.subr.mxu0 0.0
  %1221 = vmatpush1.msra.mxu0 0.0
  %1222 = vmatprep.subr.mxu0 0.0
  %1223 = vmatpush1.msra.mxu0 0.0
  %1224 = vmatprep.subr.mxu0 0.0
  %1225 = vmatpush1.msra.mxu0 0.0
  %1226 = vmatprep.subr.mxu0 0.0
  %1227 = vmatpush1.msra.mxu0 0.0
  %1228 = vmatprep.subr.mxu0 0.0
  %1229 = vmatpush1.msra.mxu0 0.0
  %1230 = vmatprep.subr.mxu0 0.0
  %1231 = vmatpush1.msra.mxu0 0.0
  %1232 = vmatprep.subr.mxu0 0.0
  %1233 = vmatpush1.msra.mxu0 0.0
  %1234 = vmatprep.subr.mxu0 0.0
  %1235 = vmatpush1.msra.mxu0 0.0
  %1236 = vmatprep.subr.mxu0 0.0
  %1237 = vmatpush1.msra.mxu0 0.0
  %1238 = vmatprep.subr.mxu0 0.0
  %1239 = vmatpush1.msra.mxu0 0.0
  %1240 = vmatprep.subr.mxu0 0.0
  %1241 = vmatpush1.msra.mxu0 %v952
  %1242 = vmatprep.subr.mxu0 0.0
  %1243 = vmatpush1.msra.mxu0 %v947
  %1244 = vmatprep.subr.mxu0 0.0
  %1245 = vmatpush2.msra.mxu0 0.0
  %1246 = vmatprep.subr.mxu0 0.0
  %1247 = vmatpush2.msra.mxu0 0.0
  %1248 = vmatprep.subr.mxu0 0.0
  %1249 = vmatpush2.msra.mxu0 0.0
  %1250 = vmatprep.subr.mxu0 0.0
  %1251 = vmatpush2.msra.mxu0 0.0
  %1252 = vmatprep.subr.mxu0 0.0
  %1253 = vmatpush2.msra.mxu0 0.0
  %1254 = vmatprep.subr.mxu0 0.0
  %1255 = vmatpush2.msra.mxu0 0.0
  %1256 = vmatprep.subr.mxu0 0.0
  %1257 = vmatpush2.msra.mxu0 0.0
  %1258 = vmatprep.subr.mxu0 0.0
  %1259 = vmatpush2.msra.mxu0 0.0
  %1260 = vmatprep.subr.mxu0 0.0
  %1261 = vmatpush2.msra.mxu0 0.0
  %1262 = vmatprep.subr.mxu0 0.0
  %1263 = vmatpush2.msra.mxu0 0.0
  %1264 = vmatprep.subr.mxu0 0.0
  %1265 = vmatpush2.msra.mxu0 0.0
  %1266 = vmatprep.subr.mxu0 0.0
  %1267 = vmatpush2.msra.mxu0 0.0
  %1268 = vmatprep.subr.mxu0 0.0
  %1269 = vmatpush2.msra.mxu0 0.0
  %1270 = vmatprep.subr.mxu0 0.0
  %1271 = vmatpush2.msra.mxu0 0.0
  %1272 = vmatprep.subr.mxu0 0.0
  %1273 = vmatpush2.msra.mxu0 0.0
  %1274 = vmatprep.subr.mxu0 0.0
  %1275 = vmatpush2.msra.mxu0 0.0
  %1276 = vmatprep.mubr.f32.mxu0 0.0
  %1277 = vmatmul.mubr.f32.gmra.mxu0 %v1208
  %v1278 = vpop.f32.mrf.mxu0
  %v1279 = vadd.f32 0.0, %v1278
  %v1280 = vpop.f32.mrf.mxu0
  %1281 = vmatprep.mubr.f32.mxu0 0.0
  %1282 = vmatmul.mubr.f32.gmra.mxu0 %v1210
  %v1283 = vpop.f32.mrf.mxu0
  %v1284 = vadd.f32 0.0, %v1283
  %v1285 = vpop.f32.mrf.mxu0
  %1286 = vdwg.mxu0
  %v1287 = vsub.f32 %v1028, %v1194
  %v1288 = vsub.f32 %v1033, %v1199
  %v1289 = vsub.f32 %v1109, %v1279
  %v1290 = vsub.f32 %v1114, %v1284
  %1291 = vmatprep.subr.mxu0 0.0
  %1292 = vmatpush1.msra.mxu0 0.0
  %1293 = vmatprep.subr.mxu0 0.0
  %1294 = vmatpush1.msra.mxu0 0.0
  %1295 = vmatprep.subr.mxu0 0.0
  %1296 = vmatpush1.msra.mxu0 0.0
  %1297 = vmatprep.subr.mxu0 0.0
  %1298 = vmatpush1.msra.mxu0 0.0
  %1299 = vmatprep.subr.mxu0 0.0
  %1300 = vmatpush1.msra.mxu0 0.0
  %1301 = vmatprep.subr.mxu0 0.0
  %1302 = vmatpush1.msra.mxu0 0.0
  %1303 = vmatprep.subr.mxu0 0.0
  %1304 = vmatpush1.msra.mxu0 0.0
  %1305 = vmatprep.subr.mxu0 0.0
  %1306 = vmatpush1.msra.mxu0 0.0
  %1307 = vmatprep.subr.mxu0 0.0
  %1308 = vmatpush1.msra.mxu0 0.0
  %1309 = vmatprep.subr.mxu0 0.0
  %1310 = vmatpush1.msra.mxu0 0.0
  %1311 = vmatprep.subr.mxu0 0.0
  %1312 = vmatpush1.msra.mxu0 0.0
  %1313 = vmatprep.subr.mxu0 0.0
  %1314 = vmatpush1.msra.mxu0 0.0
  %1315 = vmatprep.subr.mxu0 0.0
  %1316 = vmatpush1.msra.mxu0 0.0
  %1317 = vmatprep.subr.mxu0 0.0
  %1318 = vmatpush1.msra.mxu0 0.0
  %1319 = vmatprep.subr.mxu0 0.0
  %1320 = vmatpush1.msra.mxu0 %v652
  %1321 = vmatprep.subr.mxu0 0.0
  %1322 = vmatpush1.msra.mxu0 %v651
  %1323 = vmatprep.subr.mxu0 0.0
  %1324 = vmatpush2.msra.mxu0 0.0
  %1325 = vmatprep.subr.mxu0 0.0
  %1326 = vmatpush2.msra.mxu0 0.0
  %1327 = vmatprep.subr.mxu0 0.0
  %1328 = vmatpush2.msra.mxu0 0.0
  %1329 = vmatprep.subr.mxu0 0.0
  %1330 = vmatpush2.msra.mxu0 0.0
  %1331 = vmatprep.subr.mxu0 0.0
  %1332 = vmatpush2.msra.mxu0 0.0
  %1333 = vmatprep.subr.mxu0 0.0
  %1334 = vmatpush2.msra.mxu0 0.0
  %1335 = vmatprep.subr.mxu0 0.0
  %1336 = vmatpush2.msra.mxu0 0.0
  %1337 = vmatprep.subr.mxu0 0.0
  %1338 = vmatpush2.msra.mxu0 0.0
  %1339 = vmatprep.subr.mxu0 0.0
  %1340 = vmatpush2.msra.mxu0 0.0
  %1341 = vmatprep.subr.mxu0 0.0
  %1342 = vmatpush2.msra.mxu0 0.0
  %1343 = vmatprep.subr.mxu0 0.0
  %1344 = vmatpush2.msra.mxu0 0.0
  %1345 = vmatprep.subr.mxu0 0.0
  %1346 = vmatpush2.msra.mxu0 0.0
  %1347 = vmatprep.subr.mxu0 0.0
  %1348 = vmatpush2.msra.mxu0 0.0
  %1349 = vmatprep.subr.mxu0 0.0
  %1350 = vmatpush2.msra.mxu0 0.0
  %1351 = vmatprep.subr.mxu0 0.0
  %1352 = vmatpush2.msra.mxu0 0.0
  %1353 = vmatprep.subr.mxu0 0.0
  %1354 = vmatpush2.msra.mxu0 0.0
  %1355 = vmatprep.mubr.f32.mxu0 0.0
  %1356 = vmatmul.mubr.f32.gmra.mxu0 %v1123
  %v1357 = vpop.f32.mrf.mxu0
  %v1358 = vadd.f32 0.0, %v1357
  %v1359 = vpop.f32.mrf.mxu0
  %1360 = vmatprep.mubr.f32.mxu0 0.0
  %1361 = vmatmul.mubr.f32.gmra.mxu0 %v1125
  %v1362 = vpop.f32.mrf.mxu0
  %v1363 = vadd.f32 0.0, %v1362
  %v1364 = vpop.f32.mrf.mxu0
  %1365 = vdwg.mxu0
  %1366 = vmatprep.subr.mxu0 0.0
  %1367 = vmatpush1.msra.mxu0 0.0
  %1368 = vmatprep.subr.mxu0 0.0
  %1369 = vmatpush1.msra.mxu0 0.0
  %1370 = vmatprep.subr.mxu0 0.0
  %1371 = vmatpush1.msra.mxu0 0.0
  %1372 = vmatprep.subr.mxu0 0.0
  %1373 = vmatpush1.msra.mxu0 0.0
  %1374 = vmatprep.subr.mxu0 0.0
  %1375 = vmatpush1.msra.mxu0 0.0
  %1376 = vmatprep.subr.mxu0 0.0
  %1377 = vmatpush1.msra.mxu0 0.0
  %1378 = vmatprep.subr.mxu0 0.0
  %1379 = vmatpush1.msra.mxu0 0.0
  %1380 = vmatprep.subr.mxu0 0.0
  %1381 = vmatpush1.msra.mxu0 0.0
  %1382 = vmatprep.subr.mxu0 0.0
  %1383 = vmatpush1.msra.mxu0 0.0
  %1384 = vmatprep.subr.mxu0 0.0
  %1385 = vmatpush1.msra.mxu0 0.0
  %1386 = vmatprep.subr.mxu0 0.0
  %1387 = vmatpush1.msra.mxu0 0.0
  %1388 = vmatprep.subr.mxu0 0.0
  %1389 = vmatpush1.msra.mxu0 0.0
  %1390 = vmatprep.subr.mxu0 0.0
  %1391 = vmatpush1.msra.mxu0 0.0
  %1392 = vmatprep.subr.mxu0 0.0
  %1393 = vmatpush1.msra.mxu0 0.0
  %1394 = vmatprep.subr.mxu0 0.0
  %1395 = vmatpush1.msra.mxu0 %v654
  %1396 = vmatprep.subr.mxu0 0.0
  %1397 = vmatpush1.msra.mxu0 %v653
  %1398 = vmatprep.subr.mxu0 0.0
  %1399 = vmatpush2.msra.mxu0 0.0
  %1400 = vmatprep.subr.mxu0 0.0
  %1401 = vmatpush2.msra.mxu0 0.0
  %1402 = vmatprep.subr.mxu0 0.0
  %1403 = vmatpush2.msra.mxu0 0.0
  %1404 = vmatprep.subr.mxu0 0.0
  %1405 = vmatpush2.msra.mxu0 0.0
  %1406 = vmatprep.subr.mxu0 0.0
  %1407 = vmatpush2.msra.mxu0 0.0
  %1408 = vmatprep.subr.mxu0 0.0
  %1409 = vmatpush2.msra.mxu0 0.0
  %1410 = vmatprep.subr.mxu0 0.0
  %1411 = vmatpush2.msra.mxu0 0.0
  %1412 = vmatprep.subr.mxu0 0.0
  %1413 = vmatpush2.msra.mxu0 0.0
  %1414 = vmatprep.subr.mxu0 0.0
  %1415 = vmatpush2.msra.mxu0 0.0
  %1416 = vmatprep.subr.mxu0 0.0
  %1417 = vmatpush2.msra.mxu0 0.0
  %1418 = vmatprep.subr.mxu0 0.0
  %1419 = vmatpush2.msra.mxu0 0.0
  %1420 = vmatprep.subr.mxu0 0.0
  %1421 = vmatpush2.msra.mxu0 0.0
  %1422 = vmatprep.subr.mxu0 0.0
  %1423 = vmatpush2.msra.mxu0 0.0
  %1424 = vmatprep.subr.mxu0 0.0
  %1425 = vmatpush2.msra.mxu0 0.0
  %1426 = vmatprep.subr.mxu0 0.0
  %1427 = vmatpush2.msra.mxu0 0.0
  %1428 = vmatprep.subr.mxu0 0.0
  %1429 = vmatpush2.msra.mxu0 0.0
  %1430 = vmatprep.mubr.f32.mxu0 0.0
  %1431 = vmatmul.mubr.f32.gmra.mxu0 %v1208
  %v1432 = vpop.f32.mrf.mxu0
  %v1433 = vadd.f32 0.0, %v1432
  %v1434 = vpop.f32.mrf.mxu0
  %1435 = vmatprep.mubr.f32.mxu0 0.0
  %1436 = vmatmul.mubr.f32.gmra.mxu0 %v1210
  %v1437 = vpop.f32.mrf.mxu0
  %v1438 = vadd.f32 0.0, %v1437
  %v1439 = vpop.f32.mrf.mxu0
  %1440 = vdwg.mxu0
  %1441 = vmatprep.subr.mxu0 0.0
  %1442 = vmatpush1.msra.mxu0 0.0
  %1443 = vmatprep.subr.mxu0 0.0
  %1444 = vmatpush1.msra.mxu0 0.0
  %1445 = vmatprep.subr.mxu0 0.0
  %1446 = vmatpush1.msra.mxu0 0.0
  %1447 = vmatprep.subr.mxu0 0.0
  %1448 = vmatpush1.msra.mxu0 0.0
  %1449 = vmatprep.subr.mxu0 0.0
  %1450 = vmatpush1.msra.mxu0 0.0
  %1451 = vmatprep.subr.mxu0 0.0
  %1452 = vmatpush1.msra.mxu0 0.0
  %1453 = vmatprep.subr.mxu0 0.0
  %1454 = vmatpush1.msra.mxu0 0.0
  %1455 = vmatprep.subr.mxu0 0.0
  %1456 = vmatpush1.msra.mxu0 0.0
  %1457 = vmatprep.subr.mxu0 0.0
  %1458 = vmatpush1.msra.mxu0 0.0
  %1459 = vmatprep.subr.mxu0 0.0
  %1460 = vmatpush1.msra.mxu0 0.0
  %1461 = vmatprep.subr.mxu0 0.0
  %1462 = vmatpush1.msra.mxu0 0.0
  %1463 = vmatprep.subr.mxu0 0.0
  %1464 = vmatpush1.msra.mxu0 0.0
  %1465 = vmatprep.subr.mxu0 0.0
  %1466 = vmatpush1.msra.mxu0 0.0
  %1467 = vmatprep.subr.mxu0 0.0
  %1468 = vmatpush1.msra.mxu0 0.0
  %1469 = vmatprep.subr.mxu0 0.0
  %1470 = vmatpush1.msra.mxu0 %v877
  %1471 = vmatprep.subr.mxu0 0.0
  %1472 = vmatpush1.msra.mxu0 %v872
  %1473 = vmatprep.subr.mxu0 0.0
  %1474 = vmatpush2.msra.mxu0 0.0
  %1475 = vmatprep.subr.mxu0 0.0
  %1476 = vmatpush2.msra.mxu0 0.0
  %1477 = vmatprep.subr.mxu0 0.0
  %1478 = vmatpush2.msra.mxu0 0.0
  %1479 = vmatprep.subr.mxu0 0.0
  %1480 = vmatpush2.msra.mxu0 0.0
  %1481 = vmatprep.subr.mxu0 0.0
  %1482 = vmatpush2.msra.mxu0 0.0
  %1483 = vmatprep.subr.mxu0 0.0
  %1484 = vmatpush2.msra.mxu0 0.0
  %1485 = vmatprep.subr.mxu0 0.0
  %1486 = vmatpush2.msra.mxu0 0.0
  %1487 = vmatprep.subr.mxu0 0.0
  %1488 = vmatpush2.msra.mxu0 0.0
  %1489 = vmatprep.subr.mxu0 0.0
  %1490 = vmatpush2.msra.mxu0 0.0
  %1491 = vmatprep.subr.mxu0 0.0
  %1492 = vmatpush2.msra.mxu0 0.0
  %1493 = vmatprep.subr.mxu0 0.0
  %1494 = vmatpush2.msra.mxu0 0.0
  %1495 = vmatprep.subr.mxu0 0.0
  %1496 = vmatpush2.msra.mxu0 0.0
  %1497 = vmatprep.subr.mxu0 0.0
  %1498 = vmatpush2.msra.mxu0 0.0
  %1499 = vmatprep.subr.mxu0 0.0
  %1500 = vmatpush2.msra.mxu0 0.0
  %1501 = vmatprep.subr.mxu0 0.0
  %1502 = vmatpush2.msra.mxu0 0.0
  %1503 = vmatprep.subr.mxu0 0.0
  %1504 = vmatpush2.msra.mxu0 0.0
  %1505 = vmatprep.mubr.f32.mxu0 0.0
  %1506 = vmatmul.mubr.f32.gmra.mxu0 %v956
  %v1507 = vpop.f32.mrf.mxu0
  %v1508 = vadd.f32 %v1358, %v1507
  %v1509 = vpop.f32.mrf.mxu0
  %1510 = vmatprep.mubr.f32.mxu0 0.0
  %1511 = vmatmul.mubr.f32.gmra.mxu0 %v959
  %v1512 = vpop.f32.mrf.mxu0
  %v1513 = vadd.f32 %v1363, %v1512
  %v1514 = vpop.f32.mrf.mxu0
  %1515 = vdwg.mxu0
  %1516 = vmatprep.subr.mxu0 0.0
  %1517 = vmatpush1.msra.mxu0 0.0
  %1518 = vmatprep.subr.mxu0 0.0
  %1519 = vmatpush1.msra.mxu0 0.0
  %1520 = vmatprep.subr.mxu0 0.0
  %1521 = vmatpush1.msra.mxu0 0.0
  %1522 = vmatprep.subr.mxu0 0.0
  %1523 = vmatpush1.msra.mxu0 0.0
  %1524 = vmatprep.subr.mxu0 0.0
  %1525 = vmatpush1.msra.mxu0 0.0
  %1526 = vmatprep.subr.mxu0 0.0
  %1527 = vmatpush1.msra.mxu0 0.0
  %1528 = vmatprep.subr.mxu0 0.0
  %1529 = vmatpush1.msra.mxu0 0.0
  %1530 = vmatprep.subr.mxu0 0.0
  %1531 = vmatpush1.msra.mxu0 0.0
  %1532 = vmatprep.subr.mxu0 0.0
  %1533 = vmatpush1.msra.mxu0 0.0
  %1534 = vmatprep.subr.mxu0 0.0
  %1535 = vmatpush1.msra.mxu0 0.0
  %1536 = vmatprep.subr.mxu0 0.0
  %1537 = vmatpush1.msra.mxu0 0.0
  %1538 = vmatprep.subr.mxu0 0.0
  %1539 = vmatpush1.msra.mxu0 0.0
  %1540 = vmatprep.subr.mxu0 0.0
  %1541 = vmatpush1.msra.mxu0 0.0
  %1542 = vmatprep.subr.mxu0 0.0
  %1543 = vmatpush1.msra.mxu0 0.0
  %1544 = vmatprep.subr.mxu0 0.0
  %1545 = vmatpush1.msra.mxu0 %v952
  %1546 = vmatprep.subr.mxu0 0.0
  %1547 = vmatpush1.msra.mxu0 %v947
  %1548 = vmatprep.subr.mxu0 0.0
  %1549 = vmatpush2.msra.mxu0 0.0
  %1550 = vmatprep.subr.mxu0 0.0
  %1551 = vmatpush2.msra.mxu0 0.0
  %1552 = vmatprep.subr.mxu0 0.0
  %1553 = vmatpush2.msra.mxu0 0.0
  %1554 = vmatprep.subr.mxu0 0.0
  %1555 = vmatpush2.msra.mxu0 0.0
  %1556 = vmatprep.subr.mxu0 0.0
  %1557 = vmatpush2.msra.mxu0 0.0
  %1558 = vmatprep.subr.mxu0 0.0
  %1559 = vmatpush2.msra.mxu0 0.0
  %1560 = vmatprep.subr.mxu0 0.0
  %1561 = vmatpush2.msra.mxu0 0.0
  %1562 = vmatprep.subr.mxu0 0.0
  %1563 = vmatpush2.msra.mxu0 0.0
  %1564 = vmatprep.subr.mxu0 0.0
  %1565 = vmatpush2.msra.mxu0 0.0
  %1566 = vmatprep.subr.mxu0 0.0
  %1567 = vmatpush2.msra.mxu0 0.0
  %1568 = vmatprep.subr.mxu0 0.0
  %1569 = vmatpush2.msra.mxu0 0.0
  %1570 = vmatprep.subr.mxu0 0.0
  %1571 = vmatpush2.msra.mxu0 0.0
  %1572 = vmatprep.subr.mxu0 0.0
  %1573 = vmatpush2.msra.mxu0 0.0
  %1574 = vmatprep.subr.mxu0 0.0
  %1575 = vmatpush2.msra.mxu0 0.0
  %1576 = vmatprep.subr.mxu0 0.0
  %1577 = vmatpush2.msra.mxu0 0.0
  %1578 = vmatprep.subr.mxu0 0.0
  %1579 = vmatpush2.msra.mxu0 0.0
  %1580 = vmatprep.mubr.f32.mxu0 0.0
  %1581 = vmatmul.mubr.f32.gmra.mxu0 %v1037
  %v1582 = vpop.f32.mrf.mxu0
  %v1583 = vadd.f32 %v1433, %v1582
  %v1584 = vpop.f32.mrf.mxu0
  %1585 = vmatprep.mubr.f32.mxu0 0.0
  %1586 = vmatmul.mubr.f32.gmra.mxu0 %v1040
  %v1587 = vpop.f32.mrf.mxu0
  %v1588 = vadd.f32 %v1438, %v1587
  %v1589 = vpop.f32.mrf.mxu0
  %1590 = vdwg.mxu0
  %vm1591 = vcmask 64512
  %1592 = vst.msk [vmem:[%s12] sm:$0xff] %vm1591, %v1287
  %1593 = vst.msk [vmem:[%s12 + $0x8] sm:$0xff] %vm1591, %v1288
  %1594 = vst.msk [vmem:[%s12 + $0x10] sm:$0xff] %vm1591, %v1289
  %1595 = vst.msk [vmem:[%s12 + $0x18] sm:$0xff] %vm1591, %v1290
  %1596 = vst.msk [vmem:[%s13] sm:$0xff] %vm1591, %v1508
  %1597 = vst.msk [vmem:[%s13 + $0x8] sm:$0xff] %vm1591, %v1513
  %1598 = vst.msk [vmem:[%s13 + $0x10] sm:$0xff] %vm1591, %v1583
  %1599 = vst.msk [vmem:[%s13 + $0x18] sm:$0xff] %vm1591, %v1588
  %1600 = vmatprep.subr.mxu0 0.0
  %1601 = vmatpush1.msra.mxu0 0.0
  %1602 = vmatprep.subr.mxu0 0.0
  %1603 = vmatpush1.msra.mxu0 0.0
  %1604 = vmatprep.subr.mxu0 0.0
  %1605 = vmatpush1.msra.mxu0 0.0
  %1606 = vmatprep.subr.mxu0 0.0
  %1607 = vmatpush1.msra.mxu0 0.0
  %1608 = vmatprep.subr.mxu0 0.0
  %1609 = vmatpush1.msra.mxu0 0.0
  %1610 = vmatprep.subr.mxu0 0.0
  %1611 = vmatpush1.msra.mxu0 0.0
  %1612 = vmatprep.subr.mxu0 0.0
  %1613 = vmatpush1.msra.mxu0 0.0
  %1614 = vmatprep.subr.mxu0 0.0
  %1615 = vmatpush1.msra.mxu0 0.0
  %1616 = vmatprep.subr.mxu0 0.0
  %1617 = vmatpush1.msra.mxu0 0.0
  %1618 = vmatprep.subr.mxu0 0.0
  %1619 = vmatpush1.msra.mxu0 0.0
  %1620 = vmatprep.subr.mxu0 0.0
  %1621 = vmatpush1.msra.mxu0 0.0
  %1622 = vmatprep.subr.mxu0 0.0
  %1623 = vmatpush1.msra.mxu0 0.0
  %1624 = vmatprep.subr.mxu0 0.0
  %1625 = vmatpush1.msra.mxu0 0.0
  %1626 = vmatprep.subr.mxu0 0.0
  %1627 = vmatpush1.msra.mxu0 0.0
  %1628 = vmatprep.subr.mxu0 0.0
  %1629 = vmatpush1.msra.mxu0 %v1288
  %1630 = vmatprep.subr.mxu0 0.0
  %1631 = vmatpush1.msra.mxu0 %v1287
  %1632 = vmatprep.subr.mxu0 0.0
  %1633 = vmatpush2.msra.mxu0 0.0
  %1634 = vmatprep.subr.mxu0 0.0
  %1635 = vmatpush2.msra.mxu0 0.0
  %1636 = vmatprep.subr.mxu0 0.0
  %1637 = vmatpush2.msra.mxu0 0.0
  %1638 = vmatprep.subr.mxu0 0.0
  %1639 = vmatpush2.msra.mxu0 0.0
  %1640 = vmatprep.subr.mxu0 0.0
  %1641 = vmatpush2.msra.mxu0 0.0
  %1642 = vmatprep.subr.mxu0 0.0
  %1643 = vmatpush2.msra.mxu0 0.0
  %1644 = vmatprep.subr.mxu0 0.0
  %1645 = vmatpush2.msra.mxu0 0.0
  %1646 = vmatprep.subr.mxu0 0.0
  %1647 = vmatpush2.msra.mxu0 0.0
  %1648 = vmatprep.subr.mxu0 0.0
  %1649 = vmatpush2.msra.mxu0 0.0
  %1650 = vmatprep.subr.mxu0 0.0
  %1651 = vmatpush2.msra.mxu0 0.0
  %1652 = vmatprep.subr.mxu0 0.0
  %1653 = vmatpush2.msra.mxu0 0.0
  %1654 = vmatprep.subr.mxu0 0.0
  %1655 = vmatpush2.msra.mxu0 0.0
  %1656 = vmatprep.subr.mxu0 0.0
  %1657 = vmatpush2.msra.mxu0 0.0
  %1658 = vmatprep.subr.mxu0 0.0
  %1659 = vmatpush2.msra.mxu0 0.0
  %1660 = vmatprep.subr.mxu0 0.0
  %1661 = vmatpush2.msra.mxu0 0.0
  %1662 = vmatprep.subr.mxu0 0.0
  %1663 = vmatpush2.msra.mxu0 0.0
  %1664 = vmatprep.mubr.f32.mxu0 0.0
  %1665 = vmatmul.mubr.f32.gmra.mxu0 %v328
  %v1666 = vpop.f32.mrf.mxu0
  %v1667 = vadd.f32 0.0, %v1666
  %v1668 = vpop.f32.mrf.mxu0
  %1669 = vmatprep.mubr.f32.mxu0 0.0
  %1670 = vmatmul.mubr.f32.gmra.mxu0 %v331
  %v1671 = vpop.f32.mrf.mxu0
  %v1672 = vadd.f32 0.0, %v1671
  %v1673 = vpop.f32.mrf.mxu0
  %1674 = vdwg.mxu0
  %1675 = vmatprep.subr.mxu0 0.0
  %1676 = vmatpush1.msra.mxu0 0.0
  %1677 = vmatprep.subr.mxu0 0.0
  %1678 = vmatpush1.msra.mxu0 0.0
  %1679 = vmatprep.subr.mxu0 0.0
  %1680 = vmatpush1.msra.mxu0 0.0
  %1681 = vmatprep.subr.mxu0 0.0
  %1682 = vmatpush1.msra.mxu0 0.0
  %1683 = vmatprep.subr.mxu0 0.0
  %1684 = vmatpush1.msra.mxu0 0.0
  %1685 = vmatprep.subr.mxu0 0.0
  %1686 = vmatpush1.msra.mxu0 0.0
  %1687 = vmatprep.subr.mxu0 0.0
  %1688 = vmatpush1.msra.mxu0 0.0
  %1689 = vmatprep.subr.mxu0 0.0
  %1690 = vmatpush1.msra.mxu0 0.0
  %1691 = vmatprep.subr.mxu0 0.0
  %1692 = vmatpush1.msra.mxu0 0.0
  %1693 = vmatprep.subr.mxu0 0.0
  %1694 = vmatpush1.msra.mxu0 0.0
  %1695 = vmatprep.subr.mxu0 0.0
  %1696 = vmatpush1.msra.mxu0 0.0
  %1697 = vmatprep.subr.mxu0 0.0
  %1698 = vmatpush1.msra.mxu0 0.0
  %1699 = vmatprep.subr.mxu0 0.0
  %1700 = vmatpush1.msra.mxu0 0.0
  %1701 = vmatprep.subr.mxu0 0.0
  %1702 = vmatpush1.msra.mxu0 0.0
  %1703 = vmatprep.subr.mxu0 0.0
  %1704 = vmatpush1.msra.mxu0 %v1290
  %1705 = vmatprep.subr.mxu0 0.0
  %1706 = vmatpush1.msra.mxu0 %v1289
  %1707 = vmatprep.subr.mxu0 0.0
  %1708 = vmatpush2.msra.mxu0 0.0
  %1709 = vmatprep.subr.mxu0 0.0
  %1710 = vmatpush2.msra.mxu0 0.0
  %1711 = vmatprep.subr.mxu0 0.0
  %1712 = vmatpush2.msra.mxu0 0.0
  %1713 = vmatprep.subr.mxu0 0.0
  %1714 = vmatpush2.msra.mxu0 0.0
  %1715 = vmatprep.subr.mxu0 0.0
  %1716 = vmatpush2.msra.mxu0 0.0
  %1717 = vmatprep.subr.mxu0 0.0
  %1718 = vmatpush2.msra.mxu0 0.0
  %1719 = vmatprep.subr.mxu0 0.0
  %1720 = vmatpush2.msra.mxu0 0.0
  %1721 = vmatprep.subr.mxu0 0.0
  %1722 = vmatpush2.msra.mxu0 0.0
  %1723 = vmatprep.subr.mxu0 0.0
  %1724 = vmatpush2.msra.mxu0 0.0
  %1725 = vmatprep.subr.mxu0 0.0
  %1726 = vmatpush2.msra.mxu0 0.0
  %1727 = vmatprep.subr.mxu0 0.0
  %1728 = vmatpush2.msra.mxu0 0.0
  %1729 = vmatprep.subr.mxu0 0.0
  %1730 = vmatpush2.msra.mxu0 0.0
  %1731 = vmatprep.subr.mxu0 0.0
  %1732 = vmatpush2.msra.mxu0 0.0
  %1733 = vmatprep.subr.mxu0 0.0
  %1734 = vmatpush2.msra.mxu0 0.0
  %1735 = vmatprep.subr.mxu0 0.0
  %1736 = vmatpush2.msra.mxu0 0.0
  %1737 = vmatprep.subr.mxu0 0.0
  %1738 = vmatpush2.msra.mxu0 0.0
  %1739 = vmatprep.mubr.f32.mxu0 0.0
  %1740 = vmatmul.mubr.f32.gmra.mxu0 %v409
  %v1741 = vpop.f32.mrf.mxu0
  %v1742 = vadd.f32 0.0, %v1741
  %v1743 = vpop.f32.mrf.mxu0
  %1744 = vmatprep.mubr.f32.mxu0 0.0
  %1745 = vmatmul.mubr.f32.gmra.mxu0 %v412
  %v1746 = vpop.f32.mrf.mxu0
  %v1747 = vadd.f32 0.0, %v1746
  %v1748 = vpop.f32.mrf.mxu0
  %1749 = vdwg.mxu0
  %1750 = vmatprep.subr.mxu0 0.0
  %1751 = vmatpush1.msra.mxu0 0.0
  %1752 = vmatprep.subr.mxu0 0.0
  %1753 = vmatpush1.msra.mxu0 0.0
  %1754 = vmatprep.subr.mxu0 0.0
  %1755 = vmatpush1.msra.mxu0 0.0
  %1756 = vmatprep.subr.mxu0 0.0
  %1757 = vmatpush1.msra.mxu0 0.0
  %1758 = vmatprep.subr.mxu0 0.0
  %1759 = vmatpush1.msra.mxu0 0.0
  %1760 = vmatprep.subr.mxu0 0.0
  %1761 = vmatpush1.msra.mxu0 0.0
  %1762 = vmatprep.subr.mxu0 0.0
  %1763 = vmatpush1.msra.mxu0 0.0
  %1764 = vmatprep.subr.mxu0 0.0
  %1765 = vmatpush1.msra.mxu0 0.0
  %1766 = vmatprep.subr.mxu0 0.0
  %1767 = vmatpush1.msra.mxu0 0.0
  %1768 = vmatprep.subr.mxu0 0.0
  %1769 = vmatpush1.msra.mxu0 0.0
  %1770 = vmatprep.subr.mxu0 0.0
  %1771 = vmatpush1.msra.mxu0 0.0
  %1772 = vmatprep.subr.mxu0 0.0
  %1773 = vmatpush1.msra.mxu0 0.0
  %1774 = vmatprep.subr.mxu0 0.0
  %1775 = vmatpush1.msra.mxu0 0.0
  %1776 = vmatprep.subr.mxu0 0.0
  %1777 = vmatpush1.msra.mxu0 0.0
  %1778 = vmatprep.subr.mxu0 0.0
  %1779 = vmatpush1.msra.mxu0 %v1513
  %1780 = vmatprep.subr.mxu0 0.0
  %1781 = vmatpush1.msra.mxu0 %v1508
  %1782 = vmatprep.subr.mxu0 0.0
  %1783 = vmatpush2.msra.mxu0 0.0
  %1784 = vmatprep.subr.mxu0 0.0
  %1785 = vmatpush2.msra.mxu0 0.0
  %1786 = vmatprep.subr.mxu0 0.0
  %1787 = vmatpush2.msra.mxu0 0.0
  %1788 = vmatprep.subr.mxu0 0.0
  %1789 = vmatpush2.msra.mxu0 0.0
  %1790 = vmatprep.subr.mxu0 0.0
  %1791 = vmatpush2.msra.mxu0 0.0
  %1792 = vmatprep.subr.mxu0 0.0
  %1793 = vmatpush2.msra.mxu0 0.0
  %1794 = vmatprep.subr.mxu0 0.0
  %1795 = vmatpush2.msra.mxu0 0.0
  %1796 = vmatprep.subr.mxu0 0.0
  %1797 = vmatpush2.msra.mxu0 0.0
  %1798 = vmatprep.subr.mxu0 0.0
  %1799 = vmatpush2.msra.mxu0 0.0
  %1800 = vmatprep.subr.mxu0 0.0
  %1801 = vmatpush2.msra.mxu0 0.0
  %1802 = vmatprep.subr.mxu0 0.0
  %1803 = vmatpush2.msra.mxu0 0.0
  %1804 = vmatprep.subr.mxu0 0.0
  %1805 = vmatpush2.msra.mxu0 0.0
  %1806 = vmatprep.subr.mxu0 0.0
  %1807 = vmatpush2.msra.mxu0 0.0
  %1808 = vmatprep.subr.mxu0 0.0
  %1809 = vmatpush2.msra.mxu0 0.0
  %1810 = vmatprep.subr.mxu0 0.0
  %1811 = vmatpush2.msra.mxu0 0.0
  %1812 = vmatprep.subr.mxu0 0.0
  %1813 = vmatpush2.msra.mxu0 0.0
  %1814 = vmatprep.mubr.f32.mxu0 0.0
  %1815 = vmatmul.mubr.f32.gmra.mxu0 %v490
  %v1816 = vpop.f32.mrf.mxu0
  %v1817 = vadd.f32 0.0, %v1816
  %v1818 = vpop.f32.mrf.mxu0
  %1819 = vmatprep.mubr.f32.mxu0 0.0
  %1820 = vmatmul.mubr.f32.gmra.mxu0 %v493
  %v1821 = vpop.f32.mrf.mxu0
  %v1822 = vadd.f32 0.0, %v1821
  %v1823 = vpop.f32.mrf.mxu0
  %1824 = vdwg.mxu0
  %1825 = vmatprep.subr.mxu0 0.0
  %1826 = vmatpush1.msra.mxu0 0.0
  %1827 = vmatprep.subr.mxu0 0.0
  %1828 = vmatpush1.msra.mxu0 0.0
  %1829 = vmatprep.subr.mxu0 0.0
  %1830 = vmatpush1.msra.mxu0 0.0
  %1831 = vmatprep.subr.mxu0 0.0
  %1832 = vmatpush1.msra.mxu0 0.0
  %1833 = vmatprep.subr.mxu0 0.0
  %1834 = vmatpush1.msra.mxu0 0.0
  %1835 = vmatprep.subr.mxu0 0.0
  %1836 = vmatpush1.msra.mxu0 0.0
  %1837 = vmatprep.subr.mxu0 0.0
  %1838 = vmatpush1.msra.mxu0 0.0
  %1839 = vmatprep.subr.mxu0 0.0
  %1840 = vmatpush1.msra.mxu0 0.0
  %1841 = vmatprep.subr.mxu0 0.0
  %1842 = vmatpush1.msra.mxu0 0.0
  %1843 = vmatprep.subr.mxu0 0.0
  %1844 = vmatpush1.msra.mxu0 0.0
  %1845 = vmatprep.subr.mxu0 0.0
  %1846 = vmatpush1.msra.mxu0 0.0
  %1847 = vmatprep.subr.mxu0 0.0
  %1848 = vmatpush1.msra.mxu0 0.0
  %1849 = vmatprep.subr.mxu0 0.0
  %1850 = vmatpush1.msra.mxu0 0.0
  %1851 = vmatprep.subr.mxu0 0.0
  %1852 = vmatpush1.msra.mxu0 0.0
  %1853 = vmatprep.subr.mxu0 0.0
  %1854 = vmatpush1.msra.mxu0 %v1588
  %1855 = vmatprep.subr.mxu0 0.0
  %1856 = vmatpush1.msra.mxu0 %v1583
  %1857 = vmatprep.subr.mxu0 0.0
  %1858 = vmatpush2.msra.mxu0 0.0
  %1859 = vmatprep.subr.mxu0 0.0
  %1860 = vmatpush2.msra.mxu0 0.0
  %1861 = vmatprep.subr.mxu0 0.0
  %1862 = vmatpush2.msra.mxu0 0.0
  %1863 = vmatprep.subr.mxu0 0.0
  %1864 = vmatpush2.msra.mxu0 0.0
  %1865 = vmatprep.subr.mxu0 0.0
  %1866 = vmatpush2.msra.mxu0 0.0
  %1867 = vmatprep.subr.mxu0 0.0
  %1868 = vmatpush2.msra.mxu0 0.0
  %1869 = vmatprep.subr.mxu0 0.0
  %1870 = vmatpush2.msra.mxu0 0.0
  %1871 = vmatprep.subr.mxu0 0.0
  %1872 = vmatpush2.msra.mxu0 0.0
  %1873 = vmatprep.subr.mxu0 0.0
  %1874 = vmatpush2.msra.mxu0 0.0
  %1875 = vmatprep.subr.mxu0 0.0
  %1876 = vmatpush2.msra.mxu0 0.0
  %1877 = vmatprep.subr.mxu0 0.0
  %1878 = vmatpush2.msra.mxu0 0.0
  %1879 = vmatprep.subr.mxu0 0.0
  %1880 = vmatpush2.msra.mxu0 0.0
  %1881 = vmatprep.subr.mxu0 0.0
  %1882 = vmatpush2.msra.mxu0 0.0
  %1883 = vmatprep.subr.mxu0 0.0
  %1884 = vmatpush2.msra.mxu0 0.0
  %1885 = vmatprep.subr.mxu0 0.0
  %1886 = vmatpush2.msra.mxu0 0.0
  %1887 = vmatprep.subr.mxu0 0.0
  %1888 = vmatpush2.msra.mxu0 0.0
  %1889 = vmatprep.mubr.f32.mxu0 0.0
  %1890 = vmatmul.mubr.f32.gmra.mxu0 %v571
  %v1891 = vpop.f32.mrf.mxu0
  %v1892 = vadd.f32 0.0, %v1891
  %v1893 = vpop.f32.mrf.mxu0
  %1894 = vmatprep.mubr.f32.mxu0 0.0
  %1895 = vmatmul.mubr.f32.gmra.mxu0 %v574
  %v1896 = vpop.f32.mrf.mxu0
  %v1897 = vadd.f32 0.0, %v1896
  %v1898 = vpop.f32.mrf.mxu0
  %1899 = vdwg.mxu0
  %v1900 = vsub.f32 %v1667, %v1817
  %v1901 = vsub.f32 %v1672, %v1822
  %v1902 = vsub.f32 %v1742, %v1892
  %v1903 = vsub.f32 %v1747, %v1897
  %1904 = vmatprep.subr.mxu0 0.0
  %1905 = vmatpush1.msra.mxu0 0.0
  %1906 = vmatprep.subr.mxu0 0.0
  %1907 = vmatpush1.msra.mxu0 0.0
  %1908 = vmatprep.subr.mxu0 0.0
  %1909 = vmatpush1.msra.mxu0 0.0
  %1910 = vmatprep.subr.mxu0 0.0
  %1911 = vmatpush1.msra.mxu0 0.0
  %1912 = vmatprep.subr.mxu0 0.0
  %1913 = vmatpush1.msra.mxu0 0.0
  %1914 = vmatprep.subr.mxu0 0.0
  %1915 = vmatpush1.msra.mxu0 0.0
  %1916 = vmatprep.subr.mxu0 0.0
  %1917 = vmatpush1.msra.mxu0 0.0
  %1918 = vmatprep.subr.mxu0 0.0
  %1919 = vmatpush1.msra.mxu0 0.0
  %1920 = vmatprep.subr.mxu0 0.0
  %1921 = vmatpush1.msra.mxu0 0.0
  %1922 = vmatprep.subr.mxu0 0.0
  %1923 = vmatpush1.msra.mxu0 0.0
  %1924 = vmatprep.subr.mxu0 0.0
  %1925 = vmatpush1.msra.mxu0 0.0
  %1926 = vmatprep.subr.mxu0 0.0
  %1927 = vmatpush1.msra.mxu0 0.0
  %1928 = vmatprep.subr.mxu0 0.0
  %1929 = vmatpush1.msra.mxu0 0.0
  %1930 = vmatprep.subr.mxu0 0.0
  %1931 = vmatpush1.msra.mxu0 0.0
  %1932 = vmatprep.subr.mxu0 0.0
  %1933 = vmatpush1.msra.mxu0 %v1288
  %1934 = vmatprep.subr.mxu0 0.0
  %1935 = vmatpush1.msra.mxu0 %v1287
  %1936 = vmatprep.subr.mxu0 0.0
  %1937 = vmatpush2.msra.mxu0 0.0
  %1938 = vmatprep.subr.mxu0 0.0
  %1939 = vmatpush2.msra.mxu0 0.0
  %1940 = vmatprep.subr.mxu0 0.0
  %1941 = vmatpush2.msra.mxu0 0.0
  %1942 = vmatprep.subr.mxu0 0.0
  %1943 = vmatpush2.msra.mxu0 0.0
  %1944 = vmatprep.subr.mxu0 0.0
  %1945 = vmatpush2.msra.mxu0 0.0
  %1946 = vmatprep.subr.mxu0 0.0
  %1947 = vmatpush2.msra.mxu0 0.0
  %1948 = vmatprep.subr.mxu0 0.0
  %1949 = vmatpush2.msra.mxu0 0.0
  %1950 = vmatprep.subr.mxu0 0.0
  %1951 = vmatpush2.msra.mxu0 0.0
  %1952 = vmatprep.subr.mxu0 0.0
  %1953 = vmatpush2.msra.mxu0 0.0
  %1954 = vmatprep.subr.mxu0 0.0
  %1955 = vmatpush2.msra.mxu0 0.0
  %1956 = vmatprep.subr.mxu0 0.0
  %1957 = vmatpush2.msra.mxu0 0.0
  %1958 = vmatprep.subr.mxu0 0.0
  %1959 = vmatpush2.msra.mxu0 0.0
  %1960 = vmatprep.subr.mxu0 0.0
  %1961 = vmatpush2.msra.mxu0 0.0
  %1962 = vmatprep.subr.mxu0 0.0
  %1963 = vmatpush2.msra.mxu0 0.0
  %1964 = vmatprep.subr.mxu0 0.0
  %1965 = vmatpush2.msra.mxu0 0.0
  %1966 = vmatprep.subr.mxu0 0.0
  %1967 = vmatpush2.msra.mxu0 0.0
  %1968 = vmatprep.mubr.f32.mxu0 0.0
  %1969 = vmatmul.mubr.f32.gmra.mxu0 %v490
  %v1970 = vpop.f32.mrf.mxu0
  %v1971 = vadd.f32 0.0, %v1970
  %v1972 = vpop.f32.mrf.mxu0
  %1973 = vmatprep.mubr.f32.mxu0 0.0
  %1974 = vmatmul.mubr.f32.gmra.mxu0 %v493
  %v1975 = vpop.f32.mrf.mxu0
  %v1976 = vadd.f32 0.0, %v1975
  %v1977 = vpop.f32.mrf.mxu0
  %1978 = vdwg.mxu0
  %1979 = vmatprep.subr.mxu0 0.0
  %1980 = vmatpush1.msra.mxu0 0.0
  %1981 = vmatprep.subr.mxu0 0.0
  %1982 = vmatpush1.msra.mxu0 0.0
  %1983 = vmatprep.subr.mxu0 0.0
  %1984 = vmatpush1.msra.mxu0 0.0
  %1985 = vmatprep.subr.mxu0 0.0
  %1986 = vmatpush1.msra.mxu0 0.0
  %1987 = vmatprep.subr.mxu0 0.0
  %1988 = vmatpush1.msra.mxu0 0.0
  %1989 = vmatprep.subr.mxu0 0.0
  %1990 = vmatpush1.msra.mxu0 0.0
  %1991 = vmatprep.subr.mxu0 0.0
  %1992 = vmatpush1.msra.mxu0 0.0
  %1993 = vmatprep.subr.mxu0 0.0
  %1994 = vmatpush1.msra.mxu0 0.0
  %1995 = vmatprep.subr.mxu0 0.0
  %1996 = vmatpush1.msra.mxu0 0.0
  %1997 = vmatprep.subr.mxu0 0.0
  %1998 = vmatpush1.msra.mxu0 0.0
  %1999 = vmatprep.subr.mxu0 0.0
  %2000 = vmatpush1.msra.mxu0 0.0
  %2001 = vmatprep.subr.mxu0 0.0
  %2002 = vmatpush1.msra.mxu0 0.0
  %2003 = vmatprep.subr.mxu0 0.0
  %2004 = vmatpush1.msra.mxu0 0.0
  %2005 = vmatprep.subr.mxu0 0.0
  %2006 = vmatpush1.msra.mxu0 0.0
  %2007 = vmatprep.subr.mxu0 0.0
  %2008 = vmatpush1.msra.mxu0 %v1290
  %2009 = vmatprep.subr.mxu0 0.0
  %2010 = vmatpush1.msra.mxu0 %v1289
  %2011 = vmatprep.subr.mxu0 0.0
  %2012 = vmatpush2.msra.mxu0 0.0
  %2013 = vmatprep.subr.mxu0 0.0
  %2014 = vmatpush2.msra.mxu0 0.0
  %2015 = vmatprep.subr.mxu0 0.0
  %2016 = vmatpush2.msra.mxu0 0.0
  %2017 = vmatprep.subr.mxu0 0.0
  %2018 = vmatpush2.msra.mxu0 0.0
  %2019 = vmatprep.subr.mxu0 0.0
  %2020 = vmatpush2.msra.mxu0 0.0
  %2021 = vmatprep.subr.mxu0 0.0
  %2022 = vmatpush2.msra.mxu0 0.0
  %2023 = vmatprep.subr.mxu0 0.0
  %2024 = vmatpush2.msra.mxu0 0.0
  %2025 = vmatprep.subr.mxu0 0.0
  %2026 = vmatpush2.msra.mxu0 0.0
  %2027 = vmatprep.subr.mxu0 0.0
  %2028 = vmatpush2.msra.mxu0 0.0
  %2029 = vmatprep.subr.mxu0 0.0
  %2030 = vmatpush2.msra.mxu0 0.0
  %2031 = vmatprep.subr.mxu0 0.0
  %2032 = vmatpush2.msra.mxu0 0.0
  %2033 = vmatprep.subr.mxu0 0.0
  %2034 = vmatpush2.msra.mxu0 0.0
  %2035 = vmatprep.subr.mxu0 0.0
  %2036 = vmatpush2.msra.mxu0 0.0
  %2037 = vmatprep.subr.mxu0 0.0
  %2038 = vmatpush2.msra.mxu0 0.0
  %2039 = vmatprep.subr.mxu0 0.0
  %2040 = vmatpush2.msra.mxu0 0.0
  %2041 = vmatprep.subr.mxu0 0.0
  %2042 = vmatpush2.msra.mxu0 0.0
  %2043 = vmatprep.mubr.f32.mxu0 0.0
  %2044 = vmatmul.mubr.f32.gmra.mxu0 %v571
  %v2045 = vpop.f32.mrf.mxu0
  %v2046 = vadd.f32 0.0, %v2045
  %v2047 = vpop.f32.mrf.mxu0
  %2048 = vmatprep.mubr.f32.mxu0 0.0
  %2049 = vmatmul.mubr.f32.gmra.mxu0 %v574
  %v2050 = vpop.f32.mrf.mxu0
  %v2051 = vadd.f32 0.0, %v2050
  %v2052 = vpop.f32.mrf.mxu0
  %2053 = vdwg.mxu0
  %2054 = vmatprep.subr.mxu0 0.0
  %2055 = vmatpush1.msra.mxu0 0.0
  %2056 = vmatprep.subr.mxu0 0.0
  %2057 = vmatpush1.msra.mxu0 0.0
  %2058 = vmatprep.subr.mxu0 0.0
  %2059 = vmatpush1.msra.mxu0 0.0
  %2060 = vmatprep.subr.mxu0 0.0
  %2061 = vmatpush1.msra.mxu0 0.0
  %2062 = vmatprep.subr.mxu0 0.0
  %2063 = vmatpush1.msra.mxu0 0.0
  %2064 = vmatprep.subr.mxu0 0.0
  %2065 = vmatpush1.msra.mxu0 0.0
  %2066 = vmatprep.subr.mxu0 0.0
  %2067 = vmatpush1.msra.mxu0 0.0
  %2068 = vmatprep.subr.mxu0 0.0
  %2069 = vmatpush1.msra.mxu0 0.0
  %2070 = vmatprep.subr.mxu0 0.0
  %2071 = vmatpush1.msra.mxu0 0.0
  %2072 = vmatprep.subr.mxu0 0.0
  %2073 = vmatpush1.msra.mxu0 0.0
  %2074 = vmatprep.subr.mxu0 0.0
  %2075 = vmatpush1.msra.mxu0 0.0
  %2076 = vmatprep.subr.mxu0 0.0
  %2077 = vmatpush1.msra.mxu0 0.0
  %2078 = vmatprep.subr.mxu0 0.0
  %2079 = vmatpush1.msra.mxu0 0.0
  %2080 = vmatprep.subr.mxu0 0.0
  %2081 = vmatpush1.msra.mxu0 0.0
  %2082 = vmatprep.subr.mxu0 0.0
  %2083 = vmatpush1.msra.mxu0 %v1513
  %2084 = vmatprep.subr.mxu0 0.0
  %2085 = vmatpush1.msra.mxu0 %v1508
  %2086 = vmatprep.subr.mxu0 0.0
  %2087 = vmatpush2.msra.mxu0 0.0
  %2088 = vmatprep.subr.mxu0 0.0
  %2089 = vmatpush2.msra.mxu0 0.0
  %2090 = vmatprep.subr.mxu0 0.0
  %2091 = vmatpush2.msra.mxu0 0.0
  %2092 = vmatprep.subr.mxu0 0.0
  %2093 = vmatpush2.msra.mxu0 0.0
  %2094 = vmatprep.subr.mxu0 0.0
  %2095 = vmatpush2.msra.mxu0 0.0
  %2096 = vmatprep.subr.mxu0 0.0
  %2097 = vmatpush2.msra.mxu0 0.0
  %2098 = vmatprep.subr.mxu0 0.0
  %2099 = vmatpush2.msra.mxu0 0.0
  %2100 = vmatprep.subr.mxu0 0.0
  %2101 = vmatpush2.msra.mxu0 0.0
  %2102 = vmatprep.subr.mxu0 0.0
  %2103 = vmatpush2.msra.mxu0 0.0
  %2104 = vmatprep.subr.mxu0 0.0
  %2105 = vmatpush2.msra.mxu0 0.0
  %2106 = vmatprep.subr.mxu0 0.0
  %2107 = vmatpush2.msra.mxu0 0.0
  %2108 = vmatprep.subr.mxu0 0.0
  %2109 = vmatpush2.msra.mxu0 0.0
  %2110 = vmatprep.subr.mxu0 0.0
  %2111 = vmatpush2.msra.mxu0 0.0
  %2112 = vmatprep.subr.mxu0 0.0
  %2113 = vmatpush2.msra.mxu0 0.0
  %2114 = vmatprep.subr.mxu0 0.0
  %2115 = vmatpush2.msra.mxu0 0.0
  %2116 = vmatprep.subr.mxu0 0.0
  %2117 = vmatpush2.msra.mxu0 0.0
  %2118 = vmatprep.mubr.f32.mxu0 0.0
  %2119 = vmatmul.mubr.f32.gmra.mxu0 %v328
  %v2120 = vpop.f32.mrf.mxu0
  %v2121 = vadd.f32 %v1971, %v2120
  %v2122 = vpop.f32.mrf.mxu0
  %2123 = vmatprep.mubr.f32.mxu0 0.0
  %2124 = vmatmul.mubr.f32.gmra.mxu0 %v331
  %v2125 = vpop.f32.mrf.mxu0
  %v2126 = vadd.f32 %v1976, %v2125
  %v2127 = vpop.f32.mrf.mxu0
  %2128 = vdwg.mxu0
  %2129 = vmatprep.subr.mxu0 0.0
  %2130 = vmatpush1.msra.mxu0 0.0
  %2131 = vmatprep.subr.mxu0 0.0
  %2132 = vmatpush1.msra.mxu0 0.0
  %2133 = vmatprep.subr.mxu0 0.0
  %2134 = vmatpush1.msra.mxu0 0.0
  %2135 = vmatprep.subr.mxu0 0.0
  %2136 = vmatpush1.msra.mxu0 0.0
  %2137 = vmatprep.subr.mxu0 0.0
  %2138 = vmatpush1.msra.mxu0 0.0
  %2139 = vmatprep.subr.mxu0 0.0
  %2140 = vmatpush1.msra.mxu0 0.0
  %2141 = vmatprep.subr.mxu0 0.0
  %2142 = vmatpush1.msra.mxu0 0.0
  %2143 = vmatprep.subr.mxu0 0.0
  %2144 = vmatpush1.msra.mxu0 0.0
  %2145 = vmatprep.subr.mxu0 0.0
  %2146 = vmatpush1.msra.mxu0 0.0
  %2147 = vmatprep.subr.mxu0 0.0
  %2148 = vmatpush1.msra.mxu0 0.0
  %2149 = vmatprep.subr.mxu0 0.0
  %2150 = vmatpush1.msra.mxu0 0.0
  %2151 = vmatprep.subr.mxu0 0.0
  %2152 = vmatpush1.msra.mxu0 0.0
  %2153 = vmatprep.subr.mxu0 0.0
  %2154 = vmatpush1.msra.mxu0 0.0
  %2155 = vmatprep.subr.mxu0 0.0
  %2156 = vmatpush1.msra.mxu0 0.0
  %2157 = vmatprep.subr.mxu0 0.0
  %2158 = vmatpush1.msra.mxu0 %v1588
  %2159 = vmatprep.subr.mxu0 0.0
  %2160 = vmatpush1.msra.mxu0 %v1583
  %2161 = vmatprep.subr.mxu0 0.0
  %2162 = vmatpush2.msra.mxu0 0.0
  %2163 = vmatprep.subr.mxu0 0.0
  %2164 = vmatpush2.msra.mxu0 0.0
  %2165 = vmatprep.subr.mxu0 0.0
  %2166 = vmatpush2.msra.mxu0 0.0
  %2167 = vmatprep.subr.mxu0 0.0
  %2168 = vmatpush2.msra.mxu0 0.0
  %2169 = vmatprep.subr.mxu0 0.0
  %2170 = vmatpush2.msra.mxu0 0.0
  %2171 = vmatprep.subr.mxu0 0.0
  %2172 = vmatpush2.msra.mxu0 0.0
  %2173 = vmatprep.subr.mxu0 0.0
  %2174 = vmatpush2.msra.mxu0 0.0
  %2175 = vmatprep.subr.mxu0 0.0
  %2176 = vmatpush2.msra.mxu0 0.0
  %2177 = vmatprep.subr.mxu0 0.0
  %2178 = vmatpush2.msra.mxu0 0.0
  %2179 = vmatprep.subr.mxu0 0.0
  %2180 = vmatpush2.msra.mxu0 0.0
  %2181 = vmatprep.subr.mxu0 0.0
  %2182 = vmatpush2.msra.mxu0 0.0
  %2183 = vmatprep.subr.mxu0 0.0
  %2184 = vmatpush2.msra.mxu0 0.0
  %2185 = vmatprep.subr.mxu0 0.0
  %2186 = vmatpush2.msra.mxu0 0.0
  %2187 = vmatprep.subr.mxu0 0.0
  %2188 = vmatpush2.msra.mxu0 0.0
  %2189 = vmatprep.subr.mxu0 0.0
  %2190 = vmatpush2.msra.mxu0 0.0
  %2191 = vmatprep.subr.mxu0 0.0
  %2192 = vmatpush2.msra.mxu0 0.0
  %2193 = vmatprep.mubr.f32.mxu0 0.0
  %2194 = vmatmul.mubr.f32.gmra.mxu0 %v409
  %v2195 = vpop.f32.mrf.mxu0
  %v2196 = vadd.f32 %v2046, %v2195
  %v2197 = vpop.f32.mrf.mxu0
  %2198 = vmatprep.mubr.f32.mxu0 0.0
  %2199 = vmatmul.mubr.f32.gmra.mxu0 %v412
  %v2200 = vpop.f32.mrf.mxu0
  %v2201 = vadd.f32 %v2051, %v2200
  %v2202 = vpop.f32.mrf.mxu0
  %2203 = vdwg.mxu0
  %v2205 = vsel %vm326, %v302, 0
  %v2208 = vsel %vm326, %v303, 0
  %2210 = vmatprep.subr.mxu0 0.0
  %2211 = vmatpush1.msra.mxu0 0.0
  %2212 = vmatprep.subr.mxu0 0.0
  %2213 = vmatpush1.msra.mxu0 0.0
  %2214 = vmatprep.subr.mxu0 0.0
  %2215 = vmatpush1.msra.mxu0 0.0
  %2216 = vmatprep.subr.mxu0 0.0
  %2217 = vmatpush1.msra.mxu0 0.0
  %2218 = vmatprep.subr.mxu0 0.0
  %2219 = vmatpush1.msra.mxu0 0.0
  %2220 = vmatprep.subr.mxu0 0.0
  %2221 = vmatpush1.msra.mxu0 0.0
  %2222 = vmatprep.subr.mxu0 0.0
  %2223 = vmatpush1.msra.mxu0 0.0
  %2224 = vmatprep.subr.mxu0 0.0
  %2225 = vmatpush1.msra.mxu0 0.0
  %2226 = vmatprep.subr.mxu0 0.0
  %2227 = vmatpush1.msra.mxu0 0.0
  %2228 = vmatprep.subr.mxu0 0.0
  %2229 = vmatpush1.msra.mxu0 0.0
  %2230 = vmatprep.subr.mxu0 0.0
  %2231 = vmatpush1.msra.mxu0 0.0
  %2232 = vmatprep.subr.mxu0 0.0
  %2233 = vmatpush1.msra.mxu0 0.0
  %2234 = vmatprep.subr.mxu0 0.0
  %2235 = vmatpush1.msra.mxu0 0.0
  %2236 = vmatprep.subr.mxu0 0.0
  %2237 = vmatpush1.msra.mxu0 0.0
  %2238 = vmatprep.subr.mxu0 0.0
  %2239 = vmatpush1.msra.mxu0 %v1901
  %2240 = vmatprep.subr.mxu0 0.0
  %2241 = vmatpush1.msra.mxu0 %v1900
  %2242 = vmatprep.subr.mxu0 0.0
  %2243 = vmatpush2.msra.mxu0 0.0
  %2244 = vmatprep.subr.mxu0 0.0
  %2245 = vmatpush2.msra.mxu0 0.0
  %2246 = vmatprep.subr.mxu0 0.0
  %2247 = vmatpush2.msra.mxu0 0.0
  %2248 = vmatprep.subr.mxu0 0.0
  %2249 = vmatpush2.msra.mxu0 0.0
  %2250 = vmatprep.subr.mxu0 0.0
  %2251 = vmatpush2.msra.mxu0 0.0
  %2252 = vmatprep.subr.mxu0 0.0
  %2253 = vmatpush2.msra.mxu0 0.0
  %2254 = vmatprep.subr.mxu0 0.0
  %2255 = vmatpush2.msra.mxu0 0.0
  %2256 = vmatprep.subr.mxu0 0.0
  %2257 = vmatpush2.msra.mxu0 0.0
  %2258 = vmatprep.subr.mxu0 0.0
  %2259 = vmatpush2.msra.mxu0 0.0
  %2260 = vmatprep.subr.mxu0 0.0
  %2261 = vmatpush2.msra.mxu0 0.0
  %2262 = vmatprep.subr.mxu0 0.0
  %2263 = vmatpush2.msra.mxu0 0.0
  %2264 = vmatprep.subr.mxu0 0.0
  %2265 = vmatpush2.msra.mxu0 0.0
  %2266 = vmatprep.subr.mxu0 0.0
  %2267 = vmatpush2.msra.mxu0 0.0
  %2268 = vmatprep.subr.mxu0 0.0
  %2269 = vmatpush2.msra.mxu0 0.0
  %2270 = vmatprep.subr.mxu0 0.0
  %2271 = vmatpush2.msra.mxu0 0.0
  %2272 = vmatprep.subr.mxu0 0.0
  %2273 = vmatpush2.msra.mxu0 0.0
  %2274 = vmatprep.mubr.f32.mxu0 0.0
  %2275 = vmatmul.mubr.f32.gmra.mxu0 %v2205
  %v2276 = vpop.f32.mrf.mxu0
  %v2277 = vadd.f32 0.0, %v2276
  %v2278 = vpop.f32.mrf.mxu0
  %2279 = vmatprep.mubr.f32.mxu0 0.0
  %2280 = vmatmul.mubr.f32.gmra.mxu0 %v2208
  %v2281 = vpop.f32.mrf.mxu0
  %v2282 = vadd.f32 0.0, %v2281
  %v2283 = vpop.f32.mrf.mxu0
  %2284 = vdwg.mxu0
  %v2286 = vsel %vm326, %v304, 0
  %v2289 = vsel %vm326, %v305, 0
  %2291 = vmatprep.subr.mxu0 0.0
  %2292 = vmatpush1.msra.mxu0 0.0
  %2293 = vmatprep.subr.mxu0 0.0
  %2294 = vmatpush1.msra.mxu0 0.0
  %2295 = vmatprep.subr.mxu0 0.0
  %2296 = vmatpush1.msra.mxu0 0.0
  %2297 = vmatprep.subr.mxu0 0.0
  %2298 = vmatpush1.msra.mxu0 0.0
  %2299 = vmatprep.subr.mxu0 0.0
  %2300 = vmatpush1.msra.mxu0 0.0
  %2301 = vmatprep.subr.mxu0 0.0
  %2302 = vmatpush1.msra.mxu0 0.0
  %2303 = vmatprep.subr.mxu0 0.0
  %2304 = vmatpush1.msra.mxu0 0.0
  %2305 = vmatprep.subr.mxu0 0.0
  %2306 = vmatpush1.msra.mxu0 0.0
  %2307 = vmatprep.subr.mxu0 0.0
  %2308 = vmatpush1.msra.mxu0 0.0
  %2309 = vmatprep.subr.mxu0 0.0
  %2310 = vmatpush1.msra.mxu0 0.0
  %2311 = vmatprep.subr.mxu0 0.0
  %2312 = vmatpush1.msra.mxu0 0.0
  %2313 = vmatprep.subr.mxu0 0.0
  %2314 = vmatpush1.msra.mxu0 0.0
  %2315 = vmatprep.subr.mxu0 0.0
  %2316 = vmatpush1.msra.mxu0 0.0
  %2317 = vmatprep.subr.mxu0 0.0
  %2318 = vmatpush1.msra.mxu0 0.0
  %2319 = vmatprep.subr.mxu0 0.0
  %2320 = vmatpush1.msra.mxu0 %v1903
  %2321 = vmatprep.subr.mxu0 0.0
  %2322 = vmatpush1.msra.mxu0 %v1902
  %2323 = vmatprep.subr.mxu0 0.0
  %2324 = vmatpush2.msra.mxu0 0.0
  %2325 = vmatprep.subr.mxu0 0.0
  %2326 = vmatpush2.msra.mxu0 0.0
  %2327 = vmatprep.subr.mxu0 0.0
  %2328 = vmatpush2.msra.mxu0 0.0
  %2329 = vmatprep.subr.mxu0 0.0
  %2330 = vmatpush2.msra.mxu0 0.0
  %2331 = vmatprep.subr.mxu0 0.0
  %2332 = vmatpush2.msra.mxu0 0.0
  %2333 = vmatprep.subr.mxu0 0.0
  %2334 = vmatpush2.msra.mxu0 0.0
  %2335 = vmatprep.subr.mxu0 0.0
  %2336 = vmatpush2.msra.mxu0 0.0
  %2337 = vmatprep.subr.mxu0 0.0
  %2338 = vmatpush2.msra.mxu0 0.0
  %2339 = vmatprep.subr.mxu0 0.0
  %2340 = vmatpush2.msra.mxu0 0.0
  %2341 = vmatprep.subr.mxu0 0.0
  %2342 = vmatpush2.msra.mxu0 0.0
  %2343 = vmatprep.subr.mxu0 0.0
  %2344 = vmatpush2.msra.mxu0 0.0
  %2345 = vmatprep.subr.mxu0 0.0
  %2346 = vmatpush2.msra.mxu0 0.0
  %2347 = vmatprep.subr.mxu0 0.0
  %2348 = vmatpush2.msra.mxu0 0.0
  %2349 = vmatprep.subr.mxu0 0.0
  %2350 = vmatpush2.msra.mxu0 0.0
  %2351 = vmatprep.subr.mxu0 0.0
  %2352 = vmatpush2.msra.mxu0 0.0
  %2353 = vmatprep.subr.mxu0 0.0
  %2354 = vmatpush2.msra.mxu0 0.0
  %2355 = vmatprep.mubr.f32.mxu0 0.0
  %2356 = vmatmul.mubr.f32.gmra.mxu0 %v2286
  %v2357 = vpop.f32.mrf.mxu0
  %v2358 = vadd.f32 0.0, %v2357
  %v2359 = vpop.f32.mrf.mxu0
  %2360 = vmatprep.mubr.f32.mxu0 0.0
  %2361 = vmatmul.mubr.f32.gmra.mxu0 %v2289
  %v2362 = vpop.f32.mrf.mxu0
  %v2363 = vadd.f32 0.0, %v2362
  %v2364 = vpop.f32.mrf.mxu0
  %2365 = vdwg.mxu0
  %2368 = vrot.lane.b32.xlu0 %v306, 112
  %v2369 = vpop.permute.xlu0 %2368
  %2370 = vrot.lane.b32.xlu0 %v307, 112
  %v2371 = vpop.permute.xlu0 %2370
  %v2372 = vsel %vm326, %v2369, 0
  %v2374 = vsel %vm326, %v2371, 0
  %2376 = vmatprep.subr.mxu0 0.0
  %2377 = vmatpush1.msra.mxu0 0.0
  %2378 = vmatprep.subr.mxu0 0.0
  %2379 = vmatpush1.msra.mxu0 0.0
  %2380 = vmatprep.subr.mxu0 0.0
  %2381 = vmatpush1.msra.mxu0 0.0
  %2382 = vmatprep.subr.mxu0 0.0
  %2383 = vmatpush1.msra.mxu0 0.0
  %2384 = vmatprep.subr.mxu0 0.0
  %2385 = vmatpush1.msra.mxu0 0.0
  %2386 = vmatprep.subr.mxu0 0.0
  %2387 = vmatpush1.msra.mxu0 0.0
  %2388 = vmatprep.subr.mxu0 0.0
  %2389 = vmatpush1.msra.mxu0 0.0
  %2390 = vmatprep.subr.mxu0 0.0
  %2391 = vmatpush1.msra.mxu0 0.0
  %2392 = vmatprep.subr.mxu0 0.0
  %2393 = vmatpush1.msra.mxu0 0.0
  %2394 = vmatprep.subr.mxu0 0.0
  %2395 = vmatpush1.msra.mxu0 0.0
  %2396 = vmatprep.subr.mxu0 0.0
  %2397 = vmatpush1.msra.mxu0 0.0
  %2398 = vmatprep.subr.mxu0 0.0
  %2399 = vmatpush1.msra.mxu0 0.0
  %2400 = vmatprep.subr.mxu0 0.0
  %2401 = vmatpush1.msra.mxu0 0.0
  %2402 = vmatprep.subr.mxu0 0.0
  %2403 = vmatpush1.msra.mxu0 0.0
  %2404 = vmatprep.subr.mxu0 0.0
  %2405 = vmatpush1.msra.mxu0 %v2126
  %2406 = vmatprep.subr.mxu0 0.0
  %2407 = vmatpush1.msra.mxu0 %v2121
  %2408 = vmatprep.subr.mxu0 0.0
  %2409 = vmatpush2.msra.mxu0 0.0
  %2410 = vmatprep.subr.mxu0 0.0
  %2411 = vmatpush2.msra.mxu0 0.0
  %2412 = vmatprep.subr.mxu0 0.0
  %2413 = vmatpush2.msra.mxu0 0.0
  %2414 = vmatprep.subr.mxu0 0.0
  %2415 = vmatpush2.msra.mxu0 0.0
  %2416 = vmatprep.subr.mxu0 0.0
  %2417 = vmatpush2.msra.mxu0 0.0
  %2418 = vmatprep.subr.mxu0 0.0
  %2419 = vmatpush2.msra.mxu0 0.0
  %2420 = vmatprep.subr.mxu0 0.0
  %2421 = vmatpush2.msra.mxu0 0.0
  %2422 = vmatprep.subr.mxu0 0.0
  %2423 = vmatpush2.msra.mxu0 0.0
  %2424 = vmatprep.subr.mxu0 0.0
  %2425 = vmatpush2.msra.mxu0 0.0
  %2426 = vmatprep.subr.mxu0 0.0
  %2427 = vmatpush2.msra.mxu0 0.0
  %2428 = vmatprep.subr.mxu0 0.0
  %2429 = vmatpush2.msra.mxu0 0.0
  %2430 = vmatprep.subr.mxu0 0.0
  %2431 = vmatpush2.msra.mxu0 0.0
  %2432 = vmatprep.subr.mxu0 0.0
  %2433 = vmatpush2.msra.mxu0 0.0
  %2434 = vmatprep.subr.mxu0 0.0
  %2435 = vmatpush2.msra.mxu0 0.0
  %2436 = vmatprep.subr.mxu0 0.0
  %2437 = vmatpush2.msra.mxu0 0.0
  %2438 = vmatprep.subr.mxu0 0.0
  %2439 = vmatpush2.msra.mxu0 0.0
  %2440 = vmatprep.mubr.f32.mxu0 0.0
  %2441 = vmatmul.mubr.f32.gmra.mxu0 %v2372
  %v2442 = vpop.f32.mrf.mxu0
  %v2443 = vadd.f32 0.0, %v2442
  %v2444 = vpop.f32.mrf.mxu0
  %2445 = vmatprep.mubr.f32.mxu0 0.0
  %2446 = vmatmul.mubr.f32.gmra.mxu0 %v2374
  %v2447 = vpop.f32.mrf.mxu0
  %v2448 = vadd.f32 0.0, %v2447
  %v2449 = vpop.f32.mrf.mxu0
  %2450 = vdwg.mxu0
  %2453 = vrot.lane.b32.xlu0 %v308, 112
  %v2454 = vpop.permute.xlu0 %2453
  %2455 = vrot.lane.b32.xlu0 %v309, 112
  %v2456 = vpop.permute.xlu0 %2455
  %v2457 = vsel %vm326, %v2454, 0
  %v2459 = vsel %vm326, %v2456, 0
  %2461 = vmatprep.subr.mxu0 0.0
  %2462 = vmatpush1.msra.mxu0 0.0
  %2463 = vmatprep.subr.mxu0 0.0
  %2464 = vmatpush1.msra.mxu0 0.0
  %2465 = vmatprep.subr.mxu0 0.0
  %2466 = vmatpush1.msra.mxu0 0.0
  %2467 = vmatprep.subr.mxu0 0.0
  %2468 = vmatpush1.msra.mxu0 0.0
  %2469 = vmatprep.subr.mxu0 0.0
  %2470 = vmatpush1.msra.mxu0 0.0
  %2471 = vmatprep.subr.mxu0 0.0
  %2472 = vmatpush1.msra.mxu0 0.0
  %2473 = vmatprep.subr.mxu0 0.0
  %2474 = vmatpush1.msra.mxu0 0.0
  %2475 = vmatprep.subr.mxu0 0.0
  %2476 = vmatpush1.msra.mxu0 0.0
  %2477 = vmatprep.subr.mxu0 0.0
  %2478 = vmatpush1.msra.mxu0 0.0
  %2479 = vmatprep.subr.mxu0 0.0
  %2480 = vmatpush1.msra.mxu0 0.0
  %2481 = vmatprep.subr.mxu0 0.0
  %2482 = vmatpush1.msra.mxu0 0.0
  %2483 = vmatprep.subr.mxu0 0.0
  %2484 = vmatpush1.msra.mxu0 0.0
  %2485 = vmatprep.subr.mxu0 0.0
  %2486 = vmatpush1.msra.mxu0 0.0
  %2487 = vmatprep.subr.mxu0 0.0
  %2488 = vmatpush1.msra.mxu0 0.0
  %2489 = vmatprep.subr.mxu0 0.0
  %2490 = vmatpush1.msra.mxu0 %v2201
  %2491 = vmatprep.subr.mxu0 0.0
  %2492 = vmatpush1.msra.mxu0 %v2196
  %2493 = vmatprep.subr.mxu0 0.0
  %2494 = vmatpush2.msra.mxu0 0.0
  %2495 = vmatprep.subr.mxu0 0.0
  %2496 = vmatpush2.msra.mxu0 0.0
  %2497 = vmatprep.subr.mxu0 0.0
  %2498 = vmatpush2.msra.mxu0 0.0
  %2499 = vmatprep.subr.mxu0 0.0
  %2500 = vmatpush2.msra.mxu0 0.0
  %2501 = vmatprep.subr.mxu0 0.0
  %2502 = vmatpush2.msra.mxu0 0.0
  %2503 = vmatprep.subr.mxu0 0.0
  %2504 = vmatpush2.msra.mxu0 0.0
  %2505 = vmatprep.subr.mxu0 0.0
  %2506 = vmatpush2.msra.mxu0 0.0
  %2507 = vmatprep.subr.mxu0 0.0
  %2508 = vmatpush2.msra.mxu0 0.0
  %2509 = vmatprep.subr.mxu0 0.0
  %2510 = vmatpush2.msra.mxu0 0.0
  %2511 = vmatprep.subr.mxu0 0.0
  %2512 = vmatpush2.msra.mxu0 0.0
  %2513 = vmatprep.subr.mxu0 0.0
  %2514 = vmatpush2.msra.mxu0 0.0
  %2515 = vmatprep.subr.mxu0 0.0
  %2516 = vmatpush2.msra.mxu0 0.0
  %2517 = vmatprep.subr.mxu0 0.0
  %2518 = vmatpush2.msra.mxu0 0.0
  %2519 = vmatprep.subr.mxu0 0.0
  %2520 = vmatpush2.msra.mxu0 0.0
  %2521 = vmatprep.subr.mxu0 0.0
  %2522 = vmatpush2.msra.mxu0 0.0
  %2523 = vmatprep.subr.mxu0 0.0
  %2524 = vmatpush2.msra.mxu0 0.0
  %2525 = vmatprep.mubr.f32.mxu0 0.0
  %2526 = vmatmul.mubr.f32.gmra.mxu0 %v2457
  %v2527 = vpop.f32.mrf.mxu0
  %v2528 = vadd.f32 0.0, %v2527
  %v2529 = vpop.f32.mrf.mxu0
  %2530 = vmatprep.mubr.f32.mxu0 0.0
  %2531 = vmatmul.mubr.f32.gmra.mxu0 %v2459
  %v2532 = vpop.f32.mrf.mxu0
  %v2533 = vadd.f32 0.0, %v2532
  %v2534 = vpop.f32.mrf.mxu0
  %2535 = vdwg.mxu0
  %v2536 = vsub.f32 %v2277, %v2443
  %v2537 = vsub.f32 %v2282, %v2448
  %v2538 = vsub.f32 %v2358, %v2528
  %v2539 = vsub.f32 %v2363, %v2533
  %2540 = vmatprep.subr.mxu0 0.0
  %2541 = vmatpush1.msra.mxu0 0.0
  %2542 = vmatprep.subr.mxu0 0.0
  %2543 = vmatpush1.msra.mxu0 0.0
  %2544 = vmatprep.subr.mxu0 0.0
  %2545 = vmatpush1.msra.mxu0 0.0
  %2546 = vmatprep.subr.mxu0 0.0
  %2547 = vmatpush1.msra.mxu0 0.0
  %2548 = vmatprep.subr.mxu0 0.0
  %2549 = vmatpush1.msra.mxu0 0.0
  %2550 = vmatprep.subr.mxu0 0.0
  %2551 = vmatpush1.msra.mxu0 0.0
  %2552 = vmatprep.subr.mxu0 0.0
  %2553 = vmatpush1.msra.mxu0 0.0
  %2554 = vmatprep.subr.mxu0 0.0
  %2555 = vmatpush1.msra.mxu0 0.0
  %2556 = vmatprep.subr.mxu0 0.0
  %2557 = vmatpush1.msra.mxu0 0.0
  %2558 = vmatprep.subr.mxu0 0.0
  %2559 = vmatpush1.msra.mxu0 0.0
  %2560 = vmatprep.subr.mxu0 0.0
  %2561 = vmatpush1.msra.mxu0 0.0
  %2562 = vmatprep.subr.mxu0 0.0
  %2563 = vmatpush1.msra.mxu0 0.0
  %2564 = vmatprep.subr.mxu0 0.0
  %2565 = vmatpush1.msra.mxu0 0.0
  %2566 = vmatprep.subr.mxu0 0.0
  %2567 = vmatpush1.msra.mxu0 0.0
  %2568 = vmatprep.subr.mxu0 0.0
  %2569 = vmatpush1.msra.mxu0 %v1901
  %2570 = vmatprep.subr.mxu0 0.0
  %2571 = vmatpush1.msra.mxu0 %v1900
  %2572 = vmatprep.subr.mxu0 0.0
  %2573 = vmatpush2.msra.mxu0 0.0
  %2574 = vmatprep.subr.mxu0 0.0
  %2575 = vmatpush2.msra.mxu0 0.0
  %2576 = vmatprep.subr.mxu0 0.0
  %2577 = vmatpush2.msra.mxu0 0.0
  %2578 = vmatprep.subr.mxu0 0.0
  %2579 = vmatpush2.msra.mxu0 0.0
  %2580 = vmatprep.subr.mxu0 0.0
  %2581 = vmatpush2.msra.mxu0 0.0
  %2582 = vmatprep.subr.mxu0 0.0
  %2583 = vmatpush2.msra.mxu0 0.0
  %2584 = vmatprep.subr.mxu0 0.0
  %2585 = vmatpush2.msra.mxu0 0.0
  %2586 = vmatprep.subr.mxu0 0.0
  %2587 = vmatpush2.msra.mxu0 0.0
  %2588 = vmatprep.subr.mxu0 0.0
  %2589 = vmatpush2.msra.mxu0 0.0
  %2590 = vmatprep.subr.mxu0 0.0
  %2591 = vmatpush2.msra.mxu0 0.0
  %2592 = vmatprep.subr.mxu0 0.0
  %2593 = vmatpush2.msra.mxu0 0.0
  %2594 = vmatprep.subr.mxu0 0.0
  %2595 = vmatpush2.msra.mxu0 0.0
  %2596 = vmatprep.subr.mxu0 0.0
  %2597 = vmatpush2.msra.mxu0 0.0
  %2598 = vmatprep.subr.mxu0 0.0
  %2599 = vmatpush2.msra.mxu0 0.0
  %2600 = vmatprep.subr.mxu0 0.0
  %2601 = vmatpush2.msra.mxu0 0.0
  %2602 = vmatprep.subr.mxu0 0.0
  %2603 = vmatpush2.msra.mxu0 0.0
  %2604 = vmatprep.mubr.f32.mxu0 0.0
  %2605 = vmatmul.mubr.f32.gmra.mxu0 %v2372
  %v2606 = vpop.f32.mrf.mxu0
  %v2607 = vadd.f32 0.0, %v2606
  %v2608 = vpop.f32.mrf.mxu0
  %2609 = vmatprep.mubr.f32.mxu0 0.0
  %2610 = vmatmul.mubr.f32.gmra.mxu0 %v2374
  %v2611 = vpop.f32.mrf.mxu0
  %v2612 = vadd.f32 0.0, %v2611
  %v2613 = vpop.f32.mrf.mxu0
  %2614 = vdwg.mxu0
  %2615 = vmatprep.subr.mxu0 0.0
  %2616 = vmatpush1.msra.mxu0 0.0
  %2617 = vmatprep.subr.mxu0 0.0
  %2618 = vmatpush1.msra.mxu0 0.0
  %2619 = vmatprep.subr.mxu0 0.0
  %2620 = vmatpush1.msra.mxu0 0.0
  %2621 = vmatprep.subr.mxu0 0.0
  %2622 = vmatpush1.msra.mxu0 0.0
  %2623 = vmatprep.subr.mxu0 0.0
  %2624 = vmatpush1.msra.mxu0 0.0
  %2625 = vmatprep.subr.mxu0 0.0
  %2626 = vmatpush1.msra.mxu0 0.0
  %2627 = vmatprep.subr.mxu0 0.0
  %2628 = vmatpush1.msra.mxu0 0.0
  %2629 = vmatprep.subr.mxu0 0.0
  %2630 = vmatpush1.msra.mxu0 0.0
  %2631 = vmatprep.subr.mxu0 0.0
  %2632 = vmatpush1.msra.mxu0 0.0
  %2633 = vmatprep.subr.mxu0 0.0
  %2634 = vmatpush1.msra.mxu0 0.0
  %2635 = vmatprep.subr.mxu0 0.0
  %2636 = vmatpush1.msra.mxu0 0.0
  %2637 = vmatprep.subr.mxu0 0.0
  %2638 = vmatpush1.msra.mxu0 0.0
  %2639 = vmatprep.subr.mxu0 0.0
  %2640 = vmatpush1.msra.mxu0 0.0
  %2641 = vmatprep.subr.mxu0 0.0
  %2642 = vmatpush1.msra.mxu0 0.0
  %2643 = vmatprep.subr.mxu0 0.0
  %2644 = vmatpush1.msra.mxu0 %v1903
  %2645 = vmatprep.subr.mxu0 0.0
  %2646 = vmatpush1.msra.mxu0 %v1902
  %2647 = vmatprep.subr.mxu0 0.0
  %2648 = vmatpush2.msra.mxu0 0.0
  %2649 = vmatprep.subr.mxu0 0.0
  %2650 = vmatpush2.msra.mxu0 0.0
  %2651 = vmatprep.subr.mxu0 0.0
  %2652 = vmatpush2.msra.mxu0 0.0
  %2653 = vmatprep.subr.mxu0 0.0
  %2654 = vmatpush2.msra.mxu0 0.0
  %2655 = vmatprep.subr.mxu0 0.0
  %2656 = vmatpush2.msra.mxu0 0.0
  %2657 = vmatprep.subr.mxu0 0.0
  %2658 = vmatpush2.msra.mxu0 0.0
  %2659 = vmatprep.subr.mxu0 0.0
  %2660 = vmatpush2.msra.mxu0 0.0
  %2661 = vmatprep.subr.mxu0 0.0
  %2662 = vmatpush2.msra.mxu0 0.0
  %2663 = vmatprep.subr.mxu0 0.0
  %2664 = vmatpush2.msra.mxu0 0.0
  %2665 = vmatprep.subr.mxu0 0.0
  %2666 = vmatpush2.msra.mxu0 0.0
  %2667 = vmatprep.subr.mxu0 0.0
  %2668 = vmatpush2.msra.mxu0 0.0
  %2669 = vmatprep.subr.mxu0 0.0
  %2670 = vmatpush2.msra.mxu0 0.0
  %2671 = vmatprep.subr.mxu0 0.0
  %2672 = vmatpush2.msra.mxu0 0.0
  %2673 = vmatprep.subr.mxu0 0.0
  %2674 = vmatpush2.msra.mxu0 0.0
  %2675 = vmatprep.subr.mxu0 0.0
  %2676 = vmatpush2.msra.mxu0 0.0
  %2677 = vmatprep.subr.mxu0 0.0
  %2678 = vmatpush2.msra.mxu0 0.0
  %2679 = vmatprep.mubr.f32.mxu0 0.0
  %2680 = vmatmul.mubr.f32.gmra.mxu0 %v2457
  %v2681 = vpop.f32.mrf.mxu0
  %v2682 = vadd.f32 0.0, %v2681
  %v2683 = vpop.f32.mrf.mxu0
  %2684 = vmatprep.mubr.f32.mxu0 0.0
  %2685 = vmatmul.mubr.f32.gmra.mxu0 %v2459
  %v2686 = vpop.f32.mrf.mxu0
  %v2687 = vadd.f32 0.0, %v2686
  %v2688 = vpop.f32.mrf.mxu0
  %2689 = vdwg.mxu0
  %2690 = vmatprep.subr.mxu0 0.0
  %2691 = vmatpush1.msra.mxu0 0.0
  %2692 = vmatprep.subr.mxu0 0.0
  %2693 = vmatpush1.msra.mxu0 0.0
  %2694 = vmatprep.subr.mxu0 0.0
  %2695 = vmatpush1.msra.mxu0 0.0
  %2696 = vmatprep.subr.mxu0 0.0
  %2697 = vmatpush1.msra.mxu0 0.0
  %2698 = vmatprep.subr.mxu0 0.0
  %2699 = vmatpush1.msra.mxu0 0.0
  %2700 = vmatprep.subr.mxu0 0.0
  %2701 = vmatpush1.msra.mxu0 0.0
  %2702 = vmatprep.subr.mxu0 0.0
  %2703 = vmatpush1.msra.mxu0 0.0
  %2704 = vmatprep.subr.mxu0 0.0
  %2705 = vmatpush1.msra.mxu0 0.0
  %2706 = vmatprep.subr.mxu0 0.0
  %2707 = vmatpush1.msra.mxu0 0.0
  %2708 = vmatprep.subr.mxu0 0.0
  %2709 = vmatpush1.msra.mxu0 0.0
  %2710 = vmatprep.subr.mxu0 0.0
  %2711 = vmatpush1.msra.mxu0 0.0
  %2712 = vmatprep.subr.mxu0 0.0
  %2713 = vmatpush1.msra.mxu0 0.0
  %2714 = vmatprep.subr.mxu0 0.0
  %2715 = vmatpush1.msra.mxu0 0.0
  %2716 = vmatprep.subr.mxu0 0.0
  %2717 = vmatpush1.msra.mxu0 0.0
  %2718 = vmatprep.subr.mxu0 0.0
  %2719 = vmatpush1.msra.mxu0 %v2126
  %2720 = vmatprep.subr.mxu0 0.0
  %2721 = vmatpush1.msra.mxu0 %v2121
  %2722 = vmatprep.subr.mxu0 0.0
  %2723 = vmatpush2.msra.mxu0 0.0
  %2724 = vmatprep.subr.mxu0 0.0
  %2725 = vmatpush2.msra.mxu0 0.0
  %2726 = vmatprep.subr.mxu0 0.0
  %2727 = vmatpush2.msra.mxu0 0.0
  %2728 = vmatprep.subr.mxu0 0.0
  %2729 = vmatpush2.msra.mxu0 0.0
  %2730 = vmatprep.subr.mxu0 0.0
  %2731 = vmatpush2.msra.mxu0 0.0
  %2732 = vmatprep.subr.mxu0 0.0
  %2733 = vmatpush2.msra.mxu0 0.0
  %2734 = vmatprep.subr.mxu0 0.0
  %2735 = vmatpush2.msra.mxu0 0.0
  %2736 = vmatprep.subr.mxu0 0.0
  %2737 = vmatpush2.msra.mxu0 0.0
  %2738 = vmatprep.subr.mxu0 0.0
  %2739 = vmatpush2.msra.mxu0 0.0
  %2740 = vmatprep.subr.mxu0 0.0
  %2741 = vmatpush2.msra.mxu0 0.0
  %2742 = vmatprep.subr.mxu0 0.0
  %2743 = vmatpush2.msra.mxu0 0.0
  %2744 = vmatprep.subr.mxu0 0.0
  %2745 = vmatpush2.msra.mxu0 0.0
  %2746 = vmatprep.subr.mxu0 0.0
  %2747 = vmatpush2.msra.mxu0 0.0
  %2748 = vmatprep.subr.mxu0 0.0
  %2749 = vmatpush2.msra.mxu0 0.0
  %2750 = vmatprep.subr.mxu0 0.0
  %2751 = vmatpush2.msra.mxu0 0.0
  %2752 = vmatprep.subr.mxu0 0.0
  %2753 = vmatpush2.msra.mxu0 0.0
  %2754 = vmatprep.mubr.f32.mxu0 0.0
  %2755 = vmatmul.mubr.f32.gmra.mxu0 %v2205
  %v2756 = vpop.f32.mrf.mxu0
  %v2757 = vadd.f32 %v2607, %v2756
  %v2758 = vpop.f32.mrf.mxu0
  %2759 = vmatprep.mubr.f32.mxu0 0.0
  %2760 = vmatmul.mubr.f32.gmra.mxu0 %v2208
  %v2761 = vpop.f32.mrf.mxu0
  %v2762 = vadd.f32 %v2612, %v2761
  %v2763 = vpop.f32.mrf.mxu0
  %2764 = vdwg.mxu0
  %2765 = vmatprep.subr.mxu0 0.0
  %2766 = vmatpush1.msra.mxu0 0.0
  %2767 = vmatprep.subr.mxu0 0.0
  %2768 = vmatpush1.msra.mxu0 0.0
  %2769 = vmatprep.subr.mxu0 0.0
  %2770 = vmatpush1.msra.mxu0 0.0
  %2771 = vmatprep.subr.mxu0 0.0
  %2772 = vmatpush1.msra.mxu0 0.0
  %2773 = vmatprep.subr.mxu0 0.0
  %2774 = vmatpush1.msra.mxu0 0.0
  %2775 = vmatprep.subr.mxu0 0.0
  %2776 = vmatpush1.msra.mxu0 0.0
  %2777 = vmatprep.subr.mxu0 0.0
  %2778 = vmatpush1.msra.mxu0 0.0
  %2779 = vmatprep.subr.mxu0 0.0
  %2780 = vmatpush1.msra.mxu0 0.0
  %2781 = vmatprep.subr.mxu0 0.0
  %2782 = vmatpush1.msra.mxu0 0.0
  %2783 = vmatprep.subr.mxu0 0.0
  %2784 = vmatpush1.msra.mxu0 0.0
  %2785 = vmatprep.subr.mxu0 0.0
  %2786 = vmatpush1.msra.mxu0 0.0
  %2787 = vmatprep.subr.mxu0 0.0
  %2788 = vmatpush1.msra.mxu0 0.0
  %2789 = vmatprep.subr.mxu0 0.0
  %2790 = vmatpush1.msra.mxu0 0.0
  %2791 = vmatprep.subr.mxu0 0.0
  %2792 = vmatpush1.msra.mxu0 0.0
  %2793 = vmatprep.subr.mxu0 0.0
  %2794 = vmatpush1.msra.mxu0 %v2201
  %2795 = vmatprep.subr.mxu0 0.0
  %2796 = vmatpush1.msra.mxu0 %v2196
  %2797 = vmatprep.subr.mxu0 0.0
  %2798 = vmatpush2.msra.mxu0 0.0
  %2799 = vmatprep.subr.mxu0 0.0
  %2800 = vmatpush2.msra.mxu0 0.0
  %2801 = vmatprep.subr.mxu0 0.0
  %2802 = vmatpush2.msra.mxu0 0.0
  %2803 = vmatprep.subr.mxu0 0.0
  %2804 = vmatpush2.msra.mxu0 0.0
  %2805 = vmatprep.subr.mxu0 0.0
  %2806 = vmatpush2.msra.mxu0 0.0
  %2807 = vmatprep.subr.mxu0 0.0
  %2808 = vmatpush2.msra.mxu0 0.0
  %2809 = vmatprep.subr.mxu0 0.0
  %2810 = vmatpush2.msra.mxu0 0.0
  %2811 = vmatprep.subr.mxu0 0.0
  %2812 = vmatpush2.msra.mxu0 0.0
  %2813 = vmatprep.subr.mxu0 0.0
  %2814 = vmatpush2.msra.mxu0 0.0
  %2815 = vmatprep.subr.mxu0 0.0
  %2816 = vmatpush2.msra.mxu0 0.0
  %2817 = vmatprep.subr.mxu0 0.0
  %2818 = vmatpush2.msra.mxu0 0.0
  %2819 = vmatprep.subr.mxu0 0.0
  %2820 = vmatpush2.msra.mxu0 0.0
  %2821 = vmatprep.subr.mxu0 0.0
  %2822 = vmatpush2.msra.mxu0 0.0
  %2823 = vmatprep.subr.mxu0 0.0
  %2824 = vmatpush2.msra.mxu0 0.0
  %2825 = vmatprep.subr.mxu0 0.0
  %2826 = vmatpush2.msra.mxu0 0.0
  %2827 = vmatprep.subr.mxu0 0.0
  %2828 = vmatpush2.msra.mxu0 0.0
  %2829 = vmatprep.mubr.f32.mxu0 0.0
  %2830 = vmatmul.mubr.f32.gmra.mxu0 %v2286
  %v2831 = vpop.f32.mrf.mxu0
  %v2832 = vadd.f32 %v2682, %v2831
  %v2833 = vpop.f32.mrf.mxu0
  %2834 = vmatprep.mubr.f32.mxu0 0.0
  %2835 = vmatmul.mubr.f32.gmra.mxu0 %v2289
  %v2836 = vpop.f32.mrf.mxu0
  %v2837 = vadd.f32 %v2687, %v2836
  %v2838 = vpop.f32.mrf.mxu0
  %2839 = vdwg.mxu0
  %2840 = vst.msk [vmem:[%s14] sm:$0xff] %vm1591, %v2536
  %2841 = vst.msk [vmem:[%s14 + $0x8] sm:$0xff] %vm1591, %v2537
  %2842 = vst.msk [vmem:[%s14 + $0x10] sm:$0xff] %vm1591, %v2538
  %2843 = vst.msk [vmem:[%s14 + $0x18] sm:$0xff] %vm1591, %v2539
  %2844 = vst.msk [vmem:[%s15] sm:$0xff] %vm1591, %v2757
  %2845 = vst.msk [vmem:[%s15 + $0x8] sm:$0xff] %vm1591, %v2762
  %2846 = vst.msk [vmem:[%s15 + $0x10] sm:$0xff] %vm1591, %v2832
  %2847 = vst.msk [vmem:[%s15 + $0x18] sm:$0xff] %vm1591, %v2837
  %2848 = vmatprep.subr.mxu0 0.0
  %2849 = vmatpush1.msra.mxu0 0.0
  %2850 = vmatprep.subr.mxu0 0.0
  %2851 = vmatpush1.msra.mxu0 0.0
  %2852 = vmatprep.subr.mxu0 0.0
  %2853 = vmatpush1.msra.mxu0 0.0
  %2854 = vmatprep.subr.mxu0 0.0
  %2855 = vmatpush1.msra.mxu0 0.0
  %2856 = vmatprep.subr.mxu0 0.0
  %2857 = vmatpush1.msra.mxu0 0.0
  %2858 = vmatprep.subr.mxu0 0.0
  %2859 = vmatpush1.msra.mxu0 0.0
  %2860 = vmatprep.subr.mxu0 0.0
  %2861 = vmatpush1.msra.mxu0 0.0
  %2862 = vmatprep.subr.mxu0 0.0
  %2863 = vmatpush1.msra.mxu0 0.0
  %2864 = vmatprep.subr.mxu0 0.0
  %2865 = vmatpush1.msra.mxu0 0.0
  %2866 = vmatprep.subr.mxu0 0.0
  %2867 = vmatpush1.msra.mxu0 0.0
  %2868 = vmatprep.subr.mxu0 0.0
  %2869 = vmatpush1.msra.mxu0 0.0
  %2870 = vmatprep.subr.mxu0 0.0
  %2871 = vmatpush1.msra.mxu0 0.0
  %2872 = vmatprep.subr.mxu0 0.0
  %2873 = vmatpush1.msra.mxu0 0.0
  %2874 = vmatprep.subr.mxu0 0.0
  %2875 = vmatpush1.msra.mxu0 0.0
  %2876 = vmatprep.subr.mxu0 0.0
  %2877 = vmatpush1.msra.mxu0 %v2537
  %2878 = vmatprep.subr.mxu0 0.0
  %2879 = vmatpush1.msra.mxu0 %v2536
  %2880 = vmatprep.subr.mxu0 0.0
  %2881 = vmatpush2.msra.mxu0 0.0
  %2882 = vmatprep.subr.mxu0 0.0
  %2883 = vmatpush2.msra.mxu0 0.0
  %2884 = vmatprep.subr.mxu0 0.0
  %2885 = vmatpush2.msra.mxu0 0.0
  %2886 = vmatprep.subr.mxu0 0.0
  %2887 = vmatpush2.msra.mxu0 0.0
  %2888 = vmatprep.subr.mxu0 0.0
  %2889 = vmatpush2.msra.mxu0 0.0
  %2890 = vmatprep.subr.mxu0 0.0
  %2891 = vmatpush2.msra.mxu0 0.0
  %2892 = vmatprep.subr.mxu0 0.0
  %2893 = vmatpush2.msra.mxu0 0.0
  %2894 = vmatprep.subr.mxu0 0.0
  %2895 = vmatpush2.msra.mxu0 0.0
  %2896 = vmatprep.subr.mxu0 0.0
  %2897 = vmatpush2.msra.mxu0 0.0
  %2898 = vmatprep.subr.mxu0 0.0
  %2899 = vmatpush2.msra.mxu0 0.0
  %2900 = vmatprep.subr.mxu0 0.0
  %2901 = vmatpush2.msra.mxu0 0.0
  %2902 = vmatprep.subr.mxu0 0.0
  %2903 = vmatpush2.msra.mxu0 0.0
  %2904 = vmatprep.subr.mxu0 0.0
  %2905 = vmatpush2.msra.mxu0 0.0
  %2906 = vmatprep.subr.mxu0 0.0
  %2907 = vmatpush2.msra.mxu0 0.0
  %2908 = vmatprep.subr.mxu0 0.0
  %2909 = vmatpush2.msra.mxu0 0.0
  %2910 = vmatprep.subr.mxu0 0.0
  %2911 = vmatpush2.msra.mxu0 0.0
  %2912 = vmatprep.mubr.f32.mxu0 0.0
  %2913 = vmatmul.mubr.f32.gmra.mxu0 %v328
  %v2914 = vpop.f32.mrf.mxu0
  %v2915 = vadd.f32 0.0, %v2914
  %v2916 = vpop.f32.mrf.mxu0
  %2917 = vmatprep.mubr.f32.mxu0 0.0
  %2918 = vmatmul.mubr.f32.gmra.mxu0 %v331
  %v2919 = vpop.f32.mrf.mxu0
  %v2920 = vadd.f32 0.0, %v2919
  %v2921 = vpop.f32.mrf.mxu0
  %2922 = vdwg.mxu0
  %2923 = vmatprep.subr.mxu0 0.0
  %2924 = vmatpush1.msra.mxu0 0.0
  %2925 = vmatprep.subr.mxu0 0.0
  %2926 = vmatpush1.msra.mxu0 0.0
  %2927 = vmatprep.subr.mxu0 0.0
  %2928 = vmatpush1.msra.mxu0 0.0
  %2929 = vmatprep.subr.mxu0 0.0
  %2930 = vmatpush1.msra.mxu0 0.0
  %2931 = vmatprep.subr.mxu0 0.0
  %2932 = vmatpush1.msra.mxu0 0.0
  %2933 = vmatprep.subr.mxu0 0.0
  %2934 = vmatpush1.msra.mxu0 0.0
  %2935 = vmatprep.subr.mxu0 0.0
  %2936 = vmatpush1.msra.mxu0 0.0
  %2937 = vmatprep.subr.mxu0 0.0
  %2938 = vmatpush1.msra.mxu0 0.0
  %2939 = vmatprep.subr.mxu0 0.0
  %2940 = vmatpush1.msra.mxu0 0.0
  %2941 = vmatprep.subr.mxu0 0.0
  %2942 = vmatpush1.msra.mxu0 0.0
  %2943 = vmatprep.subr.mxu0 0.0
  %2944 = vmatpush1.msra.mxu0 0.0
  %2945 = vmatprep.subr.mxu0 0.0
  %2946 = vmatpush1.msra.mxu0 0.0
  %2947 = vmatprep.subr.mxu0 0.0
  %2948 = vmatpush1.msra.mxu0 0.0
  %2949 = vmatprep.subr.mxu0 0.0
  %2950 = vmatpush1.msra.mxu0 0.0
  %2951 = vmatprep.subr.mxu0 0.0
  %2952 = vmatpush1.msra.mxu0 %v2539
  %2953 = vmatprep.subr.mxu0 0.0
  %2954 = vmatpush1.msra.mxu0 %v2538
  %2955 = vmatprep.subr.mxu0 0.0
  %2956 = vmatpush2.msra.mxu0 0.0
  %2957 = vmatprep.subr.mxu0 0.0
  %2958 = vmatpush2.msra.mxu0 0.0
  %2959 = vmatprep.subr.mxu0 0.0
  %2960 = vmatpush2.msra.mxu0 0.0
  %2961 = vmatprep.subr.mxu0 0.0
  %2962 = vmatpush2.msra.mxu0 0.0
  %2963 = vmatprep.subr.mxu0 0.0
  %2964 = vmatpush2.msra.mxu0 0.0
  %2965 = vmatprep.subr.mxu0 0.0
  %2966 = vmatpush2.msra.mxu0 0.0
  %2967 = vmatprep.subr.mxu0 0.0
  %2968 = vmatpush2.msra.mxu0 0.0
  %2969 = vmatprep.subr.mxu0 0.0
  %2970 = vmatpush2.msra.mxu0 0.0
  %2971 = vmatprep.subr.mxu0 0.0
  %2972 = vmatpush2.msra.mxu0 0.0
  %2973 = vmatprep.subr.mxu0 0.0
  %2974 = vmatpush2.msra.mxu0 0.0
  %2975 = vmatprep.subr.mxu0 0.0
  %2976 = vmatpush2.msra.mxu0 0.0
  %2977 = vmatprep.subr.mxu0 0.0
  %2978 = vmatpush2.msra.mxu0 0.0
  %2979 = vmatprep.subr.mxu0 0.0
  %2980 = vmatpush2.msra.mxu0 0.0
  %2981 = vmatprep.subr.mxu0 0.0
  %2982 = vmatpush2.msra.mxu0 0.0
  %2983 = vmatprep.subr.mxu0 0.0
  %2984 = vmatpush2.msra.mxu0 0.0
  %2985 = vmatprep.subr.mxu0 0.0
  %2986 = vmatpush2.msra.mxu0 0.0
  %2987 = vmatprep.mubr.f32.mxu0 0.0
  %2988 = vmatmul.mubr.f32.gmra.mxu0 %v409
  %v2989 = vpop.f32.mrf.mxu0
  %v2990 = vadd.f32 0.0, %v2989
  %v2991 = vpop.f32.mrf.mxu0
  %2992 = vmatprep.mubr.f32.mxu0 0.0
  %2993 = vmatmul.mubr.f32.gmra.mxu0 %v412
  %v2994 = vpop.f32.mrf.mxu0
  %v2995 = vadd.f32 0.0, %v2994
  %v2996 = vpop.f32.mrf.mxu0
  %2997 = vdwg.mxu0
  %2998 = vmatprep.subr.mxu0 0.0
  %2999 = vmatpush1.msra.mxu0 0.0
  %3000 = vmatprep.subr.mxu0 0.0
  %3001 = vmatpush1.msra.mxu0 0.0
  %3002 = vmatprep.subr.mxu0 0.0
  %3003 = vmatpush1.msra.mxu0 0.0
  %3004 = vmatprep.subr.mxu0 0.0
  %3005 = vmatpush1.msra.mxu0 0.0
  %3006 = vmatprep.subr.mxu0 0.0
  %3007 = vmatpush1.msra.mxu0 0.0
  %3008 = vmatprep.subr.mxu0 0.0
  %3009 = vmatpush1.msra.mxu0 0.0
  %3010 = vmatprep.subr.mxu0 0.0
  %3011 = vmatpush1.msra.mxu0 0.0
  %3012 = vmatprep.subr.mxu0 0.0
  %3013 = vmatpush1.msra.mxu0 0.0
  %3014 = vmatprep.subr.mxu0 0.0
  %3015 = vmatpush1.msra.mxu0 0.0
  %3016 = vmatprep.subr.mxu0 0.0
  %3017 = vmatpush1.msra.mxu0 0.0
  %3018 = vmatprep.subr.mxu0 0.0
  %3019 = vmatpush1.msra.mxu0 0.0
  %3020 = vmatprep.subr.mxu0 0.0
  %3021 = vmatpush1.msra.mxu0 0.0
  %3022 = vmatprep.subr.mxu0 0.0
  %3023 = vmatpush1.msra.mxu0 0.0
  %3024 = vmatprep.subr.mxu0 0.0
  %3025 = vmatpush1.msra.mxu0 0.0
  %3026 = vmatprep.subr.mxu0 0.0
  %3027 = vmatpush1.msra.mxu0 %v2762
  %3028 = vmatprep.subr.mxu0 0.0
  %3029 = vmatpush1.msra.mxu0 %v2757
  %3030 = vmatprep.subr.mxu0 0.0
  %3031 = vmatpush2.msra.mxu0 0.0
  %3032 = vmatprep.subr.mxu0 0.0
  %3033 = vmatpush2.msra.mxu0 0.0
  %3034 = vmatprep.subr.mxu0 0.0
  %3035 = vmatpush2.msra.mxu0 0.0
  %3036 = vmatprep.subr.mxu0 0.0
  %3037 = vmatpush2.msra.mxu0 0.0
  %3038 = vmatprep.subr.mxu0 0.0
  %3039 = vmatpush2.msra.mxu0 0.0
  %3040 = vmatprep.subr.mxu0 0.0
  %3041 = vmatpush2.msra.mxu0 0.0
  %3042 = vmatprep.subr.mxu0 0.0
  %3043 = vmatpush2.msra.mxu0 0.0
  %3044 = vmatprep.subr.mxu0 0.0
  %3045 = vmatpush2.msra.mxu0 0.0
  %3046 = vmatprep.subr.mxu0 0.0
  %3047 = vmatpush2.msra.mxu0 0.0
  %3048 = vmatprep.subr.mxu0 0.0
  %3049 = vmatpush2.msra.mxu0 0.0
  %3050 = vmatprep.subr.mxu0 0.0
  %3051 = vmatpush2.msra.mxu0 0.0
  %3052 = vmatprep.subr.mxu0 0.0
  %3053 = vmatpush2.msra.mxu0 0.0
  %3054 = vmatprep.subr.mxu0 0.0
  %3055 = vmatpush2.msra.mxu0 0.0
  %3056 = vmatprep.subr.mxu0 0.0
  %3057 = vmatpush2.msra.mxu0 0.0
  %3058 = vmatprep.subr.mxu0 0.0
  %3059 = vmatpush2.msra.mxu0 0.0
  %3060 = vmatprep.subr.mxu0 0.0
  %3061 = vmatpush2.msra.mxu0 0.0
  %3062 = vmatprep.mubr.f32.mxu0 0.0
  %3063 = vmatmul.mubr.f32.gmra.mxu0 %v490
  %v3064 = vpop.f32.mrf.mxu0
  %v3065 = vadd.f32 0.0, %v3064
  %v3066 = vpop.f32.mrf.mxu0
  %3067 = vmatprep.mubr.f32.mxu0 0.0
  %3068 = vmatmul.mubr.f32.gmra.mxu0 %v493
  %v3069 = vpop.f32.mrf.mxu0
  %v3070 = vadd.f32 0.0, %v3069
  %v3071 = vpop.f32.mrf.mxu0
  %3072 = vdwg.mxu0
  %3073 = vmatprep.subr.mxu0 0.0
  %3074 = vmatpush1.msra.mxu0 0.0
  %3075 = vmatprep.subr.mxu0 0.0
  %3076 = vmatpush1.msra.mxu0 0.0
  %3077 = vmatprep.subr.mxu0 0.0
  %3078 = vmatpush1.msra.mxu0 0.0
  %3079 = vmatprep.subr.mxu0 0.0
  %3080 = vmatpush1.msra.mxu0 0.0
  %3081 = vmatprep.subr.mxu0 0.0
  %3082 = vmatpush1.msra.mxu0 0.0
  %3083 = vmatprep.subr.mxu0 0.0
  %3084 = vmatpush1.msra.mxu0 0.0
  %3085 = vmatprep.subr.mxu0 0.0
  %3086 = vmatpush1.msra.mxu0 0.0
  %3087 = vmatprep.subr.mxu0 0.0
  %3088 = vmatpush1.msra.mxu0 0.0
  %3089 = vmatprep.subr.mxu0 0.0
  %3090 = vmatpush1.msra.mxu0 0.0
  %3091 = vmatprep.subr.mxu0 0.0
  %3092 = vmatpush1.msra.mxu0 0.0
  %3093 = vmatprep.subr.mxu0 0.0
  %3094 = vmatpush1.msra.mxu0 0.0
  %3095 = vmatprep.subr.mxu0 0.0
  %3096 = vmatpush1.msra.mxu0 0.0
  %3097 = vmatprep.subr.mxu0 0.0
  %3098 = vmatpush1.msra.mxu0 0.0
  %3099 = vmatprep.subr.mxu0 0.0
  %3100 = vmatpush1.msra.mxu0 0.0
  %3101 = vmatprep.subr.mxu0 0.0
  %3102 = vmatpush1.msra.mxu0 %v2837
  %3103 = vmatprep.subr.mxu0 0.0
  %3104 = vmatpush1.msra.mxu0 %v2832
  %3105 = vmatprep.subr.mxu0 0.0
  %3106 = vmatpush2.msra.mxu0 0.0
  %3107 = vmatprep.subr.mxu0 0.0
  %3108 = vmatpush2.msra.mxu0 0.0
  %3109 = vmatprep.subr.mxu0 0.0
  %3110 = vmatpush2.msra.mxu0 0.0
  %3111 = vmatprep.subr.mxu0 0.0
  %3112 = vmatpush2.msra.mxu0 0.0
  %3113 = vmatprep.subr.mxu0 0.0
  %3114 = vmatpush2.msra.mxu0 0.0
  %3115 = vmatprep.subr.mxu0 0.0
  %3116 = vmatpush2.msra.mxu0 0.0
  %3117 = vmatprep.subr.mxu0 0.0
  %3118 = vmatpush2.msra.mxu0 0.0
  %3119 = vmatprep.subr.mxu0 0.0
  %3120 = vmatpush2.msra.mxu0 0.0
  %3121 = vmatprep.subr.mxu0 0.0
  %3122 = vmatpush2.msra.mxu0 0.0
  %3123 = vmatprep.subr.mxu0 0.0
  %3124 = vmatpush2.msra.mxu0 0.0
  %3125 = vmatprep.subr.mxu0 0.0
  %3126 = vmatpush2.msra.mxu0 0.0
  %3127 = vmatprep.subr.mxu0 0.0
  %3128 = vmatpush2.msra.mxu0 0.0
  %3129 = vmatprep.subr.mxu0 0.0
  %3130 = vmatpush2.msra.mxu0 0.0
  %3131 = vmatprep.subr.mxu0 0.0
  %3132 = vmatpush2.msra.mxu0 0.0
  %3133 = vmatprep.subr.mxu0 0.0
  %3134 = vmatpush2.msra.mxu0 0.0
  %3135 = vmatprep.subr.mxu0 0.0
  %3136 = vmatpush2.msra.mxu0 0.0
  %3137 = vmatprep.mubr.f32.mxu0 0.0
  %3138 = vmatmul.mubr.f32.gmra.mxu0 %v571
  %v3139 = vpop.f32.mrf.mxu0
  %v3140 = vadd.f32 0.0, %v3139
  %v3141 = vpop.f32.mrf.mxu0
  %3142 = vmatprep.mubr.f32.mxu0 0.0
  %3143 = vmatmul.mubr.f32.gmra.mxu0 %v574
  %v3144 = vpop.f32.mrf.mxu0
  %v3145 = vadd.f32 0.0, %v3144
  %v3146 = vpop.f32.mrf.mxu0
  %3147 = vdwg.mxu0
  %v3148 = vsub.f32 %v2915, %v3065
  %v3149 = vsub.f32 %v2920, %v3070
  %v3150 = vsub.f32 %v2990, %v3140
  %v3151 = vsub.f32 %v2995, %v3145
  %3152 = vmatprep.subr.mxu0 0.0
  %3153 = vmatpush1.msra.mxu0 0.0
  %3154 = vmatprep.subr.mxu0 0.0
  %3155 = vmatpush1.msra.mxu0 0.0
  %3156 = vmatprep.subr.mxu0 0.0
  %3157 = vmatpush1.msra.mxu0 0.0
  %3158 = vmatprep.subr.mxu0 0.0
  %3159 = vmatpush1.msra.mxu0 0.0
  %3160 = vmatprep.subr.mxu0 0.0
  %3161 = vmatpush1.msra.mxu0 0.0
  %3162 = vmatprep.subr.mxu0 0.0
  %3163 = vmatpush1.msra.mxu0 0.0
  %3164 = vmatprep.subr.mxu0 0.0
  %3165 = vmatpush1.msra.mxu0 0.0
  %3166 = vmatprep.subr.mxu0 0.0
  %3167 = vmatpush1.msra.mxu0 0.0
  %3168 = vmatprep.subr.mxu0 0.0
  %3169 = vmatpush1.msra.mxu0 0.0
  %3170 = vmatprep.subr.mxu0 0.0
  %3171 = vmatpush1.msra.mxu0 0.0
  %3172 = vmatprep.subr.mxu0 0.0
  %3173 = vmatpush1.msra.mxu0 0.0
  %3174 = vmatprep.subr.mxu0 0.0
  %3175 = vmatpush1.msra.mxu0 0.0
  %3176 = vmatprep.subr.mxu0 0.0
  %3177 = vmatpush1.msra.mxu0 0.0
  %3178 = vmatprep.subr.mxu0 0.0
  %3179 = vmatpush1.msra.mxu0 0.0
  %3180 = vmatprep.subr.mxu0 0.0
  %3181 = vmatpush1.msra.mxu0 %v2537
  %3182 = vmatprep.subr.mxu0 0.0
  %3183 = vmatpush1.msra.mxu0 %v2536
  %3184 = vmatprep.subr.mxu0 0.0
  %3185 = vmatpush2.msra.mxu0 0.0
  %3186 = vmatprep.subr.mxu0 0.0
  %3187 = vmatpush2.msra.mxu0 0.0
  %3188 = vmatprep.subr.mxu0 0.0
  %3189 = vmatpush2.msra.mxu0 0.0
  %3190 = vmatprep.subr.mxu0 0.0
  %3191 = vmatpush2.msra.mxu0 0.0
  %3192 = vmatprep.subr.mxu0 0.0
  %3193 = vmatpush2.msra.mxu0 0.0
  %3194 = vmatprep.subr.mxu0 0.0
  %3195 = vmatpush2.msra.mxu0 0.0
  %3196 = vmatprep.subr.mxu0 0.0
  %3197 = vmatpush2.msra.mxu0 0.0
  %3198 = vmatprep.subr.mxu0 0.0
  %3199 = vmatpush2.msra.mxu0 0.0
  %3200 = vmatprep.subr.mxu0 0.0
  %3201 = vmatpush2.msra.mxu0 0.0
  %3202 = vmatprep.subr.mxu0 0.0
  %3203 = vmatpush2.msra.mxu0 0.0
  %3204 = vmatprep.subr.mxu0 0.0
  %3205 = vmatpush2.msra.mxu0 0.0
  %3206 = vmatprep.subr.mxu0 0.0
  %3207 = vmatpush2.msra.mxu0 0.0
  %3208 = vmatprep.subr.mxu0 0.0
  %3209 = vmatpush2.msra.mxu0 0.0
  %3210 = vmatprep.subr.mxu0 0.0
  %3211 = vmatpush2.msra.mxu0 0.0
  %3212 = vmatprep.subr.mxu0 0.0
  %3213 = vmatpush2.msra.mxu0 0.0
  %3214 = vmatprep.subr.mxu0 0.0
  %3215 = vmatpush2.msra.mxu0 0.0
  %3216 = vmatprep.mubr.f32.mxu0 0.0
  %3217 = vmatmul.mubr.f32.gmra.mxu0 %v490
  %v3218 = vpop.f32.mrf.mxu0
  %v3219 = vadd.f32 0.0, %v3218
  %v3220 = vpop.f32.mrf.mxu0
  %3221 = vmatprep.mubr.f32.mxu0 0.0
  %3222 = vmatmul.mubr.f32.gmra.mxu0 %v493
  %v3223 = vpop.f32.mrf.mxu0
  %v3224 = vadd.f32 0.0, %v3223
  %v3225 = vpop.f32.mrf.mxu0
  %3226 = vdwg.mxu0
  %3227 = vmatprep.subr.mxu0 0.0
  %3228 = vmatpush1.msra.mxu0 0.0
  %3229 = vmatprep.subr.mxu0 0.0
  %3230 = vmatpush1.msra.mxu0 0.0
  %3231 = vmatprep.subr.mxu0 0.0
  %3232 = vmatpush1.msra.mxu0 0.0
  %3233 = vmatprep.subr.mxu0 0.0
  %3234 = vmatpush1.msra.mxu0 0.0
  %3235 = vmatprep.subr.mxu0 0.0
  %3236 = vmatpush1.msra.mxu0 0.0
  %3237 = vmatprep.subr.mxu0 0.0
  %3238 = vmatpush1.msra.mxu0 0.0
  %3239 = vmatprep.subr.mxu0 0.0
  %3240 = vmatpush1.msra.mxu0 0.0
  %3241 = vmatprep.subr.mxu0 0.0
  %3242 = vmatpush1.msra.mxu0 0.0
  %3243 = vmatprep.subr.mxu0 0.0
  %3244 = vmatpush1.msra.mxu0 0.0
  %3245 = vmatprep.subr.mxu0 0.0
  %3246 = vmatpush1.msra.mxu0 0.0
  %3247 = vmatprep.subr.mxu0 0.0
  %3248 = vmatpush1.msra.mxu0 0.0
  %3249 = vmatprep.subr.mxu0 0.0
  %3250 = vmatpush1.msra.mxu0 0.0
  %3251 = vmatprep.subr.mxu0 0.0
  %3252 = vmatpush1.msra.mxu0 0.0
  %3253 = vmatprep.subr.mxu0 0.0
  %3254 = vmatpush1.msra.mxu0 0.0
  %3255 = vmatprep.subr.mxu0 0.0
  %3256 = vmatpush1.msra.mxu0 %v2539
  %3257 = vmatprep.subr.mxu0 0.0
  %3258 = vmatpush1.msra.mxu0 %v2538
  %3259 = vmatprep.subr.mxu0 0.0
  %3260 = vmatpush2.msra.mxu0 0.0
  %3261 = vmatprep.subr.mxu0 0.0
  %3262 = vmatpush2.msra.mxu0 0.0
  %3263 = vmatprep.subr.mxu0 0.0
  %3264 = vmatpush2.msra.mxu0 0.0
  %3265 = vmatprep.subr.mxu0 0.0
  %3266 = vmatpush2.msra.mxu0 0.0
  %3267 = vmatprep.subr.mxu0 0.0
  %3268 = vmatpush2.msra.mxu0 0.0
  %3269 = vmatprep.subr.mxu0 0.0
  %3270 = vmatpush2.msra.mxu0 0.0
  %3271 = vmatprep.subr.mxu0 0.0
  %3272 = vmatpush2.msra.mxu0 0.0
  %3273 = vmatprep.subr.mxu0 0.0
  %3274 = vmatpush2.msra.mxu0 0.0
  %3275 = vmatprep.subr.mxu0 0.0
  %3276 = vmatpush2.msra.mxu0 0.0
  %3277 = vmatprep.subr.mxu0 0.0
  %3278 = vmatpush2.msra.mxu0 0.0
  %3279 = vmatprep.subr.mxu0 0.0
  %3280 = vmatpush2.msra.mxu0 0.0
  %3281 = vmatprep.subr.mxu0 0.0
  %3282 = vmatpush2.msra.mxu0 0.0
  %3283 = vmatprep.subr.mxu0 0.0
  %3284 = vmatpush2.msra.mxu0 0.0
  %3285 = vmatprep.subr.mxu0 0.0
  %3286 = vmatpush2.msra.mxu0 0.0
  %3287 = vmatprep.subr.mxu0 0.0
  %3288 = vmatpush2.msra.mxu0 0.0
  %3289 = vmatprep.subr.mxu0 0.0
  %3290 = vmatpush2.msra.mxu0 0.0
  %3291 = vmatprep.mubr.f32.mxu0 0.0
  %3292 = vmatmul.mubr.f32.gmra.mxu0 %v571
  %v3293 = vpop.f32.mrf.mxu0
  %v3294 = vadd.f32 0.0, %v3293
  %v3295 = vpop.f32.mrf.mxu0
  %3296 = vmatprep.mubr.f32.mxu0 0.0
  %3297 = vmatmul.mubr.f32.gmra.mxu0 %v574
  %v3298 = vpop.f32.mrf.mxu0
  %v3299 = vadd.f32 0.0, %v3298
  %v3300 = vpop.f32.mrf.mxu0
  %3301 = vdwg.mxu0
  %3302 = vmatprep.subr.mxu0 0.0
  %3303 = vmatpush1.msra.mxu0 0.0
  %3304 = vmatprep.subr.mxu0 0.0
  %3305 = vmatpush1.msra.mxu0 0.0
  %3306 = vmatprep.subr.mxu0 0.0
  %3307 = vmatpush1.msra.mxu0 0.0
  %3308 = vmatprep.subr.mxu0 0.0
  %3309 = vmatpush1.msra.mxu0 0.0
  %3310 = vmatprep.subr.mxu0 0.0
  %3311 = vmatpush1.msra.mxu0 0.0
  %3312 = vmatprep.subr.mxu0 0.0
  %3313 = vmatpush1.msra.mxu0 0.0
  %3314 = vmatprep.subr.mxu0 0.0
  %3315 = vmatpush1.msra.mxu0 0.0
  %3316 = vmatprep.subr.mxu0 0.0
  %3317 = vmatpush1.msra.mxu0 0.0
  %3318 = vmatprep.subr.mxu0 0.0
  %3319 = vmatpush1.msra.mxu0 0.0
  %3320 = vmatprep.subr.mxu0 0.0
  %3321 = vmatpush1.msra.mxu0 0.0
  %3322 = vmatprep.subr.mxu0 0.0
  %3323 = vmatpush1.msra.mxu0 0.0
  %3324 = vmatprep.subr.mxu0 0.0
  %3325 = vmatpush1.msra.mxu0 0.0
  %3326 = vmatprep.subr.mxu0 0.0
  %3327 = vmatpush1.msra.mxu0 0.0
  %3328 = vmatprep.subr.mxu0 0.0
  %3329 = vmatpush1.msra.mxu0 0.0
  %3330 = vmatprep.subr.mxu0 0.0
  %3331 = vmatpush1.msra.mxu0 %v2762
  %3332 = vmatprep.subr.mxu0 0.0
  %3333 = vmatpush1.msra.mxu0 %v2757
  %3334 = vmatprep.subr.mxu0 0.0
  %3335 = vmatpush2.msra.mxu0 0.0
  %3336 = vmatprep.subr.mxu0 0.0
  %3337 = vmatpush2.msra.mxu0 0.0
  %3338 = vmatprep.subr.mxu0 0.0
  %3339 = vmatpush2.msra.mxu0 0.0
  %3340 = vmatprep.subr.mxu0 0.0
  %3341 = vmatpush2.msra.mxu0 0.0
  %3342 = vmatprep.subr.mxu0 0.0
  %3343 = vmatpush2.msra.mxu0 0.0
  %3344 = vmatprep.subr.mxu0 0.0
  %3345 = vmatpush2.msra.mxu0 0.0
  %3346 = vmatprep.subr.mxu0 0.0
  %3347 = vmatpush2.msra.mxu0 0.0
  %3348 = vmatprep.subr.mxu0 0.0
  %3349 = vmatpush2.msra.mxu0 0.0
  %3350 = vmatprep.subr.mxu0 0.0
  %3351 = vmatpush2.msra.mxu0 0.0
  %3352 = vmatprep.subr.mxu0 0.0
  %3353 = vmatpush2.msra.mxu0 0.0
  %3354 = vmatprep.subr.mxu0 0.0
  %3355 = vmatpush2.msra.mxu0 0.0
  %3356 = vmatprep.subr.mxu0 0.0
  %3357 = vmatpush2.msra.mxu0 0.0
  %3358 = vmatprep.subr.mxu0 0.0
  %3359 = vmatpush2.msra.mxu0 0.0
  %3360 = vmatprep.subr.mxu0 0.0
  %3361 = vmatpush2.msra.mxu0 0.0
  %3362 = vmatprep.subr.mxu0 0.0
  %3363 = vmatpush2.msra.mxu0 0.0
  %3364 = vmatprep.subr.mxu0 0.0
  %3365 = vmatpush2.msra.mxu0 0.0
  %3366 = vmatprep.mubr.f32.mxu0 0.0
  %3367 = vmatmul.mubr.f32.gmra.mxu0 %v328
  %v3368 = vpop.f32.mrf.mxu0
  %v3369 = vadd.f32 %v3219, %v3368
  %v3370 = vpop.f32.mrf.mxu0
  %3371 = vmatprep.mubr.f32.mxu0 0.0
  %3372 = vmatmul.mubr.f32.gmra.mxu0 %v331
  %v3373 = vpop.f32.mrf.mxu0
  %v3374 = vadd.f32 %v3224, %v3373
  %v3375 = vpop.f32.mrf.mxu0
  %3376 = vdwg.mxu0
  %3377 = vmatprep.subr.mxu0 0.0
  %3378 = vmatpush1.msra.mxu0 0.0
  %3379 = vmatprep.subr.mxu0 0.0
  %3380 = vmatpush1.msra.mxu0 0.0
  %3381 = vmatprep.subr.mxu0 0.0
  %3382 = vmatpush1.msra.mxu0 0.0
  %3383 = vmatprep.subr.mxu0 0.0
  %3384 = vmatpush1.msra.mxu0 0.0
  %3385 = vmatprep.subr.mxu0 0.0
  %3386 = vmatpush1.msra.mxu0 0.0
  %3387 = vmatprep.subr.mxu0 0.0
  %3388 = vmatpush1.msra.mxu0 0.0
  %3389 = vmatprep.subr.mxu0 0.0
  %3390 = vmatpush1.msra.mxu0 0.0
  %3391 = vmatprep.subr.mxu0 0.0
  %3392 = vmatpush1.msra.mxu0 0.0
  %3393 = vmatprep.subr.mxu0 0.0
  %3394 = vmatpush1.msra.mxu0 0.0
  %3395 = vmatprep.subr.mxu0 0.0
  %3396 = vmatpush1.msra.mxu0 0.0
  %3397 = vmatprep.subr.mxu0 0.0
  %3398 = vmatpush1.msra.mxu0 0.0
  %3399 = vmatprep.subr.mxu0 0.0
  %3400 = vmatpush1.msra.mxu0 0.0
  %3401 = vmatprep.subr.mxu0 0.0
  %3402 = vmatpush1.msra.mxu0 0.0
  %3403 = vmatprep.subr.mxu0 0.0
  %3404 = vmatpush1.msra.mxu0 0.0
  %3405 = vmatprep.subr.mxu0 0.0
  %3406 = vmatpush1.msra.mxu0 %v2837
  %3407 = vmatprep.subr.mxu0 0.0
  %3408 = vmatpush1.msra.mxu0 %v2832
  %3409 = vmatprep.subr.mxu0 0.0
  %3410 = vmatpush2.msra.mxu0 0.0
  %3411 = vmatprep.subr.mxu0 0.0
  %3412 = vmatpush2.msra.mxu0 0.0
  %3413 = vmatprep.subr.mxu0 0.0
  %3414 = vmatpush2.msra.mxu0 0.0
  %3415 = vmatprep.subr.mxu0 0.0
  %3416 = vmatpush2.msra.mxu0 0.0
  %3417 = vmatprep.subr.mxu0 0.0
  %3418 = vmatpush2.msra.mxu0 0.0
  %3419 = vmatprep.subr.mxu0 0.0
  %3420 = vmatpush2.msra.mxu0 0.0
  %3421 = vmatprep.subr.mxu0 0.0
  %3422 = vmatpush2.msra.mxu0 0.0
  %3423 = vmatprep.subr.mxu0 0.0
  %3424 = vmatpush2.msra.mxu0 0.0
  %3425 = vmatprep.subr.mxu0 0.0
  %3426 = vmatpush2.msra.mxu0 0.0
  %3427 = vmatprep.subr.mxu0 0.0
  %3428 = vmatpush2.msra.mxu0 0.0
  %3429 = vmatprep.subr.mxu0 0.0
  %3430 = vmatpush2.msra.mxu0 0.0
  %3431 = vmatprep.subr.mxu0 0.0
  %3432 = vmatpush2.msra.mxu0 0.0
  %3433 = vmatprep.subr.mxu0 0.0
  %3434 = vmatpush2.msra.mxu0 0.0
  %3435 = vmatprep.subr.mxu0 0.0
  %3436 = vmatpush2.msra.mxu0 0.0
  %3437 = vmatprep.subr.mxu0 0.0
  %3438 = vmatpush2.msra.mxu0 0.0
  %3439 = vmatprep.subr.mxu0 0.0
  %3440 = vmatpush2.msra.mxu0 0.0
  %3441 = vmatprep.mubr.f32.mxu0 0.0
  %3442 = vmatmul.mubr.f32.gmra.mxu0 %v409
  %v3443 = vpop.f32.mrf.mxu0
  %v3444 = vadd.f32 %v3294, %v3443
  %v3445 = vpop.f32.mrf.mxu0
  %3446 = vmatprep.mubr.f32.mxu0 0.0
  %3447 = vmatmul.mubr.f32.gmra.mxu0 %v412
  %v3448 = vpop.f32.mrf.mxu0
  %v3449 = vadd.f32 %v3299, %v3448
  %v3450 = vpop.f32.mrf.mxu0
  %3451 = vdwg.mxu0
  %3454 = vrot.lane.b32.xlu0 %v167, 112
  %v3455 = vpop.permute.xlu0 %3454
  %3456 = vrot.lane.b32.xlu0 %v168, 112
  %v3457 = vpop.permute.xlu0 %3456
  %v3458 = vsel %vm326, %v3455, 0
  %v3460 = vsel %vm326, %v3457, 0
  %3462 = vmatprep.subr.mxu0 0.0
  %3463 = vmatpush1.msra.mxu0 0.0
  %3464 = vmatprep.subr.mxu0 0.0
  %3465 = vmatpush1.msra.mxu0 0.0
  %3466 = vmatprep.subr.mxu0 0.0
  %3467 = vmatpush1.msra.mxu0 0.0
  %3468 = vmatprep.subr.mxu0 0.0
  %3469 = vmatpush1.msra.mxu0 0.0
  %3470 = vmatprep.subr.mxu0 0.0
  %3471 = vmatpush1.msra.mxu0 0.0
  %3472 = vmatprep.subr.mxu0 0.0
  %3473 = vmatpush1.msra.mxu0 0.0
  %3474 = vmatprep.subr.mxu0 0.0
  %3475 = vmatpush1.msra.mxu0 0.0
  %3476 = vmatprep.subr.mxu0 0.0
  %3477 = vmatpush1.msra.mxu0 0.0
  %3478 = vmatprep.subr.mxu0 0.0
  %3479 = vmatpush1.msra.mxu0 0.0
  %3480 = vmatprep.subr.mxu0 0.0
  %3481 = vmatpush1.msra.mxu0 0.0
  %3482 = vmatprep.subr.mxu0 0.0
  %3483 = vmatpush1.msra.mxu0 0.0
  %3484 = vmatprep.subr.mxu0 0.0
  %3485 = vmatpush1.msra.mxu0 0.0
  %3486 = vmatprep.subr.mxu0 0.0
  %3487 = vmatpush1.msra.mxu0 0.0
  %3488 = vmatprep.subr.mxu0 0.0
  %3489 = vmatpush1.msra.mxu0 0.0
  %3490 = vmatprep.subr.mxu0 0.0
  %3491 = vmatpush1.msra.mxu0 %v3149
  %3492 = vmatprep.subr.mxu0 0.0
  %3493 = vmatpush1.msra.mxu0 %v3148
  %3494 = vmatprep.subr.mxu0 0.0
  %3495 = vmatpush2.msra.mxu0 0.0
  %3496 = vmatprep.subr.mxu0 0.0
  %3497 = vmatpush2.msra.mxu0 0.0
  %3498 = vmatprep.subr.mxu0 0.0
  %3499 = vmatpush2.msra.mxu0 0.0
  %3500 = vmatprep.subr.mxu0 0.0
  %3501 = vmatpush2.msra.mxu0 0.0
  %3502 = vmatprep.subr.mxu0 0.0
  %3503 = vmatpush2.msra.mxu0 0.0
  %3504 = vmatprep.subr.mxu0 0.0
  %3505 = vmatpush2.msra.mxu0 0.0
  %3506 = vmatprep.subr.mxu0 0.0
  %3507 = vmatpush2.msra.mxu0 0.0
  %3508 = vmatprep.subr.mxu0 0.0
  %3509 = vmatpush2.msra.mxu0 0.0
  %3510 = vmatprep.subr.mxu0 0.0
  %3511 = vmatpush2.msra.mxu0 0.0
  %3512 = vmatprep.subr.mxu0 0.0
  %3513 = vmatpush2.msra.mxu0 0.0
  %3514 = vmatprep.subr.mxu0 0.0
  %3515 = vmatpush2.msra.mxu0 0.0
  %3516 = vmatprep.subr.mxu0 0.0
  %3517 = vmatpush2.msra.mxu0 0.0
  %3518 = vmatprep.subr.mxu0 0.0
  %3519 = vmatpush2.msra.mxu0 0.0
  %3520 = vmatprep.subr.mxu0 0.0
  %3521 = vmatpush2.msra.mxu0 0.0
  %3522 = vmatprep.subr.mxu0 0.0
  %3523 = vmatpush2.msra.mxu0 0.0
  %3524 = vmatprep.subr.mxu0 0.0
  %3525 = vmatpush2.msra.mxu0 0.0
  %3526 = vmatprep.mubr.f32.mxu0 0.0
  %3527 = vmatmul.mubr.f32.gmra.mxu0 %v3458
  %v3528 = vpop.f32.mrf.mxu0
  %v3529 = vadd.f32 0.0, %v3528
  %v3530 = vpop.f32.mrf.mxu0
  %3531 = vmatprep.mubr.f32.mxu0 0.0
  %3532 = vmatmul.mubr.f32.gmra.mxu0 %v3460
  %v3533 = vpop.f32.mrf.mxu0
  %v3534 = vadd.f32 0.0, %v3533
  %v3535 = vpop.f32.mrf.mxu0
  %3536 = vdwg.mxu0
  %3539 = vrot.lane.b32.xlu0 %v169, 112
  %v3540 = vpop.permute.xlu0 %3539
  %3541 = vrot.lane.b32.xlu0 %v170, 112
  %v3542 = vpop.permute.xlu0 %3541
  %v3543 = vsel %vm326, %v3540, 0
  %v3545 = vsel %vm326, %v3542, 0
  %3547 = vmatprep.subr.mxu0 0.0
  %3548 = vmatpush1.msra.mxu0 0.0
  %3549 = vmatprep.subr.mxu0 0.0
  %3550 = vmatpush1.msra.mxu0 0.0
  %3551 = vmatprep.subr.mxu0 0.0
  %3552 = vmatpush1.msra.mxu0 0.0
  %3553 = vmatprep.subr.mxu0 0.0
  %3554 = vmatpush1.msra.mxu0 0.0
  %3555 = vmatprep.subr.mxu0 0.0
  %3556 = vmatpush1.msra.mxu0 0.0
  %3557 = vmatprep.subr.mxu0 0.0
  %3558 = vmatpush1.msra.mxu0 0.0
  %3559 = vmatprep.subr.mxu0 0.0
  %3560 = vmatpush1.msra.mxu0 0.0
  %3561 = vmatprep.subr.mxu0 0.0
  %3562 = vmatpush1.msra.mxu0 0.0
  %3563 = vmatprep.subr.mxu0 0.0
  %3564 = vmatpush1.msra.mxu0 0.0
  %3565 = vmatprep.subr.mxu0 0.0
  %3566 = vmatpush1.msra.mxu0 0.0
  %3567 = vmatprep.subr.mxu0 0.0
  %3568 = vmatpush1.msra.mxu0 0.0
  %3569 = vmatprep.subr.mxu0 0.0
  %3570 = vmatpush1.msra.mxu0 0.0
  %3571 = vmatprep.subr.mxu0 0.0
  %3572 = vmatpush1.msra.mxu0 0.0
  %3573 = vmatprep.subr.mxu0 0.0
  %3574 = vmatpush1.msra.mxu0 0.0
  %3575 = vmatprep.subr.mxu0 0.0
  %3576 = vmatpush1.msra.mxu0 %v3151
  %3577 = vmatprep.subr.mxu0 0.0
  %3578 = vmatpush1.msra.mxu0 %v3150
  %3579 = vmatprep.subr.mxu0 0.0
  %3580 = vmatpush2.msra.mxu0 0.0
  %3581 = vmatprep.subr.mxu0 0.0
  %3582 = vmatpush2.msra.mxu0 0.0
  %3583 = vmatprep.subr.mxu0 0.0
  %3584 = vmatpush2.msra.mxu0 0.0
  %3585 = vmatprep.subr.mxu0 0.0
  %3586 = vmatpush2.msra.mxu0 0.0
  %3587 = vmatprep.subr.mxu0 0.0
  %3588 = vmatpush2.msra.mxu0 0.0
  %3589 = vmatprep.subr.mxu0 0.0
  %3590 = vmatpush2.msra.mxu0 0.0
  %3591 = vmatprep.subr.mxu0 0.0
  %3592 = vmatpush2.msra.mxu0 0.0
  %3593 = vmatprep.subr.mxu0 0.0
  %3594 = vmatpush2.msra.mxu0 0.0
  %3595 = vmatprep.subr.mxu0 0.0
  %3596 = vmatpush2.msra.mxu0 0.0
  %3597 = vmatprep.subr.mxu0 0.0
  %3598 = vmatpush2.msra.mxu0 0.0
  %3599 = vmatprep.subr.mxu0 0.0
  %3600 = vmatpush2.msra.mxu0 0.0
  %3601 = vmatprep.subr.mxu0 0.0
  %3602 = vmatpush2.msra.mxu0 0.0
  %3603 = vmatprep.subr.mxu0 0.0
  %3604 = vmatpush2.msra.mxu0 0.0
  %3605 = vmatprep.subr.mxu0 0.0
  %3606 = vmatpush2.msra.mxu0 0.0
  %3607 = vmatprep.subr.mxu0 0.0
  %3608 = vmatpush2.msra.mxu0 0.0
  %3609 = vmatprep.subr.mxu0 0.0
  %3610 = vmatpush2.msra.mxu0 0.0
  %3611 = vmatprep.mubr.f32.mxu0 0.0
  %3612 = vmatmul.mubr.f32.gmra.mxu0 %v3543
  %v3613 = vpop.f32.mrf.mxu0
  %v3614 = vadd.f32 0.0, %v3613
  %v3615 = vpop.f32.mrf.mxu0
  %3616 = vmatprep.mubr.f32.mxu0 0.0
  %3617 = vmatmul.mubr.f32.gmra.mxu0 %v3545
  %v3618 = vpop.f32.mrf.mxu0
  %v3619 = vadd.f32 0.0, %v3618
  %v3620 = vpop.f32.mrf.mxu0
  %3621 = vdwg.mxu0
  %3624 = vrot.lane.b32.xlu0 %v189, 80
  %v3625 = vpop.permute.xlu0 %3624
  %3626 = vrot.lane.b32.xlu0 %v190, 80
  %v3627 = vpop.permute.xlu0 %3626
  %v3628 = vsel %vm326, %v3625, 0
  %v3630 = vsel %vm326, %v3627, 0
  %3632 = vmatprep.subr.mxu0 0.0
  %3633 = vmatpush1.msra.mxu0 0.0
  %3634 = vmatprep.subr.mxu0 0.0
  %3635 = vmatpush1.msra.mxu0 0.0
  %3636 = vmatprep.subr.mxu0 0.0
  %3637 = vmatpush1.msra.mxu0 0.0
  %3638 = vmatprep.subr.mxu0 0.0
  %3639 = vmatpush1.msra.mxu0 0.0
  %3640 = vmatprep.subr.mxu0 0.0
  %3641 = vmatpush1.msra.mxu0 0.0
  %3642 = vmatprep.subr.mxu0 0.0
  %3643 = vmatpush1.msra.mxu0 0.0
  %3644 = vmatprep.subr.mxu0 0.0
  %3645 = vmatpush1.msra.mxu0 0.0
  %3646 = vmatprep.subr.mxu0 0.0
  %3647 = vmatpush1.msra.mxu0 0.0
  %3648 = vmatprep.subr.mxu0 0.0
  %3649 = vmatpush1.msra.mxu0 0.0
  %3650 = vmatprep.subr.mxu0 0.0
  %3651 = vmatpush1.msra.mxu0 0.0
  %3652 = vmatprep.subr.mxu0 0.0
  %3653 = vmatpush1.msra.mxu0 0.0
  %3654 = vmatprep.subr.mxu0 0.0
  %3655 = vmatpush1.msra.mxu0 0.0
  %3656 = vmatprep.subr.mxu0 0.0
  %3657 = vmatpush1.msra.mxu0 0.0
  %3658 = vmatprep.subr.mxu0 0.0
  %3659 = vmatpush1.msra.mxu0 0.0
  %3660 = vmatprep.subr.mxu0 0.0
  %3661 = vmatpush1.msra.mxu0 %v3374
  %3662 = vmatprep.subr.mxu0 0.0
  %3663 = vmatpush1.msra.mxu0 %v3369
  %3664 = vmatprep.subr.mxu0 0.0
  %3665 = vmatpush2.msra.mxu0 0.0
  %3666 = vmatprep.subr.mxu0 0.0
  %3667 = vmatpush2.msra.mxu0 0.0
  %3668 = vmatprep.subr.mxu0 0.0
  %3669 = vmatpush2.msra.mxu0 0.0
  %3670 = vmatprep.subr.mxu0 0.0
  %3671 = vmatpush2.msra.mxu0 0.0
  %3672 = vmatprep.subr.mxu0 0.0
  %3673 = vmatpush2.msra.mxu0 0.0
  %3674 = vmatprep.subr.mxu0 0.0
  %3675 = vmatpush2.msra.mxu0 0.0
  %3676 = vmatprep.subr.mxu0 0.0
  %3677 = vmatpush2.msra.mxu0 0.0
  %3678 = vmatprep.subr.mxu0 0.0
  %3679 = vmatpush2.msra.mxu0 0.0
  %3680 = vmatprep.subr.mxu0 0.0
  %3681 = vmatpush2.msra.mxu0 0.0
  %3682 = vmatprep.subr.mxu0 0.0
  %3683 = vmatpush2.msra.mxu0 0.0
  %3684 = vmatprep.subr.mxu0 0.0
  %3685 = vmatpush2.msra.mxu0 0.0
  %3686 = vmatprep.subr.mxu0 0.0
  %3687 = vmatpush2.msra.mxu0 0.0
  %3688 = vmatprep.subr.mxu0 0.0
  %3689 = vmatpush2.msra.mxu0 0.0
  %3690 = vmatprep.subr.mxu0 0.0
  %3691 = vmatpush2.msra.mxu0 0.0
  %3692 = vmatprep.subr.mxu0 0.0
  %3693 = vmatpush2.msra.mxu0 0.0
  %3694 = vmatprep.subr.mxu0 0.0
  %3695 = vmatpush2.msra.mxu0 0.0
  %3696 = vmatprep.mubr.f32.mxu0 0.0
  %3697 = vmatmul.mubr.f32.gmra.mxu0 %v3628
  %v3698 = vpop.f32.mrf.mxu0
  %v3699 = vadd.f32 0.0, %v3698
  %v3700 = vpop.f32.mrf.mxu0
  %3701 = vmatprep.mubr.f32.mxu0 0.0
  %3702 = vmatmul.mubr.f32.gmra.mxu0 %v3630
  %v3703 = vpop.f32.mrf.mxu0
  %v3704 = vadd.f32 0.0, %v3703
  %v3705 = vpop.f32.mrf.mxu0
  %3706 = vdwg.mxu0
  %3709 = vrot.lane.b32.xlu0 %v191, 80
  %v3710 = vpop.permute.xlu0 %3709
  %3711 = vrot.lane.b32.xlu0 %v192, 80
  %v3712 = vpop.permute.xlu0 %3711
  %v3713 = vsel %vm326, %v3710, 0
  %v3715 = vsel %vm326, %v3712, 0
  %3717 = vmatprep.subr.mxu0 0.0
  %3718 = vmatpush1.msra.mxu0 0.0
  %3719 = vmatprep.subr.mxu0 0.0
  %3720 = vmatpush1.msra.mxu0 0.0
  %3721 = vmatprep.subr.mxu0 0.0
  %3722 = vmatpush1.msra.mxu0 0.0
  %3723 = vmatprep.subr.mxu0 0.0
  %3724 = vmatpush1.msra.mxu0 0.0
  %3725 = vmatprep.subr.mxu0 0.0
  %3726 = vmatpush1.msra.mxu0 0.0
  %3727 = vmatprep.subr.mxu0 0.0
  %3728 = vmatpush1.msra.mxu0 0.0
  %3729 = vmatprep.subr.mxu0 0.0
  %3730 = vmatpush1.msra.mxu0 0.0
  %3731 = vmatprep.subr.mxu0 0.0
  %3732 = vmatpush1.msra.mxu0 0.0
  %3733 = vmatprep.subr.mxu0 0.0
  %3734 = vmatpush1.msra.mxu0 0.0
  %3735 = vmatprep.subr.mxu0 0.0
  %3736 = vmatpush1.msra.mxu0 0.0
  %3737 = vmatprep.subr.mxu0 0.0
  %3738 = vmatpush1.msra.mxu0 0.0
  %3739 = vmatprep.subr.mxu0 0.0
  %3740 = vmatpush1.msra.mxu0 0.0
  %3741 = vmatprep.subr.mxu0 0.0
  %3742 = vmatpush1.msra.mxu0 0.0
  %3743 = vmatprep.subr.mxu0 0.0
  %3744 = vmatpush1.msra.mxu0 0.0
  %3745 = vmatprep.subr.mxu0 0.0
  %3746 = vmatpush1.msra.mxu0 %v3449
  %3747 = vmatprep.subr.mxu0 0.0
  %3748 = vmatpush1.msra.mxu0 %v3444
  %3749 = vmatprep.subr.mxu0 0.0
  %3750 = vmatpush2.msra.mxu0 0.0
  %3751 = vmatprep.subr.mxu0 0.0
  %3752 = vmatpush2.msra.mxu0 0.0
  %3753 = vmatprep.subr.mxu0 0.0
  %3754 = vmatpush2.msra.mxu0 0.0
  %3755 = vmatprep.subr.mxu0 0.0
  %3756 = vmatpush2.msra.mxu0 0.0
  %3757 = vmatprep.subr.mxu0 0.0
  %3758 = vmatpush2.msra.mxu0 0.0
  %3759 = vmatprep.subr.mxu0 0.0
  %3760 = vmatpush2.msra.mxu0 0.0
  %3761 = vmatprep.subr.mxu0 0.0
  %3762 = vmatpush2.msra.mxu0 0.0
  %3763 = vmatprep.subr.mxu0 0.0
  %3764 = vmatpush2.msra.mxu0 0.0
  %3765 = vmatprep.subr.mxu0 0.0
  %3766 = vmatpush2.msra.mxu0 0.0
  %3767 = vmatprep.subr.mxu0 0.0
  %3768 = vmatpush2.msra.mxu0 0.0
  %3769 = vmatprep.subr.mxu0 0.0
  %3770 = vmatpush2.msra.mxu0 0.0
  %3771 = vmatprep.subr.mxu0 0.0
  %3772 = vmatpush2.msra.mxu0 0.0
  %3773 = vmatprep.subr.mxu0 0.0
  %3774 = vmatpush2.msra.mxu0 0.0
  %3775 = vmatprep.subr.mxu0 0.0
  %3776 = vmatpush2.msra.mxu0 0.0
  %3777 = vmatprep.subr.mxu0 0.0
  %3778 = vmatpush2.msra.mxu0 0.0
  %3779 = vmatprep.subr.mxu0 0.0
  %3780 = vmatpush2.msra.mxu0 0.0
  %3781 = vmatprep.mubr.f32.mxu0 0.0
  %3782 = vmatmul.mubr.f32.gmra.mxu0 %v3713
  %v3783 = vpop.f32.mrf.mxu0
  %v3784 = vadd.f32 0.0, %v3783
  %v3785 = vpop.f32.mrf.mxu0
  %3786 = vmatprep.mubr.f32.mxu0 0.0
  %3787 = vmatmul.mubr.f32.gmra.mxu0 %v3715
  %v3788 = vpop.f32.mrf.mxu0
  %v3789 = vadd.f32 0.0, %v3788
  %v3790 = vpop.f32.mrf.mxu0
  %3791 = vdwg.mxu0
  %v3792 = vsub.f32 %v3529, %v3699
  %v3793 = vsub.f32 %v3534, %v3704
  %v3794 = vsub.f32 %v3614, %v3784
  %v3795 = vsub.f32 %v3619, %v3789
  %3796 = vmatprep.subr.mxu0 0.0
  %3797 = vmatpush1.msra.mxu0 0.0
  %3798 = vmatprep.subr.mxu0 0.0
  %3799 = vmatpush1.msra.mxu0 0.0
  %3800 = vmatprep.subr.mxu0 0.0
  %3801 = vmatpush1.msra.mxu0 0.0
  %3802 = vmatprep.subr.mxu0 0.0
  %3803 = vmatpush1.msra.mxu0 0.0
  %3804 = vmatprep.subr.mxu0 0.0
  %3805 = vmatpush1.msra.mxu0 0.0
  %3806 = vmatprep.subr.mxu0 0.0
  %3807 = vmatpush1.msra.mxu0 0.0
  %3808 = vmatprep.subr.mxu0 0.0
  %3809 = vmatpush1.msra.mxu0 0.0
  %3810 = vmatprep.subr.mxu0 0.0
  %3811 = vmatpush1.msra.mxu0 0.0
  %3812 = vmatprep.subr.mxu0 0.0
  %3813 = vmatpush1.msra.mxu0 0.0
  %3814 = vmatprep.subr.mxu0 0.0
  %3815 = vmatpush1.msra.mxu0 0.0
  %3816 = vmatprep.subr.mxu0 0.0
  %3817 = vmatpush1.msra.mxu0 0.0
  %3818 = vmatprep.subr.mxu0 0.0
  %3819 = vmatpush1.msra.mxu0 0.0
  %3820 = vmatprep.subr.mxu0 0.0
  %3821 = vmatpush1.msra.mxu0 0.0
  %3822 = vmatprep.subr.mxu0 0.0
  %3823 = vmatpush1.msra.mxu0 0.0
  %3824 = vmatprep.subr.mxu0 0.0
  %3825 = vmatpush1.msra.mxu0 %v3149
  %3826 = vmatprep.subr.mxu0 0.0
  %3827 = vmatpush1.msra.mxu0 %v3148
  %3828 = vmatprep.subr.mxu0 0.0
  %3829 = vmatpush2.msra.mxu0 0.0
  %3830 = vmatprep.subr.mxu0 0.0
  %3831 = vmatpush2.msra.mxu0 0.0
  %3832 = vmatprep.subr.mxu0 0.0
  %3833 = vmatpush2.msra.mxu0 0.0
  %3834 = vmatprep.subr.mxu0 0.0
  %3835 = vmatpush2.msra.mxu0 0.0
  %3836 = vmatprep.subr.mxu0 0.0
  %3837 = vmatpush2.msra.mxu0 0.0
  %3838 = vmatprep.subr.mxu0 0.0
  %3839 = vmatpush2.msra.mxu0 0.0
  %3840 = vmatprep.subr.mxu0 0.0
  %3841 = vmatpush2.msra.mxu0 0.0
  %3842 = vmatprep.subr.mxu0 0.0
  %3843 = vmatpush2.msra.mxu0 0.0
  %3844 = vmatprep.subr.mxu0 0.0
  %3845 = vmatpush2.msra.mxu0 0.0
  %3846 = vmatprep.subr.mxu0 0.0
  %3847 = vmatpush2.msra.mxu0 0.0
  %3848 = vmatprep.subr.mxu0 0.0
  %3849 = vmatpush2.msra.mxu0 0.0
  %3850 = vmatprep.subr.mxu0 0.0
  %3851 = vmatpush2.msra.mxu0 0.0
  %3852 = vmatprep.subr.mxu0 0.0
  %3853 = vmatpush2.msra.mxu0 0.0
  %3854 = vmatprep.subr.mxu0 0.0
  %3855 = vmatpush2.msra.mxu0 0.0
  %3856 = vmatprep.subr.mxu0 0.0
  %3857 = vmatpush2.msra.mxu0 0.0
  %3858 = vmatprep.subr.mxu0 0.0
  %3859 = vmatpush2.msra.mxu0 0.0
  %3860 = vmatprep.mubr.f32.mxu0 0.0
  %3861 = vmatmul.mubr.f32.gmra.mxu0 %v3628
  %v3862 = vpop.f32.mrf.mxu0
  %v3863 = vadd.f32 0.0, %v3862
  %v3864 = vpop.f32.mrf.mxu0
  %3865 = vmatprep.mubr.f32.mxu0 0.0
  %3866 = vmatmul.mubr.f32.gmra.mxu0 %v3630
  %v3867 = vpop.f32.mrf.mxu0
  %v3868 = vadd.f32 0.0, %v3867
  %v3869 = vpop.f32.mrf.mxu0
  %3870 = vdwg.mxu0
  %3871 = vmatprep.subr.mxu0 0.0
  %3872 = vmatpush1.msra.mxu0 0.0
  %3873 = vmatprep.subr.mxu0 0.0
  %3874 = vmatpush1.msra.mxu0 0.0
  %3875 = vmatprep.subr.mxu0 0.0
  %3876 = vmatpush1.msra.mxu0 0.0
  %3877 = vmatprep.subr.mxu0 0.0
  %3878 = vmatpush1.msra.mxu0 0.0
  %3879 = vmatprep.subr.mxu0 0.0
  %3880 = vmatpush1.msra.mxu0 0.0
  %3881 = vmatprep.subr.mxu0 0.0
  %3882 = vmatpush1.msra.mxu0 0.0
  %3883 = vmatprep.subr.mxu0 0.0
  %3884 = vmatpush1.msra.mxu0 0.0
  %3885 = vmatprep.subr.mxu0 0.0
  %3886 = vmatpush1.msra.mxu0 0.0
  %3887 = vmatprep.subr.mxu0 0.0
  %3888 = vmatpush1.msra.mxu0 0.0
  %3889 = vmatprep.subr.mxu0 0.0
  %3890 = vmatpush1.msra.mxu0 0.0
  %3891 = vmatprep.subr.mxu0 0.0
  %3892 = vmatpush1.msra.mxu0 0.0
  %3893 = vmatprep.subr.mxu0 0.0
  %3894 = vmatpush1.msra.mxu0 0.0
  %3895 = vmatprep.subr.mxu0 0.0
  %3896 = vmatpush1.msra.mxu0 0.0
  %3897 = vmatprep.subr.mxu0 0.0
  %3898 = vmatpush1.msra.mxu0 0.0
  %3899 = vmatprep.subr.mxu0 0.0
  %3900 = vmatpush1.msra.mxu0 %v3151
  %3901 = vmatprep.subr.mxu0 0.0
  %3902 = vmatpush1.msra.mxu0 %v3150
  %3903 = vmatprep.subr.mxu0 0.0
  %3904 = vmatpush2.msra.mxu0 0.0
  %3905 = vmatprep.subr.mxu0 0.0
  %3906 = vmatpush2.msra.mxu0 0.0
  %3907 = vmatprep.subr.mxu0 0.0
  %3908 = vmatpush2.msra.mxu0 0.0
  %3909 = vmatprep.subr.mxu0 0.0
  %3910 = vmatpush2.msra.mxu0 0.0
  %3911 = vmatprep.subr.mxu0 0.0
  %3912 = vmatpush2.msra.mxu0 0.0
  %3913 = vmatprep.subr.mxu0 0.0
  %3914 = vmatpush2.msra.mxu0 0.0
  %3915 = vmatprep.subr.mxu0 0.0
  %3916 = vmatpush2.msra.mxu0 0.0
  %3917 = vmatprep.subr.mxu0 0.0
  %3918 = vmatpush2.msra.mxu0 0.0
  %3919 = vmatprep.subr.mxu0 0.0
  %3920 = vmatpush2.msra.mxu0 0.0
  %3921 = vmatprep.subr.mxu0 0.0
  %3922 = vmatpush2.msra.mxu0 0.0
  %3923 = vmatprep.subr.mxu0 0.0
  %3924 = vmatpush2.msra.mxu0 0.0
  %3925 = vmatprep.subr.mxu0 0.0
  %3926 = vmatpush2.msra.mxu0 0.0
  %3927 = vmatprep.subr.mxu0 0.0
  %3928 = vmatpush2.msra.mxu0 0.0
  %3929 = vmatprep.subr.mxu0 0.0
  %3930 = vmatpush2.msra.mxu0 0.0
  %3931 = vmatprep.subr.mxu0 0.0
  %3932 = vmatpush2.msra.mxu0 0.0
  %3933 = vmatprep.subr.mxu0 0.0
  %3934 = vmatpush2.msra.mxu0 0.0
  %3935 = vmatprep.mubr.f32.mxu0 0.0
  %3936 = vmatmul.mubr.f32.gmra.mxu0 %v3713
  %v3937 = vpop.f32.mrf.mxu0
  %v3938 = vadd.f32 0.0, %v3937
  %v3939 = vpop.f32.mrf.mxu0
  %3940 = vmatprep.mubr.f32.mxu0 0.0
  %3941 = vmatmul.mubr.f32.gmra.mxu0 %v3715
  %v3942 = vpop.f32.mrf.mxu0
  %v3943 = vadd.f32 0.0, %v3942
  %v3944 = vpop.f32.mrf.mxu0
  %3945 = vdwg.mxu0
  %3946 = vmatprep.subr.mxu0 0.0
  %3947 = vmatpush1.msra.mxu0 0.0
  %3948 = vmatprep.subr.mxu0 0.0
  %3949 = vmatpush1.msra.mxu0 0.0
  %3950 = vmatprep.subr.mxu0 0.0
  %3951 = vmatpush1.msra.mxu0 0.0
  %3952 = vmatprep.subr.mxu0 0.0
  %3953 = vmatpush1.msra.mxu0 0.0
  %3954 = vmatprep.subr.mxu0 0.0
  %3955 = vmatpush1.msra.mxu0 0.0
  %3956 = vmatprep.subr.mxu0 0.0
  %3957 = vmatpush1.msra.mxu0 0.0
  %3958 = vmatprep.subr.mxu0 0.0
  %3959 = vmatpush1.msra.mxu0 0.0
  %3960 = vmatprep.subr.mxu0 0.0
  %3961 = vmatpush1.msra.mxu0 0.0
  %3962 = vmatprep.subr.mxu0 0.0
  %3963 = vmatpush1.msra.mxu0 0.0
  %3964 = vmatprep.subr.mxu0 0.0
  %3965 = vmatpush1.msra.mxu0 0.0
  %3966 = vmatprep.subr.mxu0 0.0
  %3967 = vmatpush1.msra.mxu0 0.0
  %3968 = vmatprep.subr.mxu0 0.0
  %3969 = vmatpush1.msra.mxu0 0.0
  %3970 = vmatprep.subr.mxu0 0.0
  %3971 = vmatpush1.msra.mxu0 0.0
  %3972 = vmatprep.subr.mxu0 0.0
  %3973 = vmatpush1.msra.mxu0 0.0
  %3974 = vmatprep.subr.mxu0 0.0
  %3975 = vmatpush1.msra.mxu0 %v3374
  %3976 = vmatprep.subr.mxu0 0.0
  %3977 = vmatpush1.msra.mxu0 %v3369
  %3978 = vmatprep.subr.mxu0 0.0
  %3979 = vmatpush2.msra.mxu0 0.0
  %3980 = vmatprep.subr.mxu0 0.0
  %3981 = vmatpush2.msra.mxu0 0.0
  %3982 = vmatprep.subr.mxu0 0.0
  %3983 = vmatpush2.msra.mxu0 0.0
  %3984 = vmatprep.subr.mxu0 0.0
  %3985 = vmatpush2.msra.mxu0 0.0
  %3986 = vmatprep.subr.mxu0 0.0
  %3987 = vmatpush2.msra.mxu0 0.0
  %3988 = vmatprep.subr.mxu0 0.0
  %3989 = vmatpush2.msra.mxu0 0.0
  %3990 = vmatprep.subr.mxu0 0.0
  %3991 = vmatpush2.msra.mxu0 0.0
  %3992 = vmatprep.subr.mxu0 0.0
  %3993 = vmatpush2.msra.mxu0 0.0
  %3994 = vmatprep.subr.mxu0 0.0
  %3995 = vmatpush2.msra.mxu0 0.0
  %3996 = vmatprep.subr.mxu0 0.0
  %3997 = vmatpush2.msra.mxu0 0.0
  %3998 = vmatprep.subr.mxu0 0.0
  %3999 = vmatpush2.msra.mxu0 0.0
  %4000 = vmatprep.subr.mxu0 0.0
  %4001 = vmatpush2.msra.mxu0 0.0
  %4002 = vmatprep.subr.mxu0 0.0
  %4003 = vmatpush2.msra.mxu0 0.0
  %4004 = vmatprep.subr.mxu0 0.0
  %4005 = vmatpush2.msra.mxu0 0.0
  %4006 = vmatprep.subr.mxu0 0.0
  %4007 = vmatpush2.msra.mxu0 0.0
  %4008 = vmatprep.subr.mxu0 0.0
  %4009 = vmatpush2.msra.mxu0 0.0
  %4010 = vmatprep.mubr.f32.mxu0 0.0
  %4011 = vmatmul.mubr.f32.gmra.mxu0 %v3458
  %v4012 = vpop.f32.mrf.mxu0
  %v4013 = vadd.f32 %v3863, %v4012
  %v4014 = vpop.f32.mrf.mxu0
  %4015 = vmatprep.mubr.f32.mxu0 0.0
  %4016 = vmatmul.mubr.f32.gmra.mxu0 %v3460
  %v4017 = vpop.f32.mrf.mxu0
  %v4018 = vadd.f32 %v3868, %v4017
  %v4019 = vpop.f32.mrf.mxu0
  %4020 = vdwg.mxu0
  %4021 = vmatprep.subr.mxu0 0.0
  %4022 = vmatpush1.msra.mxu0 0.0
  %4023 = vmatprep.subr.mxu0 0.0
  %4024 = vmatpush1.msra.mxu0 0.0
  %4025 = vmatprep.subr.mxu0 0.0
  %4026 = vmatpush1.msra.mxu0 0.0
  %4027 = vmatprep.subr.mxu0 0.0
  %4028 = vmatpush1.msra.mxu0 0.0
  %4029 = vmatprep.subr.mxu0 0.0
  %4030 = vmatpush1.msra.mxu0 0.0
  %4031 = vmatprep.subr.mxu0 0.0
  %4032 = vmatpush1.msra.mxu0 0.0
  %4033 = vmatprep.subr.mxu0 0.0
  %4034 = vmatpush1.msra.mxu0 0.0
  %4035 = vmatprep.subr.mxu0 0.0
  %4036 = vmatpush1.msra.mxu0 0.0
  %4037 = vmatprep.subr.mxu0 0.0
  %4038 = vmatpush1.msra.mxu0 0.0
  %4039 = vmatprep.subr.mxu0 0.0
  %4040 = vmatpush1.msra.mxu0 0.0
  %4041 = vmatprep.subr.mxu0 0.0
  %4042 = vmatpush1.msra.mxu0 0.0
  %4043 = vmatprep.subr.mxu0 0.0
  %4044 = vmatpush1.msra.mxu0 0.0
  %4045 = vmatprep.subr.mxu0 0.0
  %4046 = vmatpush1.msra.mxu0 0.0
  %4047 = vmatprep.subr.mxu0 0.0
  %4048 = vmatpush1.msra.mxu0 0.0
  %4049 = vmatprep.subr.mxu0 0.0
  %4050 = vmatpush1.msra.mxu0 %v3449
  %4051 = vmatprep.subr.mxu0 0.0
  %4052 = vmatpush1.msra.mxu0 %v3444
  %4053 = vmatprep.subr.mxu0 0.0
  %4054 = vmatpush2.msra.mxu0 0.0
  %4055 = vmatprep.subr.mxu0 0.0
  %4056 = vmatpush2.msra.mxu0 0.0
  %4057 = vmatprep.subr.mxu0 0.0
  %4058 = vmatpush2.msra.mxu0 0.0
  %4059 = vmatprep.subr.mxu0 0.0
  %4060 = vmatpush2.msra.mxu0 0.0
  %4061 = vmatprep.subr.mxu0 0.0
  %4062 = vmatpush2.msra.mxu0 0.0
  %4063 = vmatprep.subr.mxu0 0.0
  %4064 = vmatpush2.msra.mxu0 0.0
  %4065 = vmatprep.subr.mxu0 0.0
  %4066 = vmatpush2.msra.mxu0 0.0
  %4067 = vmatprep.subr.mxu0 0.0
  %4068 = vmatpush2.msra.mxu0 0.0
  %4069 = vmatprep.subr.mxu0 0.0
  %4070 = vmatpush2.msra.mxu0 0.0
  %4071 = vmatprep.subr.mxu0 0.0
  %4072 = vmatpush2.msra.mxu0 0.0
  %4073 = vmatprep.subr.mxu0 0.0
  %4074 = vmatpush2.msra.mxu0 0.0
  %4075 = vmatprep.subr.mxu0 0.0
  %4076 = vmatpush2.msra.mxu0 0.0
  %4077 = vmatprep.subr.mxu0 0.0
  %4078 = vmatpush2.msra.mxu0 0.0
  %4079 = vmatprep.subr.mxu0 0.0
  %4080 = vmatpush2.msra.mxu0 0.0
  %4081 = vmatprep.subr.mxu0 0.0
  %4082 = vmatpush2.msra.mxu0 0.0
  %4083 = vmatprep.subr.mxu0 0.0
  %4084 = vmatpush2.msra.mxu0 0.0
  %4085 = vmatprep.mubr.f32.mxu0 0.0
  %4086 = vmatmul.mubr.f32.gmra.mxu0 %v3543
  %v4087 = vpop.f32.mrf.mxu0
  %v4088 = vadd.f32 %v3938, %v4087
  %v4089 = vpop.f32.mrf.mxu0
  %4090 = vmatprep.mubr.f32.mxu0 0.0
  %4091 = vmatmul.mubr.f32.gmra.mxu0 %v3545
  %v4092 = vpop.f32.mrf.mxu0
  %v4093 = vadd.f32 %v3943, %v4092
  %v4094 = vpop.f32.mrf.mxu0
  %4095 = vdwg.mxu0
  %4096 = vst.msk [vmem:[%s10] sm:$0xff] %vm1591, %v3792
  %4097 = vst.msk [vmem:[%s10 + $0x8] sm:$0xff] %vm1591, %v3793
  %4098 = vst.msk [vmem:[%s10 + $0x10] sm:$0xff] %vm1591, %v3794
  %4099 = vst.msk [vmem:[%s10 + $0x18] sm:$0xff] %vm1591, %v3795
  %4100 = vst.msk [vmem:[%s11] sm:$0xff] %vm1591, %v4013
  %4101 = vst.msk [vmem:[%s11 + $0x8] sm:$0xff] %vm1591, %v4018
  %4102 = vst.msk [vmem:[%s11 + $0x10] sm:$0xff] %vm1591, %v4088
  %4103 = vst.msk [vmem:[%s11 + $0x18] sm:$0xff] %vm1591, %v4093
  // Predicated region
  $region42: #{iteration_block.1} parent=0 // pred_check
    _
  $region43: #{iteration_block.1} parent=0 // pred_check_branch
    %4105 = sbr.rel (0) target = $region45
  $region44: #{iteration_block.1} parent=0 // pred_region
    _
  $region45: #{iteration_block.1} parent=0 // pred_fallthru
    _
  // Predicated region
  $region46: #{iteration_block.1} parent=0 // pred_check
    _
  $region47: #{iteration_block.1} parent=0 // pred_check_branch
    %4107 = sbr.rel (0) target = $region49
  $region48: #{iteration_block.1} parent=0 // pred_region
    _
  $region49: #{iteration_block.1} parent=0 // pred_fallthru
    _
  // Predicated region
  $region50: #{iteration_block.1} parent=0 // pred_check
    _
  $region51: #{iteration_block.1} parent=0 // pred_check_branch
    %4109 = sbr.rel (0) target = $region53
  $region52: #{iteration_block.1} parent=0 // pred_region
    _
  $region53: #{iteration_block.1} parent=0 // pred_fallthru
    _
  // Predicated region
  $region54: #{iteration_block.1} parent=0 // pred_check
    _
  $region55: #{iteration_block.1} parent=0 // pred_check_branch
    %4111 = sbr.rel (0) target = $region57
  $region56: #{iteration_block.1} parent=0 // pred_region
    _
  $region57: #{iteration_block.1} parent=0 // pred_fallthru
    _
  // Predicated region
  $region58: #{iteration_block.1} parent=0 // pred_check
    _
  $region59: #{iteration_block.1} parent=0 // pred_check_branch
    %4113 = sbr.rel (0) target = $region61
  $region60: #{iteration_block.1} parent=0 // pred_region
    _
  $region61: #{iteration_block.1} parent=0 // pred_fallthru
    _
  // Predicated region
  $region62: #{iteration_block.1} parent=0 // pred_check
    _
  $region63: #{iteration_block.1} parent=0 // pred_check_branch
    %4115 = sbr.rel (0) target = $region65
  $region64: #{iteration_block.1} parent=0 // pred_region
    _
  $region65: #{iteration_block.1} parent=0 // pred_fallthru
    _
  // Predicated region
  $region66: #{iteration_block.1} parent=0 // pred_check
    _
  $region67: #{iteration_block.1} parent=0 // pred_check_branch
    %4117 = sbr.rel (0) target = $region69
  $region68: #{iteration_block.1} parent=0 // pred_region
    _
  $region69: #{iteration_block.1} parent=0 // pred_fallthru
    _
  // Predicated region
  $region70: #{iteration_block.1} parent=0 // pred_check
    _
  $region71: #{iteration_block.1} parent=0 // pred_check_branch
    %4119 = sbr.rel (0) target = $region73
  $region72: #{iteration_block.1} parent=0 // pred_region
    _
  $region73: #{iteration_block.1} parent=0 // pred_fallthru
    _
  // Predicated region
  $region74: #{iteration_block.1} parent=0 // pred_check
    _
  $region75: #{iteration_block.1} parent=0 // pred_check_branch
    %4121 = sbr.rel (0) target = $region77
  $region76: #{iteration_block.1} parent=0 // pred_region
    _
  $region77: #{iteration_block.1} parent=0 // pred_fallthru
    _
  // Predicated region
  $region78: #{iteration_block.1} parent=0 // pred_check
    _
  $region79: #{iteration_block.1} parent=0 // pred_check_branch
    %4123 = sbr.rel (0) target = $region81
  $region80: #{iteration_block.1} parent=0 // pred_region
    _
  $region81: #{iteration_block.1} parent=0 // pred_fallthru
    _
  // Predicated region
  $region82: #{iteration_block.1} parent=0 // pred_check
    _
  $region83: #{iteration_block.1} parent=0 // pred_check_branch
    %4125 = sbr.rel (0) target = $region85
  $region84: #{iteration_block.1} parent=0 // pred_region
    _
  $region85: #{iteration_block.1} parent=0 // pred_fallthru
    _
  // Predicated region
  $region86: #{iteration_block.1} parent=0 // pred_check
    _
  $region87: #{iteration_block.1} parent=0 // pred_check_branch
    %4127 = sbr.rel (0) target = $region89
  $region88: #{iteration_block.1} parent=0 // pred_region
    _
  $region89: #{iteration_block.1} parent=0 // pred_fallthru
    _

</llo_original>
